<compile_context>
chip_gen: v5e
topology: v5e:2x2
jax: 0.10.0
libtpu: 0.0.40
codegen_flags: <defaults>
</compile_context>

<pallas_src>
import functools
import math

import jax
import jax.numpy as jnp
from jax.experimental import pallas as pl
from jax.experimental.pallas import tpu as pltpu


VMEM_LIMIT = 32 * 1024 * 1024  # safe on v5e/v6e/v7x scoped-VMEM budgets


# ------------------------------ tiling helper ------------------------------ #

def _pick_tile(dim, target, granularity):
    """Largest tile <= target that divides `dim` and is a multiple of
    `granularity`; falls back to the full dim (single block along that axis,
    which is exempt from the (8,128) divisibility rule)."""
    if dim <= target:
        return dim
    t = (target // granularity) * granularity
    while t >= granularity:
        if dim % t == 0:
            return t
        t -= granularity
    return dim


# ------------------------- fused dense (+bias, +act) ------------------------ #

def _dense_kernel(x_ref, w_ref, b_ref, o_ref, acc_ref, *, activation):
    @pl.when(pl.program_id(2) == 0)
    def _():
        acc_ref[...] = jnp.zeros_like(acc_ref)

    # bf16 MXU operands (pre-cast in HBM), f32 accumulation.
    acc_ref[...] += jnp.dot(x_ref[...], w_ref[...],
                            preferred_element_type=jnp.float32)

    @pl.when(pl.program_id(2) == pl.num_programs(2) - 1)
    def _():
        y = acc_ref[...] + b_ref[...]
        if activation == "gelu":
            # tanh-approx GELU: the transcendental goes to the (otherwise
            # idle) EUP slot; differs from exact erf-GELU at ~1e-3 level.
            c = math.sqrt(2.0 / math.pi)
            y = 0.5 * y * (1.0 + jnp.tanh(c * (y + 0.044715 * y * y * y)))
        o_ref[...] = y.astype(o_ref.dtype)


def dense(x, w, b, activation="none"):
    """out = act(x @ w + b), tiled over (M, N, K) with an f32 accumulator.
    bf16 in / bf16 out; accumulator scratch kept because the output is bf16."""
    M, K = x.shape
    _, N = w.shape
    tm = _pick_tile(M, 512, 8)
    tn = _pick_tile(N, 512, 128)
    tk = _pick_tile(K, 1024, 128)
    b2 = b.reshape(1, N).astype(jnp.float32)
    # TODO(synk): on v5e add pipeline_mode=pl.Buffered(3) to the weight spec
    #             to deepen the weight stream once K//tk > 2.
    return pl.pallas_call(
        functools.partial(_dense_kernel, activation=activation),
        out_shape=jax.ShapeDtypeStruct((M, N), jnp.bfloat16),
        grid=(M // tm, N // tn, K // tk),
        in_specs=[
            pl.BlockSpec((tm, tk), lambda i, j, k: (i, k)),
            pl.BlockSpec((tk, tn), lambda i, j, k: (k, j)),
            pl.BlockSpec((1, tn), lambda i, j, k: (0, j)),
        ],
        out_specs=pl.BlockSpec((tm, tn), lambda i, j, k: (i, j)),
        scratch_shapes=[pltpu.VMEM((tm, tn), jnp.float32)],
        compiler_params=pltpu.CompilerParams(
            dimension_semantics=("parallel", "parallel", "arbitrary"),
            vmem_limit_bytes=VMEM_LIMIT),
    )(x.astype(jnp.bfloat16), w.astype(jnp.bfloat16), b2)


# ---------------- fused dense + residual-add + LayerNorm ------------------- #

def _dense_add_ln_kernel(x_ref, w_ref, b_ref, r_ref, g_ref, be_ref, o_ref,
                         acc_ref, *, eps):
    @pl.when(pl.program_id(1) == 0)
    def _():
        acc_ref[...] = jnp.zeros_like(acc_ref)

    acc_ref[...] += jnp.dot(x_ref[...], w_ref[...],
                            preferred_element_type=jnp.float32)

    @pl.when(pl.program_id(1) == pl.num_programs(1) - 1)
    def _():
        y = acc_ref[...] + b_ref[...] + r_ref[...].astype(jnp.float32)
        mu = jnp.mean(y, axis=-1, keepdims=True)
        yc = y - mu
        var = jnp.mean(yc * yc, axis=-1, keepdims=True)
        z = yc * jax.lax.rsqrt(var + eps)
        o_ref[...] = (z * g_ref[...] + be_ref[...]).astype(o_ref.dtype)


def dense_add_layernorm(x, w, b, residual, gamma, beta, eps=1e-12):
    """out = LayerNorm(x @ w + b + residual) in one kernel (LN needs the full
    output row, so N stays un-tiled; tile over M rows and K contraction)."""
    M, K = x.shape
    _, N = w.shape
    tm = _pick_tile(M, 512, 8)
    tk = _pick_tile(K, 1024, 128)
    b2 = b.reshape(1, N).astype(jnp.float32)
    g2 = gamma.reshape(1, N).astype(jnp.float32)
    be2 = beta.reshape(1, N).astype(jnp.float32)
    return pl.pallas_call(
        functools.partial(_dense_add_ln_kernel, eps=eps),
        out_shape=jax.ShapeDtypeStruct((M, N), jnp.bfloat16),
        grid=(M // tm, K // tk),
        in_specs=[
            pl.BlockSpec((tm, tk), lambda i, k: (i, k)),
            pl.BlockSpec((tk, N), lambda i, k: (k, 0)),
            pl.BlockSpec((1, N), lambda i, k: (0, 0)),
            pl.BlockSpec((tm, N), lambda i, k: (i, 0)),
            pl.BlockSpec((1, N), lambda i, k: (0, 0)),
            pl.BlockSpec((1, N), lambda i, k: (0, 0)),
        ],
        out_specs=pl.BlockSpec((tm, N), lambda i, k: (i, 0)),
        scratch_shapes=[pltpu.VMEM((tm, N), jnp.float32)],
        compiler_params=pltpu.CompilerParams(
            dimension_semantics=("parallel", "arbitrary"),
            vmem_limit_bytes=VMEM_LIMIT),
    )(x.astype(jnp.bfloat16), w.astype(jnp.bfloat16), b2, residual, g2, be2)


# --------------------- residual-add + LayerNorm (embeddings) ---------------- #

def _add_ln_kernel(x_ref, r_ref, g_ref, b_ref, o_ref, *, eps):
    x = x_ref[...].astype(jnp.float32) + r_ref[...].astype(jnp.float32)
    mu = jnp.mean(x, axis=-1, keepdims=True)
    xc = x - mu
    var = jnp.mean(xc * xc, axis=-1, keepdims=True)
    y = xc * jax.lax.rsqrt(var + eps)
    o_ref[...] = (y * g_ref[...] + b_ref[...]).astype(o_ref.dtype)


def add_layernorm(x, residual, gamma, beta, eps=1e-12):
    M, H = x.shape
    tm = _pick_tile(M, 1024, 8)
    g2 = gamma.reshape(1, H).astype(jnp.float32)
    b2 = beta.reshape(1, H).astype(jnp.float32)
    return pl.pallas_call(
        functools.partial(_add_ln_kernel, eps=eps),
        out_shape=jax.ShapeDtypeStruct((M, H), jnp.bfloat16),
        grid=(M // tm,),
        in_specs=[
            pl.BlockSpec((tm, H), lambda i: (i, 0)),
            pl.BlockSpec((tm, H), lambda i: (i, 0)),
            pl.BlockSpec((1, H), lambda i: (0, 0)),
            pl.BlockSpec((1, H), lambda i: (0, 0)),
        ],
        out_specs=pl.BlockSpec((tm, H), lambda i: (i, 0)),
        compiler_params=pltpu.CompilerParams(
            dimension_semantics=("parallel",),
            vmem_limit_bytes=VMEM_LIMIT),
    )(x, residual, g2, b2)


# --------------------------- multi-head attention --------------------------- #

def _attn_kernel(m_ref, q_ref, k_ref, v_ref, o_ref, *, num_heads, head_dim):
    # q already carries the 1/sqrt(Dh) scale (folded into wq/bq offline).
    mask = m_ref[0]                                              # (1, S) f32
    ctxs = []
    for h in range(num_heads):                                   # static loop
        lo, hi = h * head_dim, (h + 1) * head_dim
        q = q_ref[0, :, lo:hi]                                   # (tq, Dh) bf16
        k = k_ref[0, :, lo:hi]                                   # (S,  Dh) bf16
        v = v_ref[0, :, lo:hi]                                   # (S,  Dh) bf16
        s = jnp.einsum("qd,kd->qk", q, k,
                       preferred_element_type=jnp.float32)       # (tq, S)
        s = s + mask                                             # additive mask
        s = s - jnp.max(s, axis=-1, keepdims=True)
        p = jnp.exp(s)
        p = p / jnp.sum(p, axis=-1, keepdims=True)               # exact softmax
        ctxs.append(jnp.dot(p.astype(jnp.bfloat16), v,
                            preferred_element_type=jnp.float32)) # (tq, Dh)
    # one lane-dense (tq, H) store instead of nH narrow Dh-wide stores
    o_ref[0] = jnp.concatenate(ctxs, axis=-1).astype(o_ref.dtype)


def attention(qkv3, add_mask, num_heads, head_dim):
    """qkv3: (B, S, 3H) fused projection (Q|K|V along the lane axis).
    add_mask: (B, 1, S) additive mask (0 / -1e4).  Returns (B, S, H) context
    with heads already merged (no XLA transposes)."""
    B, S, threeH = qkv3.shape
    H = num_heads * head_dim
    tq = _pick_tile(S, 256, 8)
    return pl.pallas_call(
        functools.partial(_attn_kernel, num_heads=num_heads, head_dim=head_dim),
        out_shape=jax.ShapeDtypeStruct((B, S, H), jnp.bfloat16),
        grid=(B, S // tq),
        in_specs=[
            pl.BlockSpec((1, 1, S), lambda b, i: (b, 0, 0)),   # mask (per batch)
            pl.BlockSpec((1, tq, H), lambda b, i: (b, i, 0)),  # Q slab of qkv
            pl.BlockSpec((1, S, H), lambda b, i: (b, 0, 1)),   # K slab of qkv
            pl.BlockSpec((1, S, H), lambda b, i: (b, 0, 2)),   # V slab of qkv
        ],
        out_specs=pl.BlockSpec((1, tq, H), lambda b, i: (b, i, 0)),
        compiler_params=pltpu.CompilerParams(
            dimension_semantics=("parallel", "parallel"),
            vmem_limit_bytes=VMEM_LIMIT),
    )(add_mask, qkv3, qkv3, qkv3)


# ----------------------------- BERT definition ----------------------------- #

class BertConfig:
    vocab_size = 64
    type_vocab_size = 2
    max_position = 16
    hidden = 128            # full 128-lane tiles for every block's last dim
    num_heads = 2
    head_dim = 64
    intermediate = 256
    num_layers = 2
    ln_eps = 1e-12


def init_params(key, cfg):
    def nrm(k, shape, scale=0.02):
        return (scale * jax.random.normal(k, shape)).astype(jnp.float32)

    keys = iter(jax.random.split(key, 64))
    p = {
        "word_emb": nrm(next(keys), (cfg.vocab_size, cfg.hidden)),
        "pos_emb": nrm(next(keys), (cfg.max_position, cfg.hidden)),
        "type_emb": nrm(next(keys), (cfg.type_vocab_size, cfg.hidden)),
        "emb_ln_g": jnp.ones((cfg.hidden,), jnp.float32),
        "emb_ln_b": jnp.zeros((cfg.hidden,), jnp.float32),
        "layers": [],
        "pool_w": nrm(next(keys), (cfg.hidden, cfg.hidden)),
        "pool_b": jnp.zeros((cfg.hidden,), jnp.float32),
    }
    for _ in range(cfg.num_layers):
        layer = {
            "wq": nrm(next(keys), (cfg.hidden, cfg.hidden)),
            "bq": jnp.zeros((cfg.hidden,), jnp.float32),
            "wk": nrm(next(keys), (cfg.hidden, cfg.hidden)),
            "bk": jnp.zeros((cfg.hidden,), jnp.float32),
            "wv": nrm(next(keys), (cfg.hidden, cfg.hidden)),
            "bv": jnp.zeros((cfg.hidden,), jnp.float32),
            "wo": nrm(next(keys), (cfg.hidden, cfg.hidden)),
            "bo": jnp.zeros((cfg.hidden,), jnp.float32),
            "ln1_g": jnp.ones((cfg.hidden,), jnp.float32),
            "ln1_b": jnp.zeros((cfg.hidden,), jnp.float32),
            "wi": nrm(next(keys), (cfg.hidden, cfg.intermediate)),
            "bi": jnp.zeros((cfg.intermediate,), jnp.float32),
            "wf": nrm(next(keys), (cfg.intermediate, cfg.hidden)),
            "bf": jnp.zeros((cfg.hidden,), jnp.float32),
            "ln2_g": jnp.ones((cfg.hidden,), jnp.float32),
            "ln2_b": jnp.zeros((cfg.hidden,), jnp.float32),
        }
        p["layers"].append(layer)
    return p


def prepare_params(params, cfg):
    """One-time offline prep: fold 1/sqrt(Dh) into the Q projection,
    concatenate Q|K|V into a single (H, 3H) weight, and cast all matmul
    weights + embedding tables to bf16 (halves HBM DMA volume)."""
    scale = 1.0 / math.sqrt(cfg.head_dim)
    out = {
        "word_emb": params["word_emb"].astype(jnp.bfloat16),
        "pos_emb": params["pos_emb"].astype(jnp.bfloat16),
        "type_emb": params["type_emb"].astype(jnp.bfloat16),
        "emb_ln_g": params["emb_ln_g"],
        "emb_ln_b": params["emb_ln_b"],
        "pool_w": params["pool_w"],
        "pool_b": params["pool_b"],
        "layers": [],
    }
    for lp in params["layers"]:
        nl = {
            "wqkv": jnp.concatenate([lp["wq"] * scale, lp["wk"], lp["wv"]],
                                    axis=1).astype(jnp.bfloat16),
            "bqkv": jnp.concatenate([lp["bq"] * scale, lp["bk"], lp["bv"]]),
            "wo": lp["wo"].astype(jnp.bfloat16), "bo": lp["bo"],
            "ln1_g": lp["ln1_g"], "ln1_b": lp["ln1_b"],
            "wi": lp["wi"].astype(jnp.bfloat16), "bi": lp["bi"],
            "wf": lp["wf"].astype(jnp.bfloat16), "bf": lp["bf"],
            "ln2_g": lp["ln2_g"], "ln2_b": lp["ln2_b"],
        }
        out["layers"].append(nl)
    return out


def bert_encoder_forward(params, cfg, input_ids, attention_mask, token_type_ids):
    """Replicates BertEncoder.forward: returns the BERT pooler_output."""
    B, S = input_ids.shape
    H, nH, Dh = cfg.hidden, cfg.num_heads, cfg.head_dim

    # ---- embeddings (gathers are glue; add+LayerNorm is a Pallas kernel) ----
    pos_ids = jnp.arange(S, dtype=jnp.int32)
    we = jnp.take(params["word_emb"], input_ids, axis=0)            # (B,S,H)
    pe = jnp.take(params["pos_emb"], pos_ids, axis=0)[None, :, :]   # (1,S,H)
    te = jnp.take(params["type_emb"], token_type_ids, axis=0)       # (B,S,H)
    emb_a = (we + pe).reshape(B * S, H)
    emb_b = te.reshape(B * S, H)
    h = add_layernorm(emb_a, emb_b, params["emb_ln_g"], params["emb_ln_b"],
                      eps=cfg.ln_eps)                               # (B*S,H) bf16

    # additive attention mask, shared across heads: (B, 1, S)
    add_mask = ((1.0 - attention_mask.astype(jnp.float32)) * -10000.0
                ).reshape(B, 1, S)

    # ---- transformer layers ----
    for lp in params["layers"]:
        # one fused QKV matmul (scale already folded into the Q slice)
        qkv = dense(h, lp["wqkv"], lp["bqkv"])                      # (B*S, 3H)
        # attention reads Q/K/V as lane-slices of the fused qkv activation;
        # heads are split & merged inside the kernel (no XLA transposes)
        ctx = attention(qkv.reshape(B, S, 3 * H), add_mask, nH, Dh) # (B,S,H)

        # fused: output projection + residual add + LayerNorm
        h = dense_add_layernorm(ctx.reshape(B * S, H), lp["wo"], lp["bo"], h,
                                lp["ln1_g"], lp["ln1_b"], eps=cfg.ln_eps)

        # FFN: up-proj + GELU, then fused down-proj + residual add + LayerNorm
        ffn = dense(h, lp["wi"], lp["bi"], activation="gelu")
        h = dense_add_layernorm(ffn, lp["wf"], lp["bf"], h,
                                lp["ln2_g"], lp["ln2_b"], eps=cfg.ln_eps)

    # ---- pooler: tanh(W * hidden[:, 0, :] + b) ----
    # (B, H) is far below a vreg tile -> plain JAX (f32) per perf review.
    cls = h.reshape(B, S, H)[:, 0, :].astype(jnp.float32)           # (B, H)
    pooled = jnp.tanh(cls @ params["pool_w"] + params["pool_b"])
    return pooled                                                   # (B, H) f32


# --------------------------------- driver ---------------------------------- #

if __name__ == "__main__":
    cfg = BertConfig()
    B, S = 2, 16

    key = jax.random.PRNGKey(0)
    k_param, k_ids = jax.random.split(key)

    params = prepare_params(init_params(k_param, cfg), cfg)

    input_ids = jax.random.randint(k_ids, (B, S), 0, cfg.vocab_size,
                                   dtype=jnp.int32)
    # second sequence has 4 padding positions to exercise the attention mask
    attention_mask = jnp.ones((B, S), dtype=jnp.int32).at[1, S - 4:].set(0)
    token_type_ids = jnp.zeros((B, S), dtype=jnp.int32)

    fwd = jax.jit(lambda p, ii, am, tti: bert_encoder_forward(p, cfg, ii, am, tti))
    pooler_output = fwd(params, input_ids, attention_mask, token_type_ids)
    pooler_output = jax.block_until_ready(pooler_output)

    assert pooler_output.shape == (B, cfg.hidden)
    assert pooler_output.dtype == jnp.float32
    assert bool(jnp.all(jnp.isfinite(pooler_output)))
    print("KERNEL_OK")
</pallas_src>

<mosaic_0001>
module attributes {stable_mosaic.version = 11 : i64} {
  func.func @_attn_kernel(%arg0: i32, %arg1: i32, %arg2: memref<1x1x16xf32, #tpu.memory_space<vmem>>, %arg3: memref<1x16x128xbf16, #tpu.memory_space<vmem>>, %arg4: memref<1x16x128xbf16, #tpu.memory_space<vmem>>, %arg5: memref<1x16x128xbf16, #tpu.memory_space<vmem>>, %arg6: memref<1x16x128xbf16, #tpu.memory_space<vmem>>) attributes {dimension_semantics = [#tpu.dimension_semantics<parallel>, #tpu.dimension_semantics<parallel>], iteration_bounds = array<i64: 2, 1>, scalar_prefetch = 0 : i64, scratch_operands = 0 : i64, tpu.core_type = #tpu.core_type<tc>, window_params = [{transform_indices = @transform_0, window_bounds = array<i64: 1, 1, 16>}, {transform_indices = @transform_1, window_bounds = array<i64: 1, 16, 128>}, {transform_indices = @transform_2, window_bounds = array<i64: 1, 16, 128>}, {transform_indices = @transform_3, window_bounds = array<i64: 1, 16, 128>}, {transform_indices = @transform_4, window_bounds = array<i64: 1, 16, 128>}]} {
    %c0 = arith.constant 0 : index
    %c0_0 = arith.constant 0 : index
    %c0_1 = arith.constant 0 : index
    %0 = vector.load %arg2[%c0, %c0_0, %c0_1] : memref<1x1x16xf32, #tpu.memory_space<vmem>>, vector<1x1x16xf32>
    %1 = vector.shape_cast %0 : vector<1x1x16xf32> to vector<1x16xf32>
    %c0_2 = arith.constant 0 : index
    %c0_3 = arith.constant 0 : index
    %c0_4 = arith.constant 0 : index
    %2 = vector.load %arg3[%c0_2, %c0_3, %c0_4] : memref<1x16x128xbf16, #tpu.memory_space<vmem>>, vector<1x16x64xbf16>
    %3 = vector.shape_cast %2 : vector<1x16x64xbf16> to vector<16x64xbf16>
    %c0_5 = arith.constant 0 : index
    %c0_6 = arith.constant 0 : index
    %c0_7 = arith.constant 0 : index
    %4 = vector.load %arg4[%c0_5, %c0_6, %c0_7] : memref<1x16x128xbf16, #tpu.memory_space<vmem>>, vector<1x16x64xbf16>
    %5 = vector.shape_cast %4 : vector<1x16x64xbf16> to vector<16x64xbf16>
    %c0_8 = arith.constant 0 : index
    %c0_9 = arith.constant 0 : index
    %c0_10 = arith.constant 0 : index
    %6 = vector.load %arg5[%c0_8, %c0_9, %c0_10] : memref<1x16x128xbf16, #tpu.memory_space<vmem>>, vector<1x16x64xbf16>
    %7 = vector.shape_cast %6 : vector<1x16x64xbf16> to vector<16x64xbf16>
    "tpu.trace_start"() <{level = 10 : i32, message = "qd,kd->qk"}> : () -> ()
    %cst = arith.constant dense<0.000000e+00> : vector<16x16xf32>
    %8 = tpu.matmul %3, %5, %cst {dimension_numbers = #tpu.dot_dimension_numbers<[1], [1], [0], [0], [0, 0, 1, 0], [], []>} : vector<16x64xbf16>, vector<16x64xbf16>, vector<16x16xf32> -> vector<16x16xf32>
    "tpu.trace_stop"() : () -> ()
    %9 = vector.broadcast %1 : vector<1x16xf32> to vector<16x16xf32>
    %10 = arith.addf %8, %9 : vector<16x16xf32>
    %cst_11 = arith.constant dense<0xFF800000> : vector<16xf32>
    %11 = vector.multi_reduction <maximumf>, %10, %cst_11 [1] : vector<16x16xf32> to vector<16xf32>
    %12 = vector.shape_cast %11 : vector<16xf32> to vector<16x1xf32>
    %13 = vector.broadcast %12 : vector<16x1xf32> to vector<16x16xf32>
    %14 = arith.subf %10, %13 : vector<16x16xf32>
    %15 = math.exp %14 : vector<16x16xf32>
    %cst_12 = arith.constant dense<0.000000e+00> : vector<16xf32>
    %16 = vector.multi_reduction <add>, %15, %cst_12 [1] : vector<16x16xf32> to vector<16xf32>
    %17 = vector.shape_cast %16 : vector<16xf32> to vector<16x1xf32>
    %18 = vector.broadcast %17 : vector<16x1xf32> to vector<16x16xf32>
    %19 = arith.divf %15, %18 : vector<16x16xf32>
    %20 = arith.truncf %19 : vector<16x16xf32> to vector<16x16xbf16>
    %cst_13 = arith.constant dense<0.000000e+00> : vector<16x64xf32>
    %21 = tpu.matmul %20, %7, %cst_13 {dimension_numbers = #tpu.dot_dimension_numbers<[1], [0], [0], [1], [0, 0, 1, 1], [], []>} : vector<16x16xbf16>, vector<16x64xbf16>, vector<16x64xf32> -> vector<16x64xf32>
    %c0_14 = arith.constant 0 : index
    %c0_15 = arith.constant 0 : index
    %c64 = arith.constant 64 : index
    %22 = vector.load %arg3[%c0_14, %c0_15, %c64] : memref<1x16x128xbf16, #tpu.memory_space<vmem>>, vector<1x16x64xbf16>
    %23 = vector.shape_cast %22 : vector<1x16x64xbf16> to vector<16x64xbf16>
    %c0_16 = arith.constant 0 : index
    %c0_17 = arith.constant 0 : index
    %c64_18 = arith.constant 64 : index
    %24 = vector.load %arg4[%c0_16, %c0_17, %c64_18] : memref<1x16x128xbf16, #tpu.memory_space<vmem>>, vector<1x16x64xbf16>
    %25 = vector.shape_cast %24 : vector<1x16x64xbf16> to vector<16x64xbf16>
    %c0_19 = arith.constant 0 : index
    %c0_20 = arith.constant 0 : index
    %c64_21 = arith.constant 64 : index
    %26 = vector.load %arg5[%c0_19, %c0_20, %c64_21] : memref<1x16x128xbf16, #tpu.memory_space<vmem>>, vector<1x16x64xbf16>
    %27 = vector.shape_cast %26 : vector<1x16x64xbf16> to vector<16x64xbf16>
    "tpu.trace_start"() <{level = 10 : i32, message = "qd,kd->qk"}> : () -> ()
    %cst_22 = arith.constant dense<0.000000e+00> : vector<16x16xf32>
    %28 = tpu.matmul %23, %25, %cst_22 {dimension_numbers = #tpu.dot_dimension_numbers<[1], [1], [0], [0], [0, 0, 1, 0], [], []>} : vector<16x64xbf16>, vector<16x64xbf16>, vector<16x16xf32> -> vector<16x16xf32>
    "tpu.trace_stop"() : () -> ()
    %29 = vector.broadcast %1 : vector<1x16xf32> to vector<16x16xf32>
    %30 = arith.addf %28, %29 : vector<16x16xf32>
    %cst_23 = arith.constant dense<0xFF800000> : vector<16xf32>
    %31 = vector.multi_reduction <maximumf>, %30, %cst_23 [1] : vector<16x16xf32> to vector<16xf32>
    %32 = vector.shape_cast %31 : vector<16xf32> to vector<16x1xf32>
    %33 = vector.broadcast %32 : vector<16x1xf32> to vector<16x16xf32>
    %34 = arith.subf %30, %33 : vector<16x16xf32>
    %35 = math.exp %34 : vector<16x16xf32>
    %cst_24 = arith.constant dense<0.000000e+00> : vector<16xf32>
    %36 = vector.multi_reduction <add>, %35, %cst_24 [1] : vector<16x16xf32> to vector<16xf32>
    %37 = vector.shape_cast %36 : vector<16xf32> to vector<16x1xf32>
    %38 = vector.broadcast %37 : vector<16x1xf32> to vector<16x16xf32>
    %39 = arith.divf %35, %38 : vector<16x16xf32>
    %40 = arith.truncf %39 : vector<16x16xf32> to vector<16x16xbf16>
    %cst_25 = arith.constant dense<0.000000e+00> : vector<16x64xf32>
    %41 = tpu.matmul %40, %27, %cst_25 {dimension_numbers = #tpu.dot_dimension_numbers<[1], [0], [0], [1], [0, 0, 1, 1], [], []>} : vector<16x16xbf16>, vector<16x64xbf16>, vector<16x64xf32> -> vector<16x64xf32>
    %42 = tpu.concatenate %21, %41 in 1 : vector<16x64xf32>, vector<16x64xf32> -> vector<16x128xf32>
    %43 = arith.truncf %42 : vector<16x128xf32> to vector<16x128xbf16>
    %c0_26 = arith.constant 0 : index
    %c0_27 = arith.constant 0 : index
    %c0_28 = arith.constant 0 : index
    %44 = vector.load %arg6[%c0_26, %c0_27, %c0_28] : memref<1x16x128xbf16, #tpu.memory_space<vmem>>, vector<1x16x128xbf16>
    %45 = vector.shape_cast %44 : vector<1x16x128xbf16> to vector<16x128xbf16>
    %46 = vector.shape_cast %43 : vector<16x128xbf16> to vector<1x16x128xbf16>
    tpu.vector_store %arg6[%c0_26, %c0_27, %c0_28], %46 {strides = array<i32>} : memref<1x16x128xbf16, #tpu.memory_space<vmem>>, vector<1x16x128xbf16>,
    return
  }
  func.func @transform_0(%arg0: i32, %arg1: i32) -> (i32, i32, i32) {
    %c0_i32 = arith.constant 0 : i32
    %c0_i32_0 = arith.constant 0 : i32
    %c0_i32_1 = arith.constant 0 : i32
    return %arg0, %c0_i32, %c0_i32_0 : i32, i32, i32
  }
  func.func @transform_1(%arg0: i32, %arg1: i32) -> (i32, i32, i32) {
    %c0_i32 = arith.constant 0 : i32
    %c0_i32_0 = arith.constant 0 : i32
    return %arg0, %arg1, %c0_i32 : i32, i32, i32
  }
  func.func @transform_2(%arg0: i32, %arg1: i32) -> (i32, i32, i32) {
    %c0_i32 = arith.constant 0 : i32
    %c1_i32 = arith.constant 1 : i32
    %c0_i32_0 = arith.constant 0 : i32
    return %arg0, %c0_i32, %c1_i32 : i32, i32, i32
  }
  func.func @transform_3(%arg0: i32, %arg1: i32) -> (i32, i32, i32) {
    %c0_i32 = arith.constant 0 : i32
    %c2_i32 = arith.constant 2 : i32
    %c0_i32_0 = arith.constant 0 : i32
    return %arg0, %c0_i32, %c2_i32 : i32, i32, i32
  }
  func.func @transform_4(%arg0: i32, %arg1: i32) -> (i32, i32, i32) {
    %c0_i32 = arith.constant 0 : i32
    %c0_i32_0 = arith.constant 0 : i32
    return %arg0, %arg1, %c0_i32 : i32, i32, i32
  }
}

module attributes {stable_mosaic.version = 11 : i64} {
  func.func @_add_ln_kernel(%arg0: i32, %arg1: memref<32x128xbf16, #tpu.memory_space<vmem>>, %arg2: memref<32x128xbf16, #tpu.memory_space<vmem>>, %arg3: memref<1x128xf32, #tpu.memory_space<vmem>>, %arg4: memref<1x128xf32, #tpu.memory_space<vmem>>, %arg5: memref<32x128xbf16, #tpu.memory_space<vmem>>) attributes {dimension_semantics = [#tpu.dimension_semantics<parallel>], iteration_bounds = array<i64: 1>, scalar_prefetch = 0 : i64, scratch_operands = 0 : i64, tpu.core_type = #tpu.core_type<tc>, window_params = [{transform_indices = @transform_0, window_bounds = array<i64: 32, 128>}, {transform_indices = @transform_1, window_bounds = array<i64: 32, 128>}, {pipeline_mode = #tpu.pipeline_mode<synchronous>, transform_indices = @transform_2, window_bounds = array<i64: 1, 128>}, {pipeline_mode = #tpu.pipeline_mode<synchronous>, transform_indices = @transform_3, window_bounds = array<i64: 1, 128>}, {transform_indices = @transform_4, window_bounds = array<i64: 32, 128>}]} {
    %c0 = arith.constant 0 : index
    %c0_0 = arith.constant 0 : index
    %0 = vector.load %arg1[%c0, %c0_0] : memref<32x128xbf16, #tpu.memory_space<vmem>>, vector<32x128xbf16>
    %1 = arith.extf %0 : vector<32x128xbf16> to vector<32x128xf32>
    %c0_1 = arith.constant 0 : index
    %c0_2 = arith.constant 0 : index
    %2 = vector.load %arg2[%c0_1, %c0_2] : memref<32x128xbf16, #tpu.memory_space<vmem>>, vector<32x128xbf16>
    %3 = arith.extf %2 : vector<32x128xbf16> to vector<32x128xf32>
    %4 = arith.addf %1, %3 : vector<32x128xf32>
    %cst = arith.constant dense<0.000000e+00> : vector<32xf32>
    %5 = vector.multi_reduction <add>, %4, %cst [1] : vector<32x128xf32> to vector<32xf32>
    %6 = vector.shape_cast %5 : vector<32xf32> to vector<32x1xf32>
    %cst_3 = arith.constant 1.280000e+02 : f32
    %7 = vector.broadcast %cst_3 : f32 to vector<32x1xf32>
    %8 = arith.divf %6, %7 : vector<32x1xf32>
    %9 = vector.broadcast %8 : vector<32x1xf32> to vector<32x128xf32>
    %10 = arith.subf %4, %9 : vector<32x128xf32>
    %11 = arith.mulf %10, %10 : vector<32x128xf32>
    %cst_4 = arith.constant dense<0.000000e+00> : vector<32xf32>
    %12 = vector.multi_reduction <add>, %11, %cst_4 [1] : vector<32x128xf32> to vector<32xf32>
    %13 = vector.shape_cast %12 : vector<32xf32> to vector<32x1xf32>
    %cst_5 = arith.constant 1.280000e+02 : f32
    %14 = vector.broadcast %cst_5 : f32 to vector<32x1xf32>
    %15 = arith.divf %13, %14 : vector<32x1xf32>
    %cst_6 = arith.constant 9.99999996E-13 : f32
    %16 = vector.broadcast %cst_6 : f32 to vector<32x1xf32>
    %17 = arith.addf %15, %16 : vector<32x1xf32>
    %18 = math.rsqrt %17 : vector<32x1xf32>
    %19 = vector.broadcast %18 : vector<32x1xf32> to vector<32x128xf32>
    %20 = arith.mulf %10, %19 : vector<32x128xf32>
    %c0_7 = arith.constant 0 : index
    %c0_8 = arith.constant 0 : index
    %21 = vector.load %arg3[%c0_7, %c0_8] : memref<1x128xf32, #tpu.memory_space<vmem>>, vector<1x128xf32>
    %22 = vector.broadcast %21 : vector<1x128xf32> to vector<32x128xf32>
    %23 = arith.mulf %20, %22 : vector<32x128xf32>
    %c0_9 = arith.constant 0 : index
    %c0_10 = arith.constant 0 : index
    %24 = vector.load %arg4[%c0_9, %c0_10] : memref<1x128xf32, #tpu.memory_space<vmem>>, vector<1x128xf32>
    %25 = vector.broadcast %24 : vector<1x128xf32> to vector<32x128xf32>
    %26 = arith.addf %23, %25 : vector<32x128xf32>
    %27 = arith.truncf %26 : vector<32x128xf32> to vector<32x128xbf16>
    %c0_11 = arith.constant 0 : index
    %c0_12 = arith.constant 0 : index
    %28 = vector.load %arg5[%c0_11, %c0_12] : memref<32x128xbf16, #tpu.memory_space<vmem>>, vector<32x128xbf16>
    tpu.vector_store %arg5[%c0_11, %c0_12], %27 {strides = array<i32>} : memref<32x128xbf16, #tpu.memory_space<vmem>>, vector<32x128xbf16>,
    return
  }
  func.func @transform_0(%arg0: i32) -> (i32, i32) {
    %c0_i32 = arith.constant 0 : i32
    %c0_i32_0 = arith.constant 0 : i32
    return %arg0, %c0_i32 : i32, i32
  }
  func.func @transform_1(%arg0: i32) -> (i32, i32) {
    %c0_i32 = arith.constant 0 : i32
    %c0_i32_0 = arith.constant 0 : i32
    return %arg0, %c0_i32 : i32, i32
  }
  func.func @transform_2(%arg0: i32) -> (i32, i32) {
    %c0_i32 = arith.constant 0 : i32
    %c0_i32_0 = arith.constant 0 : i32
    %c0_i32_1 = arith.constant 0 : i32
    return %c0_i32, %c0_i32_0 : i32, i32
  }
  func.func @transform_3(%arg0: i32) -> (i32, i32) {
    %c0_i32 = arith.constant 0 : i32
    %c0_i32_0 = arith.constant 0 : i32
    %c0_i32_1 = arith.constant 0 : i32
    return %c0_i32, %c0_i32_0 : i32, i32
  }
  func.func @transform_4(%arg0: i32) -> (i32, i32) {
    %c0_i32 = arith.constant 0 : i32
    %c0_i32_0 = arith.constant 0 : i32
    return %arg0, %c0_i32 : i32, i32
  }
}

module attributes {stable_mosaic.version = 11 : i64} {
  func.func @_dense_kernel(%arg0: i32, %arg1: i32, %arg2: i32, %arg3: memref<32x128xbf16, #tpu.memory_space<vmem>>, %arg4: memref<128x384xbf16, #tpu.memory_space<vmem>>, %arg5: memref<1x384xf32, #tpu.memory_space<vmem>>, %arg6: memref<32x384xbf16, #tpu.memory_space<vmem>>, %arg7: memref<32x384xf32, #tpu.memory_space<vmem>>) attributes {dimension_semantics = [#tpu.dimension_semantics<parallel>, #tpu.dimension_semantics<parallel>, #tpu.dimension_semantics<arbitrary>], iteration_bounds = array<i64: 1, 1, 1>, scalar_prefetch = 0 : i64, scratch_operands = 1 : i64, tpu.core_type = #tpu.core_type<tc>, window_params = [{transform_indices = @transform_0, window_bounds = array<i64: 32, 128>}, {transform_indices = @transform_1, window_bounds = array<i64: 128, 384>}, {transform_indices = @transform_2, window_bounds = array<i64: 1, 384>}, {transform_indices = @transform_3, window_bounds = array<i64: 32, 384>}]} {
    %c0_i32 = arith.constant 0 : i32
    %0 = arith.cmpi eq, %arg2, %c0_i32 : i32
    %1 = arith.extui %0 : i1 to i32
    %c0_i32_0 = arith.constant 0 : i32
    %2 = arith.cmpi ne, %1, %c0_i32_0 : i32
    scf.if %2 {
      %cst_10 = arith.constant 0.000000e+00 : f32
      %12 = vector.broadcast %cst_10 : f32 to vector<32x384xf32>
      %c0_11 = arith.constant 0 : index
      %c0_12 = arith.constant 0 : index
      %13 = vector.load %arg7[%c0_11, %c0_12] : memref<32x384xf32, #tpu.memory_space<vmem>>, vector<32x384xf32>
      tpu.vector_store %arg7[%c0_11, %c0_12], %12 {strides = array<i32>} : memref<32x384xf32, #tpu.memory_space<vmem>>, vector<32x384xf32>,
    } else {
    }
    %c0 = arith.constant 0 : index
    %c0_1 = arith.constant 0 : index
    %3 = vector.load %arg7[%c0, %c0_1] : memref<32x384xf32, #tpu.memory_space<vmem>>, vector<32x384xf32>
    %c0_2 = arith.constant 0 : index
    %c0_3 = arith.constant 0 : index
    %4 = vector.load %arg3[%c0_2, %c0_3] : memref<32x128xbf16, #tpu.memory_space<vmem>>, vector<32x128xbf16>
    %c0_4 = arith.constant 0 : index
    %c0_5 = arith.constant 0 : index
    %5 = vector.load %arg4[%c0_4, %c0_5] : memref<128x384xbf16, #tpu.memory_space<vmem>>, vector<128x384xbf16>
    %cst = arith.constant dense<0.000000e+00> : vector<32x384xf32>
    %6 = tpu.matmul %4, %5, %cst {dimension_numbers = #tpu.dot_dimension_numbers<[1], [0], [0], [1], [0, 0, 1, 1], [], []>} : vector<32x128xbf16>, vector<128x384xbf16>, vector<32x384xf32> -> vector<32x384xf32>
    %7 = arith.addf %3, %6 : vector<32x384xf32>
    %c0_6 = arith.constant 0 : index
    %c0_7 = arith.constant 0 : index
    %8 = vector.load %arg7[%c0_6, %c0_7] : memref<32x384xf32, #tpu.memory_space<vmem>>, vector<32x384xf32>
    tpu.vector_store %arg7[%c0_6, %c0_7], %7 {strides = array<i32>} : memref<32x384xf32, #tpu.memory_space<vmem>>, vector<32x384xf32>,
    %c0_i32_8 = arith.constant 0 : i32
    %9 = arith.cmpi eq, %arg2, %c0_i32_8 : i32
    %10 = arith.extui %9 : i1 to i32
    %c0_i32_9 = arith.constant 0 : i32
    %11 = arith.cmpi ne, %10, %c0_i32_9 : i32
    scf.if %11 {
      %c0_10 = arith.constant 0 : index
      %c0_11 = arith.constant 0 : index
      %12 = vector.load %arg7[%c0_10, %c0_11] : memref<32x384xf32, #tpu.memory_space<vmem>>, vector<32x384xf32>
      %c0_12 = arith.constant 0 : index
      %c0_13 = arith.constant 0 : index
      %13 = vector.load %arg5[%c0_12, %c0_13] : memref<1x384xf32, #tpu.memory_space<vmem>>, vector<1x384xf32>
      %14 = vector.broadcast %13 : vector<1x384xf32> to vector<32x384xf32>
      %15 = arith.addf %12, %14 : vector<32x384xf32>
      %16 = arith.truncf %15 : vector<32x384xf32> to vector<32x384xbf16>
      %c0_14 = arith.constant 0 : index
      %c0_15 = arith.constant 0 : index
      %17 = vector.load %arg6[%c0_14, %c0_15] : memref<32x384xbf16, #tpu.memory_space<vmem>>, vector<32x384xbf16>
      tpu.vector_store %arg6[%c0_14, %c0_15], %16 {strides = array<i32>} : memref<32x384xbf16, #tpu.memory_space<vmem>>, vector<32x384xbf16>,
    } else {
    }
    return
  }
  func.func @transform_0(%arg0: i32, %arg1: i32, %arg2: i32) -> (i32, i32) {
    %c0_i32 = arith.constant 0 : i32
    return %arg0, %arg2 : i32, i32
  }
  func.func @transform_1(%arg0: i32, %arg1: i32, %arg2: i32) -> (i32, i32) {
    %c0_i32 = arith.constant 0 : i32
    return %arg2, %arg1 : i32, i32
  }
  func.func @transform_2(%arg0: i32, %arg1: i32, %arg2: i32) -> (i32, i32) {
    %c0_i32 = arith.constant 0 : i32
    %c0_i32_0 = arith.constant 0 : i32
    return %c0_i32, %arg1 : i32, i32
  }
  func.func @transform_3(%arg0: i32, %arg1: i32, %arg2: i32) -> (i32, i32) {
    %c0_i32 = arith.constant 0 : i32
    return %arg0, %arg1 : i32, i32
  }
}

module attributes {stable_mosaic.version = 11 : i64} {
  func.func @_dense_add_ln_kernel(%arg0: i32, %arg1: i32, %arg2: memref<32x128xbf16, #tpu.memory_space<vmem>>, %arg3: memref<128x128xbf16, #tpu.memory_space<vmem>>, %arg4: memref<1x128xf32, #tpu.memory_space<vmem>>, %arg5: memref<32x128xbf16, #tpu.memory_space<vmem>>, %arg6: memref<1x128xf32, #tpu.memory_space<vmem>>, %arg7: memref<1x128xf32, #tpu.memory_space<vmem>>, %arg8: memref<32x128xbf16, #tpu.memory_space<vmem>>, %arg9: memref<32x128xf32, #tpu.memory_space<vmem>>) attributes {dimension_semantics = [#tpu.dimension_semantics<parallel>, #tpu.dimension_semantics<arbitrary>], iteration_bounds = array<i64: 1, 1>, scalar_prefetch = 0 : i64, scratch_operands = 1 : i64, tpu.core_type = #tpu.core_type<tc>, window_params = [{transform_indices = @transform_0, window_bounds = array<i64: 32, 128>}, {transform_indices = @transform_1, window_bounds = array<i64: 128, 128>}, {pipeline_mode = #tpu.pipeline_mode<synchronous>, transform_indices = @transform_2, window_bounds = array<i64: 1, 128>}, {transform_indices = @transform_3, window_bounds = array<i64: 32, 128>}, {pipeline_mode = #tpu.pipeline_mode<synchronous>, transform_indices = @transform_4, window_bounds = array<i64: 1, 128>}, {pipeline_mode = #tpu.pipeline_mode<synchronous>, transform_indices = @transform_5, window_bounds = array<i64: 1, 128>}, {transform_indices = @transform_6, window_bounds = array<i64: 32, 128>}]} {
    %c0_i32 = arith.constant 0 : i32
    %0 = arith.cmpi eq, %arg1, %c0_i32 : i32
    %1 = arith.extui %0 : i1 to i32
    %c0_i32_0 = arith.constant 0 : i32
    %2 = arith.cmpi ne, %1, %c0_i32_0 : i32
    scf.if %2 {
      %cst_10 = arith.constant 0.000000e+00 : f32
      %12 = vector.broadcast %cst_10 : f32 to vector<32x128xf32>
      %c0_11 = arith.constant 0 : index
      %c0_12 = arith.constant 0 : index
      %13 = vector.load %arg9[%c0_11, %c0_12] : memref<32x128xf32, #tpu.memory_space<vmem>>, vector<32x128xf32>
      tpu.vector_store %arg9[%c0_11, %c0_12], %12 {strides = array<i32>} : memref<32x128xf32, #tpu.memory_space<vmem>>, vector<32x128xf32>,
    } else {
    }
    %c0 = arith.constant 0 : index
    %c0_1 = arith.constant 0 : index
    %3 = vector.load %arg9[%c0, %c0_1] : memref<32x128xf32, #tpu.memory_space<vmem>>, vector<32x128xf32>
    %c0_2 = arith.constant 0 : index
    %c0_3 = arith.constant 0 : index
    %4 = vector.load %arg2[%c0_2, %c0_3] : memref<32x128xbf16, #tpu.memory_space<vmem>>, vector<32x128xbf16>
    %c0_4 = arith.constant 0 : index
    %c0_5 = arith.constant 0 : index
    %5 = vector.load %arg3[%c0_4, %c0_5] : memref<128x128xbf16, #tpu.memory_space<vmem>>, vector<128x128xbf16>
    %cst = arith.constant dense<0.000000e+00> : vector<32x128xf32>
    %6 = tpu.matmul %4, %5, %cst {dimension_numbers = #tpu.dot_dimension_numbers<[1], [0], [0], [1], [0, 0, 1, 1], [], []>} : vector<32x128xbf16>, vector<128x128xbf16>, vector<32x128xf32> -> vector<32x128xf32>
    %7 = arith.addf %3, %6 : vector<32x128xf32>
    %c0_6 = arith.constant 0 : index
    %c0_7 = arith.constant 0 : index
    %8 = vector.load %arg9[%c0_6, %c0_7] : memref<32x128xf32, #tpu.memory_space<vmem>>, vector<32x128xf32>
    tpu.vector_store %arg9[%c0_6, %c0_7], %7 {strides = array<i32>} : memref<32x128xf32, #tpu.memory_space<vmem>>, vector<32x128xf32>,
    %c0_i32_8 = arith.constant 0 : i32
    %9 = arith.cmpi eq, %arg1, %c0_i32_8 : i32
    %10 = arith.extui %9 : i1 to i32
    %c0_i32_9 = arith.constant 0 : i32
    %11 = arith.cmpi ne, %10, %c0_i32_9 : i32
    scf.if %11 {
      %c0_10 = arith.constant 0 : index
      %c0_11 = arith.constant 0 : index
      %12 = vector.load %arg9[%c0_10, %c0_11] : memref<32x128xf32, #tpu.memory_space<vmem>>, vector<32x128xf32>
      %c0_12 = arith.constant 0 : index
      %c0_13 = arith.constant 0 : index
      %13 = vector.load %arg4[%c0_12, %c0_13] : memref<1x128xf32, #tpu.memory_space<vmem>>, vector<1x128xf32>
      %14 = vector.broadcast %13 : vector<1x128xf32> to vector<32x128xf32>
      %15 = arith.addf %12, %14 : vector<32x128xf32>
      %c0_14 = arith.constant 0 : index
      %c0_15 = arith.constant 0 : index
      %16 = vector.load %arg5[%c0_14, %c0_15] : memref<32x128xbf16, #tpu.memory_space<vmem>>, vector<32x128xbf16>
      %17 = arith.extf %16 : vector<32x128xbf16> to vector<32x128xf32>
      %18 = arith.addf %15, %17 : vector<32x128xf32>
      %cst_16 = arith.constant dense<0.000000e+00> : vector<32xf32>
      %19 = vector.multi_reduction <add>, %18, %cst_16 [1] : vector<32x128xf32> to vector<32xf32>
      %20 = vector.shape_cast %19 : vector<32xf32> to vector<32x1xf32>
      %cst_17 = arith.constant 1.280000e+02 : f32
      %21 = vector.broadcast %cst_17 : f32 to vector<32x1xf32>
      %22 = arith.divf %20, %21 : vector<32x1xf32>
      %23 = vector.broadcast %22 : vector<32x1xf32> to vector<32x128xf32>
      %24 = arith.subf %18, %23 : vector<32x128xf32>
      %25 = arith.mulf %24, %24 : vector<32x128xf32>
      %cst_18 = arith.constant dense<0.000000e+00> : vector<32xf32>
      %26 = vector.multi_reduction <add>, %25, %cst_18 [1] : vector<32x128xf32> to vector<32xf32>
      %27 = vector.shape_cast %26 : vector<32xf32> to vector<32x1xf32>
      %cst_19 = arith.constant 1.280000e+02 : f32
      %28 = vector.broadcast %cst_19 : f32 to vector<32x1xf32>
      %29 = arith.divf %27, %28 : vector<32x1xf32>
      %cst_20 = arith.constant 9.99999996E-13 : f32
      %30 = vector.broadcast %cst_20 : f32 to vector<32x1xf32>
      %31 = arith.addf %29, %30 : vector<32x1xf32>
      %32 = math.rsqrt %31 : vector<32x1xf32>
      %33 = vector.broadcast %32 : vector<32x1xf32> to vector<32x128xf32>
      %34 = arith.mulf %24, %33 : vector<32x128xf32>
      %c0_21 = arith.constant 0 : index
      %c0_22 = arith.constant 0 : index
      %35 = vector.load %arg6[%c0_21, %c0_22] : memref<1x128xf32, #tpu.memory_space<vmem>>, vector<1x128xf32>
      %36 = vector.broadcast %35 : vector<1x128xf32> to vector<32x128xf32>
      %37 = arith.mulf %34, %36 : vector<32x128xf32>
      %c0_23 = arith.constant 0 : index
      %c0_24 = arith.constant 0 : index
      %38 = vector.load %arg7[%c0_23, %c0_24] : memref<1x128xf32, #tpu.memory_space<vmem>>, vector<1x128xf32>
      %39 = vector.broadcast %38 : vector<1x128xf32> to vector<32x128xf32>
      %40 = arith.addf %37, %39 : vector<32x128xf32>
      %41 = arith.truncf %40 : vector<32x128xf32> to vector<32x128xbf16>
      %c0_25 = arith.constant 0 : index
      %c0_26 = arith.constant 0 : index
      %42 = vector.load %arg8[%c0_25, %c0_26] : memref<32x128xbf16, #tpu.memory_space<vmem>>, vector<32x128xbf16>
      tpu.vector_store %arg8[%c0_25, %c0_26], %41 {strides = array<i32>} : memref<32x128xbf16, #tpu.memory_space<vmem>>, vector<32x128xbf16>,
    } else {
    }
    return
  }
  func.func @transform_0(%arg0: i32, %arg1: i32) -> (i32, i32) {
    %c0_i32 = arith.constant 0 : i32
    return %arg0, %arg1 : i32, i32
  }
  func.func @transform_1(%arg0: i32, %arg1: i32) -> (i32, i32) {
    %c0_i32 = arith.constant 0 : i32
    %c0_i32_0 = arith.constant 0 : i32
    return %arg1, %c0_i32 : i32, i32
  }
  func.func @transform_2(%arg0: i32, %arg1: i32) -> (i32, i32) {
    %c0_i32 = arith.constant 0 : i32
    %c0_i32_0 = arith.constant 0 : i32
    %c0_i32_1 = arith.constant 0 : i32
    return %c0_i32, %c0_i32_0 : i32, i32
  }
  func.func @transform_3(%arg0: i32, %arg1: i32) -> (i32, i32) {
    %c0_i32 = arith.constant 0 : i32
    %c0_i32_0 = arith.constant 0 : i32
    return %arg0, %c0_i32 : i32, i32
  }
  func.func @transform_4(%arg0: i32, %arg1: i32) -> (i32, i32) {
    %c0_i32 = arith.constant 0 : i32
    %c0_i32_0 = arith.constant 0 : i32
    %c0_i32_1 = arith.constant 0 : i32
    return %c0_i32, %c0_i32_0 : i32, i32
  }
  func.func @transform_5(%arg0: i32, %arg1: i32) -> (i32, i32) {
    %c0_i32 = arith.constant 0 : i32
    %c0_i32_0 = arith.constant 0 : i32
    %c0_i32_1 = arith.constant 0 : i32
    return %c0_i32, %c0_i32_0 : i32, i32
  }
  func.func @transform_6(%arg0: i32, %arg1: i32) -> (i32, i32) {
    %c0_i32 = arith.constant 0 : i32
    %c0_i32_0 = arith.constant 0 : i32
    return %arg0, %c0_i32 : i32, i32
  }
}

module attributes {stable_mosaic.version = 11 : i64} {
  func.func @_dense_kernel(%arg0: i32, %arg1: i32, %arg2: i32, %arg3: memref<32x128xbf16, #tpu.memory_space<vmem>>, %arg4: memref<128x256xbf16, #tpu.memory_space<vmem>>, %arg5: memref<1x256xf32, #tpu.memory_space<vmem>>, %arg6: memref<32x256xbf16, #tpu.memory_space<vmem>>, %arg7: memref<32x256xf32, #tpu.memory_space<vmem>>) attributes {dimension_semantics = [#tpu.dimension_semantics<parallel>, #tpu.dimension_semantics<parallel>, #tpu.dimension_semantics<arbitrary>], iteration_bounds = array<i64: 1, 1, 1>, scalar_prefetch = 0 : i64, scratch_operands = 1 : i64, tpu.core_type = #tpu.core_type<tc>, window_params = [{transform_indices = @transform_0, window_bounds = array<i64: 32, 128>}, {transform_indices = @transform_1, window_bounds = array<i64: 128, 256>}, {transform_indices = @transform_2, window_bounds = array<i64: 1, 256>}, {transform_indices = @transform_3, window_bounds = array<i64: 32, 256>}]} {
    %c0_i32 = arith.constant 0 : i32
    %0 = arith.cmpi eq, %arg2, %c0_i32 : i32
    %1 = arith.extui %0 : i1 to i32
    %c0_i32_0 = arith.constant 0 : i32
    %2 = arith.cmpi ne, %1, %c0_i32_0 : i32
    scf.if %2 {
      %cst_10 = arith.constant 0.000000e+00 : f32
      %12 = vector.broadcast %cst_10 : f32 to vector<32x256xf32>
      %c0_11 = arith.constant 0 : index
      %c0_12 = arith.constant 0 : index
      %13 = vector.load %arg7[%c0_11, %c0_12] : memref<32x256xf32, #tpu.memory_space<vmem>>, vector<32x256xf32>
      tpu.vector_store %arg7[%c0_11, %c0_12], %12 {strides = array<i32>} : memref<32x256xf32, #tpu.memory_space<vmem>>, vector<32x256xf32>,
    } else {
    }
    %c0 = arith.constant 0 : index
    %c0_1 = arith.constant 0 : index
    %3 = vector.load %arg7[%c0, %c0_1] : memref<32x256xf32, #tpu.memory_space<vmem>>, vector<32x256xf32>
    %c0_2 = arith.constant 0 : index
    %c0_3 = arith.constant 0 : index
    %4 = vector.load %arg3[%c0_2, %c0_3] : memref<32x128xbf16, #tpu.memory_space<vmem>>, vector<32x128xbf16>
    %c0_4 = arith.constant 0 : index
    %c0_5 = arith.constant 0 : index
    %5 = vector.load %arg4[%c0_4, %c0_5] : memref<128x256xbf16, #tpu.memory_space<vmem>>, vector<128x256xbf16>
    %cst = arith.constant dense<0.000000e+00> : vector<32x256xf32>
    %6 = tpu.matmul %4, %5, %cst {dimension_numbers = #tpu.dot_dimension_numbers<[1], [0], [0], [1], [0, 0, 1, 1], [], []>} : vector<32x128xbf16>, vector<128x256xbf16>, vector<32x256xf32> -> vector<32x256xf32>
    %7 = arith.addf %3, %6 : vector<32x256xf32>
    %c0_6 = arith.constant 0 : index
    %c0_7 = arith.constant 0 : index
    %8 = vector.load %arg7[%c0_6, %c0_7] : memref<32x256xf32, #tpu.memory_space<vmem>>, vector<32x256xf32>
    tpu.vector_store %arg7[%c0_6, %c0_7], %7 {strides = array<i32>} : memref<32x256xf32, #tpu.memory_space<vmem>>, vector<32x256xf32>,
    %c0_i32_8 = arith.constant 0 : i32
    %9 = arith.cmpi eq, %arg2, %c0_i32_8 : i32
    %10 = arith.extui %9 : i1 to i32
    %c0_i32_9 = arith.constant 0 : i32
    %11 = arith.cmpi ne, %10, %c0_i32_9 : i32
    scf.if %11 {
      %c0_10 = arith.constant 0 : index
      %c0_11 = arith.constant 0 : index
      %12 = vector.load %arg7[%c0_10, %c0_11] : memref<32x256xf32, #tpu.memory_space<vmem>>, vector<32x256xf32>
      %c0_12 = arith.constant 0 : index
      %c0_13 = arith.constant 0 : index
      %13 = vector.load %arg5[%c0_12, %c0_13] : memref<1x256xf32, #tpu.memory_space<vmem>>, vector<1x256xf32>
      %14 = vector.broadcast %13 : vector<1x256xf32> to vector<32x256xf32>
      %15 = arith.addf %12, %14 : vector<32x256xf32>
      %cst_14 = arith.constant 5.000000e-01 : f32
      %16 = vector.broadcast %cst_14 : f32 to vector<32x256xf32>
      %17 = arith.mulf %16, %15 : vector<32x256xf32>
      %cst_15 = arith.constant 4.471500e-02 : f32
      %18 = vector.broadcast %cst_15 : f32 to vector<32x256xf32>
      %19 = arith.mulf %18, %15 : vector<32x256xf32>
      %20 = arith.mulf %19, %15 : vector<32x256xf32>
      %21 = arith.mulf %20, %15 : vector<32x256xf32>
      %22 = arith.addf %15, %21 : vector<32x256xf32>
      %cst_16 = arith.constant 0.797884583 : f32
      %23 = vector.broadcast %cst_16 : f32 to vector<32x256xf32>
      %24 = arith.mulf %23, %22 : vector<32x256xf32>
      %25 = math.tanh %24 : vector<32x256xf32>
      %cst_17 = arith.constant 1.000000e+00 : f32
      %26 = vector.broadcast %cst_17 : f32 to vector<32x256xf32>
      %27 = arith.addf %26, %25 : vector<32x256xf32>
      %28 = arith.mulf %17, %27 : vector<32x256xf32>
      %29 = arith.truncf %28 : vector<32x256xf32> to vector<32x256xbf16>
      %c0_18 = arith.constant 0 : index
      %c0_19 = arith.constant 0 : index
      %30 = vector.load %arg6[%c0_18, %c0_19] : memref<32x256xbf16, #tpu.memory_space<vmem>>, vector<32x256xbf16>
      tpu.vector_store %arg6[%c0_18, %c0_19], %29 {strides = array<i32>} : memref<32x256xbf16, #tpu.memory_space<vmem>>, vector<32x256xbf16>,
    } else {
    }
    return
  }
  func.func @transform_0(%arg0: i32, %arg1: i32, %arg2: i32) -> (i32, i32) {
    %c0_i32 = arith.constant 0 : i32
    return %arg0, %arg2 : i32, i32
  }
  func.func @transform_1(%arg0: i32, %arg1: i32, %arg2: i32) -> (i32, i32) {
    %c0_i32 = arith.constant 0 : i32
    return %arg2, %arg1 : i32, i32
  }
  func.func @transform_2(%arg0: i32, %arg1: i32, %arg2: i32) -> (i32, i32) {
    %c0_i32 = arith.constant 0 : i32
    %c0_i32_0 = arith.constant 0 : i32
    return %c0_i32, %arg1 : i32, i32
  }
  func.func @transform_3(%arg0: i32, %arg1: i32, %arg2: i32) -> (i32, i32) {
    %c0_i32 = arith.constant 0 : i32
    return %arg0, %arg1 : i32, i32
  }
}

module attributes {stable_mosaic.version = 11 : i64} {
  func.func @_dense_kernel(%arg0: i32, %arg1: i32, %arg2: i32, %arg3: memref<32x128xbf16, #tpu.memory_space<vmem>>, %arg4: memref<128x384xbf16, #tpu.memory_space<vmem>>, %arg5: memref<1x384xf32, #tpu.memory_space<vmem>>, %arg6: memref<32x384xbf16, #tpu.memory_space<vmem>>, %arg7: memref<32x384xf32, #tpu.memory_space<vmem>>) attributes {dimension_semantics = [#tpu.dimension_semantics<parallel>, #tpu.dimension_semantics<parallel>, #tpu.dimension_semantics<arbitrary>], iteration_bounds = array<i64: 1, 1, 1>, scalar_prefetch = 0 : i64, scratch_operands = 1 : i64, tpu.core_type = #tpu.core_type<tc>, window_params = [{transform_indices = @transform_0, window_bounds = array<i64: 32, 128>}, {transform_indices = @transform_1, window_bounds = array<i64: 128, 384>}, {transform_indices = @transform_2, window_bounds = array<i64: 1, 384>}, {transform_indices = @transform_3, window_bounds = array<i64: 32, 384>}]} {
    %c0_i32 = arith.constant 0 : i32
    %0 = arith.cmpi eq, %arg2, %c0_i32 : i32
    %1 = arith.extui %0 : i1 to i32
    %c0_i32_0 = arith.constant 0 : i32
    %2 = arith.cmpi ne, %1, %c0_i32_0 : i32
    scf.if %2 {
      %cst_10 = arith.constant 0.000000e+00 : f32
      %12 = vector.broadcast %cst_10 : f32 to vector<32x384xf32>
      %c0_11 = arith.constant 0 : index
      %c0_12 = arith.constant 0 : index
      %13 = vector.load %arg7[%c0_11, %c0_12] : memref<32x384xf32, #tpu.memory_space<vmem>>, vector<32x384xf32>
      tpu.vector_store %arg7[%c0_11, %c0_12], %12 {strides = array<i32>} : memref<32x384xf32, #tpu.memory_space<vmem>>, vector<32x384xf32>,
    } else {
    }
    %c0 = arith.constant 0 : index
    %c0_1 = arith.constant 0 : index
    %3 = vector.load %arg7[%c0, %c0_1] : memref<32x384xf32, #tpu.memory_space<vmem>>, vector<32x384xf32>
    %c0_2 = arith.constant 0 : index
    %c0_3 = arith.constant 0 : index
    %4 = vector.load %arg3[%c0_2, %c0_3] : memref<32x128xbf16, #tpu.memory_space<vmem>>, vector<32x128xbf16>
    %c0_4 = arith.constant 0 : index
    %c0_5 = arith.constant 0 : index
    %5 = vector.load %arg4[%c0_4, %c0_5] : memref<128x384xbf16, #tpu.memory_space<vmem>>, vector<128x384xbf16>
    %cst = arith.constant dense<0.000000e+00> : vector<32x384xf32>
    %6 = tpu.matmul %4, %5, %cst {dimension_numbers = #tpu.dot_dimension_numbers<[1], [0], [0], [1], [0, 0, 1, 1], [], []>} : vector<32x128xbf16>, vector<128x384xbf16>, vector<32x384xf32> -> vector<32x384xf32>
    %7 = arith.addf %3, %6 : vector<32x384xf32>
    %c0_6 = arith.constant 0 : index
    %c0_7 = arith.constant 0 : index
    %8 = vector.load %arg7[%c0_6, %c0_7] : memref<32x384xf32, #tpu.memory_space<vmem>>, vector<32x384xf32>
    tpu.vector_store %arg7[%c0_6, %c0_7], %7 {strides = array<i32>} : memref<32x384xf32, #tpu.memory_space<vmem>>, vector<32x384xf32>,
    %c0_i32_8 = arith.constant 0 : i32
    %9 = arith.cmpi eq, %arg2, %c0_i32_8 : i32
    %10 = arith.extui %9 : i1 to i32
    %c0_i32_9 = arith.constant 0 : i32
    %11 = arith.cmpi ne, %10, %c0_i32_9 : i32
    scf.if %11 {
      %c0_10 = arith.constant 0 : index
      %c0_11 = arith.constant 0 : index
      %12 = vector.load %arg7[%c0_10, %c0_11] : memref<32x384xf32, #tpu.memory_space<vmem>>, vector<32x384xf32>
      %c0_12 = arith.constant 0 : index
      %c0_13 = arith.constant 0 : index
      %13 = vector.load %arg5[%c0_12, %c0_13] : memref<1x384xf32, #tpu.memory_space<vmem>>, vector<1x384xf32>
      %14 = vector.broadcast %13 : vector<1x384xf32> to vector<32x384xf32>
      %15 = arith.addf %12, %14 : vector<32x384xf32>
      %16 = arith.truncf %15 : vector<32x384xf32> to vector<32x384xbf16>
      %c0_14 = arith.constant 0 : index
      %c0_15 = arith.constant 0 : index
      %17 = vector.load %arg6[%c0_14, %c0_15] : memref<32x384xbf16, #tpu.memory_space<vmem>>, vector<32x384xbf16>
      tpu.vector_store %arg6[%c0_14, %c0_15], %16 {strides = array<i32>} : memref<32x384xbf16, #tpu.memory_space<vmem>>, vector<32x384xbf16>,
    } else {
    }
    return
  }
  func.func @transform_0(%arg0: i32, %arg1: i32, %arg2: i32) -> (i32, i32) {
    %c0_i32 = arith.constant 0 : i32
    return %arg0, %arg2 : i32, i32
  }
  func.func @transform_1(%arg0: i32, %arg1: i32, %arg2: i32) -> (i32, i32) {
    %c0_i32 = arith.constant 0 : i32
    return %arg2, %arg1 : i32, i32
  }
  func.func @transform_2(%arg0: i32, %arg1: i32, %arg2: i32) -> (i32, i32) {
    %c0_i32 = arith.constant 0 : i32
    %c0_i32_0 = arith.constant 0 : i32
    return %c0_i32, %arg1 : i32, i32
  }
  func.func @transform_3(%arg0: i32, %arg1: i32, %arg2: i32) -> (i32, i32) {
    %c0_i32 = arith.constant 0 : i32
    return %arg0, %arg1 : i32, i32
  }
}

module attributes {stable_mosaic.version = 11 : i64} {
  func.func @_dense_add_ln_kernel(%arg0: i32, %arg1: i32, %arg2: memref<32x256xbf16, #tpu.memory_space<vmem>>, %arg3: memref<256x128xbf16, #tpu.memory_space<vmem>>, %arg4: memref<1x128xf32, #tpu.memory_space<vmem>>, %arg5: memref<32x128xbf16, #tpu.memory_space<vmem>>, %arg6: memref<1x128xf32, #tpu.memory_space<vmem>>, %arg7: memref<1x128xf32, #tpu.memory_space<vmem>>, %arg8: memref<32x128xbf16, #tpu.memory_space<vmem>>, %arg9: memref<32x128xf32, #tpu.memory_space<vmem>>) attributes {dimension_semantics = [#tpu.dimension_semantics<parallel>, #tpu.dimension_semantics<arbitrary>], iteration_bounds = array<i64: 1, 1>, scalar_prefetch = 0 : i64, scratch_operands = 1 : i64, tpu.core_type = #tpu.core_type<tc>, window_params = [{transform_indices = @transform_0, window_bounds = array<i64: 32, 256>}, {transform_indices = @transform_1, window_bounds = array<i64: 256, 128>}, {pipeline_mode = #tpu.pipeline_mode<synchronous>, transform_indices = @transform_2, window_bounds = array<i64: 1, 128>}, {transform_indices = @transform_3, window_bounds = array<i64: 32, 128>}, {pipeline_mode = #tpu.pipeline_mode<synchronous>, transform_indices = @transform_4, window_bounds = array<i64: 1, 128>}, {pipeline_mode = #tpu.pipeline_mode<synchronous>, transform_indices = @transform_5, window_bounds = array<i64: 1, 128>}, {transform_indices = @transform_6, window_bounds = array<i64: 32, 128>}]} {
    %c0_i32 = arith.constant 0 : i32
    %0 = arith.cmpi eq, %arg1, %c0_i32 : i32
    %1 = arith.extui %0 : i1 to i32
    %c0_i32_0 = arith.constant 0 : i32
    %2 = arith.cmpi ne, %1, %c0_i32_0 : i32
    scf.if %2 {
      %cst_10 = arith.constant 0.000000e+00 : f32
      %12 = vector.broadcast %cst_10 : f32 to vector<32x128xf32>
      %c0_11 = arith.constant 0 : index
      %c0_12 = arith.constant 0 : index
      %13 = vector.load %arg9[%c0_11, %c0_12] : memref<32x128xf32, #tpu.memory_space<vmem>>, vector<32x128xf32>
      tpu.vector_store %arg9[%c0_11, %c0_12], %12 {strides = array<i32>} : memref<32x128xf32, #tpu.memory_space<vmem>>, vector<32x128xf32>,
    } else {
    }
    %c0 = arith.constant 0 : index
    %c0_1 = arith.constant 0 : index
    %3 = vector.load %arg9[%c0, %c0_1] : memref<32x128xf32, #tpu.memory_space<vmem>>, vector<32x128xf32>
    %c0_2 = arith.constant 0 : index
    %c0_3 = arith.constant 0 : index
    %4 = vector.load %arg2[%c0_2, %c0_3] : memref<32x256xbf16, #tpu.memory_space<vmem>>, vector<32x256xbf16>
    %c0_4 = arith.constant 0 : index
    %c0_5 = arith.constant 0 : index
    %5 = vector.load %arg3[%c0_4, %c0_5] : memref<256x128xbf16, #tpu.memory_space<vmem>>, vector<256x128xbf16>
    %cst = arith.constant dense<0.000000e+00> : vector<32x128xf32>
    %6 = tpu.matmul %4, %5, %cst {dimension_numbers = #tpu.dot_dimension_numbers<[1], [0], [0], [1], [0, 0, 1, 1], [], []>} : vector<32x256xbf16>, vector<256x128xbf16>, vector<32x128xf32> -> vector<32x128xf32>
    %7 = arith.addf %3, %6 : vector<32x128xf32>
    %c0_6 = arith.constant 0 : index
    %c0_7 = arith.constant 0 : index
    %8 = vector.load %arg9[%c0_6, %c0_7] : memref<32x128xf32, #tpu.memory_space<vmem>>, vector<32x128xf32>
    tpu.vector_store %arg9[%c0_6, %c0_7], %7 {strides = array<i32>} : memref<32x128xf32, #tpu.memory_space<vmem>>, vector<32x128xf32>,
    %c0_i32_8 = arith.constant 0 : i32
    %9 = arith.cmpi eq, %arg1, %c0_i32_8 : i32
    %10 = arith.extui %9 : i1 to i32
    %c0_i32_9 = arith.constant 0 : i32
    %11 = arith.cmpi ne, %10, %c0_i32_9 : i32
    scf.if %11 {
      %c0_10 = arith.constant 0 : index
      %c0_11 = arith.constant 0 : index
      %12 = vector.load %arg9[%c0_10, %c0_11] : memref<32x128xf32, #tpu.memory_space<vmem>>, vector<32x128xf32>
      %c0_12 = arith.constant 0 : index
      %c0_13 = arith.constant 0 : index
      %13 = vector.load %arg4[%c0_12, %c0_13] : memref<1x128xf32, #tpu.memory_space<vmem>>, vector<1x128xf32>
      %14 = vector.broadcast %13 : vector<1x128xf32> to vector<32x128xf32>
      %15 = arith.addf %12, %14 : vector<32x128xf32>
      %c0_14 = arith.constant 0 : index
      %c0_15 = arith.constant 0 : index
      %16 = vector.load %arg5[%c0_14, %c0_15] : memref<32x128xbf16, #tpu.memory_space<vmem>>, vector<32x128xbf16>
      %17 = arith.extf %16 : vector<32x128xbf16> to vector<32x128xf32>
      %18 = arith.addf %15, %17 : vector<32x128xf32>
      %cst_16 = arith.constant dense<0.000000e+00> : vector<32xf32>
      %19 = vector.multi_reduction <add>, %18, %cst_16 [1] : vector<32x128xf32> to vector<32xf32>
      %20 = vector.shape_cast %19 : vector<32xf32> to vector<32x1xf32>
      %cst_17 = arith.constant 1.280000e+02 : f32
      %21 = vector.broadcast %cst_17 : f32 to vector<32x1xf32>
      %22 = arith.divf %20, %21 : vector<32x1xf32>
      %23 = vector.broadcast %22 : vector<32x1xf32> to vector<32x128xf32>
      %24 = arith.subf %18, %23 : vector<32x128xf32>
      %25 = arith.mulf %24, %24 : vector<32x128xf32>
      %cst_18 = arith.constant dense<0.000000e+00> : vector<32xf32>
      %26 = vector.multi_reduction <add>, %25, %cst_18 [1] : vector<32x128xf32> to vector<32xf32>
      %27 = vector.shape_cast %26 : vector<32xf32> to vector<32x1xf32>
      %cst_19 = arith.constant 1.280000e+02 : f32
      %28 = vector.broadcast %cst_19 : f32 to vector<32x1xf32>
      %29 = arith.divf %27, %28 : vector<32x1xf32>
      %cst_20 = arith.constant 9.99999996E-13 : f32
      %30 = vector.broadcast %cst_20 : f32 to vector<32x1xf32>
      %31 = arith.addf %29, %30 : vector<32x1xf32>
      %32 = math.rsqrt %31 : vector<32x1xf32>
      %33 = vector.broadcast %32 : vector<32x1xf32> to vector<32x128xf32>
      %34 = arith.mulf %24, %33 : vector<32x128xf32>
      %c0_21 = arith.constant 0 : index
      %c0_22 = arith.constant 0 : index
      %35 = vector.load %arg6[%c0_21, %c0_22] : memref<1x128xf32, #tpu.memory_space<vmem>>, vector<1x128xf32>
      %36 = vector.broadcast %35 : vector<1x128xf32> to vector<32x128xf32>
      %37 = arith.mulf %34, %36 : vector<32x128xf32>
      %c0_23 = arith.constant 0 : index
      %c0_24 = arith.constant 0 : index
      %38 = vector.load %arg7[%c0_23, %c0_24] : memref<1x128xf32, #tpu.memory_space<vmem>>, vector<1x128xf32>
      %39 = vector.broadcast %38 : vector<1x128xf32> to vector<32x128xf32>
      %40 = arith.addf %37, %39 : vector<32x128xf32>
      %41 = arith.truncf %40 : vector<32x128xf32> to vector<32x128xbf16>
      %c0_25 = arith.constant 0 : index
      %c0_26 = arith.constant 0 : index
      %42 = vector.load %arg8[%c0_25, %c0_26] : memref<32x128xbf16, #tpu.memory_space<vmem>>, vector<32x128xbf16>
      tpu.vector_store %arg8[%c0_25, %c0_26], %41 {strides = array<i32>} : memref<32x128xbf16, #tpu.memory_space<vmem>>, vector<32x128xbf16>,
    } else {
    }
    return
  }
  func.func @transform_0(%arg0: i32, %arg1: i32) -> (i32, i32) {
    %c0_i32 = arith.constant 0 : i32
    return %arg0, %arg1 : i32, i32
  }
  func.func @transform_1(%arg0: i32, %arg1: i32) -> (i32, i32) {
    %c0_i32 = arith.constant 0 : i32
    %c0_i32_0 = arith.constant 0 : i32
    return %arg1, %c0_i32 : i32, i32
  }
  func.func @transform_2(%arg0: i32, %arg1: i32) -> (i32, i32) {
    %c0_i32 = arith.constant 0 : i32
    %c0_i32_0 = arith.constant 0 : i32
    %c0_i32_1 = arith.constant 0 : i32
    return %c0_i32, %c0_i32_0 : i32, i32
  }
  func.func @transform_3(%arg0: i32, %arg1: i32) -> (i32, i32) {
    %c0_i32 = arith.constant 0 : i32
    %c0_i32_0 = arith.constant 0 : i32
    return %arg0, %c0_i32 : i32, i32
  }
  func.func @transform_4(%arg0: i32, %arg1: i32) -> (i32, i32) {
    %c0_i32 = arith.constant 0 : i32
    %c0_i32_0 = arith.constant 0 : i32
    %c0_i32_1 = arith.constant 0 : i32
    return %c0_i32, %c0_i32_0 : i32, i32
  }
  func.func @transform_5(%arg0: i32, %arg1: i32) -> (i32, i32) {
    %c0_i32 = arith.constant 0 : i32
    %c0_i32_0 = arith.constant 0 : i32
    %c0_i32_1 = arith.constant 0 : i32
    return %c0_i32, %c0_i32_0 : i32, i32
  }
  func.func @transform_6(%arg0: i32, %arg1: i32) -> (i32, i32) {
    %c0_i32 = arith.constant 0 : i32
    %c0_i32_0 = arith.constant 0 : i32
    return %arg0, %c0_i32 : i32, i32
  }
}

module attributes {stable_mosaic.version = 11 : i64} {
  func.func @_dense_add_ln_kernel(%arg0: i32, %arg1: i32, %arg2: memref<32x128xbf16, #tpu.memory_space<vmem>>, %arg3: memref<128x128xbf16, #tpu.memory_space<vmem>>, %arg4: memref<1x128xf32, #tpu.memory_space<vmem>>, %arg5: memref<32x128xbf16, #tpu.memory_space<vmem>>, %arg6: memref<1x128xf32, #tpu.memory_space<vmem>>, %arg7: memref<1x128xf32, #tpu.memory_space<vmem>>, %arg8: memref<32x128xbf16, #tpu.memory_space<vmem>>, %arg9: memref<32x128xf32, #tpu.memory_space<vmem>>) attributes {dimension_semantics = [#tpu.dimension_semantics<parallel>, #tpu.dimension_semantics<arbitrary>], iteration_bounds = array<i64: 1, 1>, scalar_prefetch = 0 : i64, scratch_operands = 1 : i64, tpu.core_type = #tpu.core_type<tc>, window_params = [{transform_indices = @transform_0, window_bounds = array<i64: 32, 128>}, {transform_indices = @transform_1, window_bounds = array<i64: 128, 128>}, {pipeline_mode = #tpu.pipeline_mode<synchronous>, transform_indices = @transform_2, window_bounds = array<i64: 1, 128>}, {transform_indices = @transform_3, window_bounds = array<i64: 32, 128>}, {pipeline_mode = #tpu.pipeline_mode<synchronous>, transform_indices = @transform_4, window_bounds = array<i64: 1, 128>}, {pipeline_mode = #tpu.pipeline_mode<synchronous>, transform_indices = @transform_5, window_bounds = array<i64: 1, 128>}, {transform_indices = @transform_6, window_bounds = array<i64: 32, 128>}]} {
    %c0_i32 = arith.constant 0 : i32
    %0 = arith.cmpi eq, %arg1, %c0_i32 : i32
    %1 = arith.extui %0 : i1 to i32
    %c0_i32_0 = arith.constant 0 : i32
    %2 = arith.cmpi ne, %1, %c0_i32_0 : i32
    scf.if %2 {
      %cst_10 = arith.constant 0.000000e+00 : f32
      %12 = vector.broadcast %cst_10 : f32 to vector<32x128xf32>
      %c0_11 = arith.constant 0 : index
      %c0_12 = arith.constant 0 : index
      %13 = vector.load %arg9[%c0_11, %c0_12] : memref<32x128xf32, #tpu.memory_space<vmem>>, vector<32x128xf32>
      tpu.vector_store %arg9[%c0_11, %c0_12], %12 {strides = array<i32>} : memref<32x128xf32, #tpu.memory_space<vmem>>, vector<32x128xf32>,
    } else {
    }
    %c0 = arith.constant 0 : index
    %c0_1 = arith.constant 0 : index
    %3 = vector.load %arg9[%c0, %c0_1] : memref<32x128xf32, #tpu.memory_space<vmem>>, vector<32x128xf32>
    %c0_2 = arith.constant 0 : index
    %c0_3 = arith.constant 0 : index
    %4 = vector.load %arg2[%c0_2, %c0_3] : memref<32x128xbf16, #tpu.memory_space<vmem>>, vector<32x128xbf16>
    %c0_4 = arith.constant 0 : index
    %c0_5 = arith.constant 0 : index
    %5 = vector.load %arg3[%c0_4, %c0_5] : memref<128x128xbf16, #tpu.memory_space<vmem>>, vector<128x128xbf16>
    %cst = arith.constant dense<0.000000e+00> : vector<32x128xf32>
    %6 = tpu.matmul %4, %5, %cst {dimension_numbers = #tpu.dot_dimension_numbers<[1], [0], [0], [1], [0, 0, 1, 1], [], []>} : vector<32x128xbf16>, vector<128x128xbf16>, vector<32x128xf32> -> vector<32x128xf32>
    %7 = arith.addf %3, %6 : vector<32x128xf32>
    %c0_6 = arith.constant 0 : index
    %c0_7 = arith.constant 0 : index
    %8 = vector.load %arg9[%c0_6, %c0_7] : memref<32x128xf32, #tpu.memory_space<vmem>>, vector<32x128xf32>
    tpu.vector_store %arg9[%c0_6, %c0_7], %7 {strides = array<i32>} : memref<32x128xf32, #tpu.memory_space<vmem>>, vector<32x128xf32>,
    %c0_i32_8 = arith.constant 0 : i32
    %9 = arith.cmpi eq, %arg1, %c0_i32_8 : i32
    %10 = arith.extui %9 : i1 to i32
    %c0_i32_9 = arith.constant 0 : i32
    %11 = arith.cmpi ne, %10, %c0_i32_9 : i32
    scf.if %11 {
      %c0_10 = arith.constant 0 : index
      %c0_11 = arith.constant 0 : index
      %12 = vector.load %arg9[%c0_10, %c0_11] : memref<32x128xf32, #tpu.memory_space<vmem>>, vector<32x128xf32>
      %c0_12 = arith.constant 0 : index
      %c0_13 = arith.constant 0 : index
      %13 = vector.load %arg4[%c0_12, %c0_13] : memref<1x128xf32, #tpu.memory_space<vmem>>, vector<1x128xf32>
      %14 = vector.broadcast %13 : vector<1x128xf32> to vector<32x128xf32>
      %15 = arith.addf %12, %14 : vector<32x128xf32>
      %c0_14 = arith.constant 0 : index
      %c0_15 = arith.constant 0 : index
      %16 = vector.load %arg5[%c0_14, %c0_15] : memref<32x128xbf16, #tpu.memory_space<vmem>>, vector<32x128xbf16>
      %17 = arith.extf %16 : vector<32x128xbf16> to vector<32x128xf32>
      %18 = arith.addf %15, %17 : vector<32x128xf32>
      %cst_16 = arith.constant dense<0.000000e+00> : vector<32xf32>
      %19 = vector.multi_reduction <add>, %18, %cst_16 [1] : vector<32x128xf32> to vector<32xf32>
      %20 = vector.shape_cast %19 : vector<32xf32> to vector<32x1xf32>
      %cst_17 = arith.constant 1.280000e+02 : f32
      %21 = vector.broadcast %cst_17 : f32 to vector<32x1xf32>
      %22 = arith.divf %20, %21 : vector<32x1xf32>
      %23 = vector.broadcast %22 : vector<32x1xf32> to vector<32x128xf32>
      %24 = arith.subf %18, %23 : vector<32x128xf32>
      %25 = arith.mulf %24, %24 : vector<32x128xf32>
      %cst_18 = arith.constant dense<0.000000e+00> : vector<32xf32>
      %26 = vector.multi_reduction <add>, %25, %cst_18 [1] : vector<32x128xf32> to vector<32xf32>
      %27 = vector.shape_cast %26 : vector<32xf32> to vector<32x1xf32>
      %cst_19 = arith.constant 1.280000e+02 : f32
      %28 = vector.broadcast %cst_19 : f32 to vector<32x1xf32>
      %29 = arith.divf %27, %28 : vector<32x1xf32>
      %cst_20 = arith.constant 9.99999996E-13 : f32
      %30 = vector.broadcast %cst_20 : f32 to vector<32x1xf32>
      %31 = arith.addf %29, %30 : vector<32x1xf32>
      %32 = math.rsqrt %31 : vector<32x1xf32>
      %33 = vector.broadcast %32 : vector<32x1xf32> to vector<32x128xf32>
      %34 = arith.mulf %24, %33 : vector<32x128xf32>
      %c0_21 = arith.constant 0 : index
      %c0_22 = arith.constant 0 : index
      %35 = vector.load %arg6[%c0_21, %c0_22] : memref<1x128xf32, #tpu.memory_space<vmem>>, vector<1x128xf32>
      %36 = vector.broadcast %35 : vector<1x128xf32> to vector<32x128xf32>
      %37 = arith.mulf %34, %36 : vector<32x128xf32>
      %c0_23 = arith.constant 0 : index
      %c0_24 = arith.constant 0 : index
      %38 = vector.load %arg7[%c0_23, %c0_24] : memref<1x128xf32, #tpu.memory_space<vmem>>, vector<1x128xf32>
      %39 = vector.broadcast %38 : vector<1x128xf32> to vector<32x128xf32>
      %40 = arith.addf %37, %39 : vector<32x128xf32>
      %41 = arith.truncf %40 : vector<32x128xf32> to vector<32x128xbf16>
      %c0_25 = arith.constant 0 : index
      %c0_26 = arith.constant 0 : index
      %42 = vector.load %arg8[%c0_25, %c0_26] : memref<32x128xbf16, #tpu.memory_space<vmem>>, vector<32x128xbf16>
      tpu.vector_store %arg8[%c0_25, %c0_26], %41 {strides = array<i32>} : memref<32x128xbf16, #tpu.memory_space<vmem>>, vector<32x128xbf16>,
    } else {
    }
    return
  }
  func.func @transform_0(%arg0: i32, %arg1: i32) -> (i32, i32) {
    %c0_i32 = arith.constant 0 : i32
    return %arg0, %arg1 : i32, i32
  }
  func.func @transform_1(%arg0: i32, %arg1: i32) -> (i32, i32) {
    %c0_i32 = arith.constant 0 : i32
    %c0_i32_0 = arith.constant 0 : i32
    return %arg1, %c0_i32 : i32, i32
  }
  func.func @transform_2(%arg0: i32, %arg1: i32) -> (i32, i32) {
    %c0_i32 = arith.constant 0 : i32
    %c0_i32_0 = arith.constant 0 : i32
    %c0_i32_1 = arith.constant 0 : i32
    return %c0_i32, %c0_i32_0 : i32, i32
  }
  func.func @transform_3(%arg0: i32, %arg1: i32) -> (i32, i32) {
    %c0_i32 = arith.constant 0 : i32
    %c0_i32_0 = arith.constant 0 : i32
    return %arg0, %c0_i32 : i32, i32
  }
  func.func @transform_4(%arg0: i32, %arg1: i32) -> (i32, i32) {
    %c0_i32 = arith.constant 0 : i32
    %c0_i32_0 = arith.constant 0 : i32
    %c0_i32_1 = arith.constant 0 : i32
    return %c0_i32, %c0_i32_0 : i32, i32
  }
  func.func @transform_5(%arg0: i32, %arg1: i32) -> (i32, i32) {
    %c0_i32 = arith.constant 0 : i32
    %c0_i32_0 = arith.constant 0 : i32
    %c0_i32_1 = arith.constant 0 : i32
    return %c0_i32, %c0_i32_0 : i32, i32
  }
  func.func @transform_6(%arg0: i32, %arg1: i32) -> (i32, i32) {
    %c0_i32 = arith.constant 0 : i32
    %c0_i32_0 = arith.constant 0 : i32
    return %arg0, %c0_i32 : i32, i32
  }
}

module attributes {stable_mosaic.version = 11 : i64} {
  func.func @_dense_kernel(%arg0: i32, %arg1: i32, %arg2: i32, %arg3: memref<32x128xbf16, #tpu.memory_space<vmem>>, %arg4: memref<128x256xbf16, #tpu.memory_space<vmem>>, %arg5: memref<1x256xf32, #tpu.memory_space<vmem>>, %arg6: memref<32x256xbf16, #tpu.memory_space<vmem>>, %arg7: memref<32x256xf32, #tpu.memory_space<vmem>>) attributes {dimension_semantics = [#tpu.dimension_semantics<parallel>, #tpu.dimension_semantics<parallel>, #tpu.dimension_semantics<arbitrary>], iteration_bounds = array<i64: 1, 1, 1>, scalar_prefetch = 0 : i64, scratch_operands = 1 : i64, tpu.core_type = #tpu.core_type<tc>, window_params = [{transform_indices = @transform_0, window_bounds = array<i64: 32, 128>}, {transform_indices = @transform_1, window_bounds = array<i64: 128, 256>}, {transform_indices = @transform_2, window_bounds = array<i64: 1, 256>}, {transform_indices = @transform_3, window_bounds = array<i64: 32, 256>}]} {
    %c0_i32 = arith.constant 0 : i32
    %0 = arith.cmpi eq, %arg2, %c0_i32 : i32
    %1 = arith.extui %0 : i1 to i32
    %c0_i32_0 = arith.constant 0 : i32
    %2 = arith.cmpi ne, %1, %c0_i32_0 : i32
    scf.if %2 {
      %cst_10 = arith.constant 0.000000e+00 : f32
      %12 = vector.broadcast %cst_10 : f32 to vector<32x256xf32>
      %c0_11 = arith.constant 0 : index
      %c0_12 = arith.constant 0 : index
      %13 = vector.load %arg7[%c0_11, %c0_12] : memref<32x256xf32, #tpu.memory_space<vmem>>, vector<32x256xf32>
      tpu.vector_store %arg7[%c0_11, %c0_12], %12 {strides = array<i32>} : memref<32x256xf32, #tpu.memory_space<vmem>>, vector<32x256xf32>,
    } else {
    }
    %c0 = arith.constant 0 : index
    %c0_1 = arith.constant 0 : index
    %3 = vector.load %arg7[%c0, %c0_1] : memref<32x256xf32, #tpu.memory_space<vmem>>, vector<32x256xf32>
    %c0_2 = arith.constant 0 : index
    %c0_3 = arith.constant 0 : index
    %4 = vector.load %arg3[%c0_2, %c0_3] : memref<32x128xbf16, #tpu.memory_space<vmem>>, vector<32x128xbf16>
    %c0_4 = arith.constant 0 : index
    %c0_5 = arith.constant 0 : index
    %5 = vector.load %arg4[%c0_4, %c0_5] : memref<128x256xbf16, #tpu.memory_space<vmem>>, vector<128x256xbf16>
    %cst = arith.constant dense<0.000000e+00> : vector<32x256xf32>
    %6 = tpu.matmul %4, %5, %cst {dimension_numbers = #tpu.dot_dimension_numbers<[1], [0], [0], [1], [0, 0, 1, 1], [], []>} : vector<32x128xbf16>, vector<128x256xbf16>, vector<32x256xf32> -> vector<32x256xf32>
    %7 = arith.addf %3, %6 : vector<32x256xf32>
    %c0_6 = arith.constant 0 : index
    %c0_7 = arith.constant 0 : index
    %8 = vector.load %arg7[%c0_6, %c0_7] : memref<32x256xf32, #tpu.memory_space<vmem>>, vector<32x256xf32>
    tpu.vector_store %arg7[%c0_6, %c0_7], %7 {strides = array<i32>} : memref<32x256xf32, #tpu.memory_space<vmem>>, vector<32x256xf32>,
    %c0_i32_8 = arith.constant 0 : i32
    %9 = arith.cmpi eq, %arg2, %c0_i32_8 : i32
    %10 = arith.extui %9 : i1 to i32
    %c0_i32_9 = arith.constant 0 : i32
    %11 = arith.cmpi ne, %10, %c0_i32_9 : i32
    scf.if %11 {
      %c0_10 = arith.constant 0 : index
      %c0_11 = arith.constant 0 : index
      %12 = vector.load %arg7[%c0_10, %c0_11] : memref<32x256xf32, #tpu.memory_space<vmem>>, vector<32x256xf32>
      %c0_12 = arith.constant 0 : index
      %c0_13 = arith.constant 0 : index
      %13 = vector.load %arg5[%c0_12, %c0_13] : memref<1x256xf32, #tpu.memory_space<vmem>>, vector<1x256xf32>
      %14 = vector.broadcast %13 : vector<1x256xf32> to vector<32x256xf32>
      %15 = arith.addf %12, %14 : vector<32x256xf32>
      %cst_14 = arith.constant 5.000000e-01 : f32
      %16 = vector.broadcast %cst_14 : f32 to vector<32x256xf32>
      %17 = arith.mulf %16, %15 : vector<32x256xf32>
      %cst_15 = arith.constant 4.471500e-02 : f32
      %18 = vector.broadcast %cst_15 : f32 to vector<32x256xf32>
      %19 = arith.mulf %18, %15 : vector<32x256xf32>
      %20 = arith.mulf %19, %15 : vector<32x256xf32>
      %21 = arith.mulf %20, %15 : vector<32x256xf32>
      %22 = arith.addf %15, %21 : vector<32x256xf32>
      %cst_16 = arith.constant 0.797884583 : f32
      %23 = vector.broadcast %cst_16 : f32 to vector<32x256xf32>
      %24 = arith.mulf %23, %22 : vector<32x256xf32>
      %25 = math.tanh %24 : vector<32x256xf32>
      %cst_17 = arith.constant 1.000000e+00 : f32
      %26 = vector.broadcast %cst_17 : f32 to vector<32x256xf32>
      %27 = arith.addf %26, %25 : vector<32x256xf32>
      %28 = arith.mulf %17, %27 : vector<32x256xf32>
      %29 = arith.truncf %28 : vector<32x256xf32> to vector<32x256xbf16>
      %c0_18 = arith.constant 0 : index
      %c0_19 = arith.constant 0 : index
      %30 = vector.load %arg6[%c0_18, %c0_19] : memref<32x256xbf16, #tpu.memory_space<vmem>>, vector<32x256xbf16>
      tpu.vector_store %arg6[%c0_18, %c0_19], %29 {strides = array<i32>} : memref<32x256xbf16, #tpu.memory_space<vmem>>, vector<32x256xbf16>,
    } else {
    }
    return
  }
  func.func @transform_0(%arg0: i32, %arg1: i32, %arg2: i32) -> (i32, i32) {
    %c0_i32 = arith.constant 0 : i32
    return %arg0, %arg2 : i32, i32
  }
  func.func @transform_1(%arg0: i32, %arg1: i32, %arg2: i32) -> (i32, i32) {
    %c0_i32 = arith.constant 0 : i32
    return %arg2, %arg1 : i32, i32
  }
  func.func @transform_2(%arg0: i32, %arg1: i32, %arg2: i32) -> (i32, i32) {
    %c0_i32 = arith.constant 0 : i32
    %c0_i32_0 = arith.constant 0 : i32
    return %c0_i32, %arg1 : i32, i32
  }
  func.func @transform_3(%arg0: i32, %arg1: i32, %arg2: i32) -> (i32, i32) {
    %c0_i32 = arith.constant 0 : i32
    return %arg0, %arg1 : i32, i32
  }
}

</mosaic_0001>

<llo_original>
// kernel: _lambda_.11
$region0: #{_lambda_.11}
  #allocation0 [shape = 'u32[]', space=smem, size = 0x4, offset = 0x4, fixed_abs, tag = 'smem constant byte address 0x4 - core index']
  #allocation1 [shape = 'u32[72,128]{1,0:T(1,128)}', space=vmem, size = 0x9000, scoped, tag = 'internal scratch']
  %s0 = inlined_call_operand.vmem [shape: bf16[32,128], index: 0, kind: input, shape index: {}]
  %s1 = inlined_call_operand.vmem [shape: bf16[32,128], index: 1, kind: input, shape index: {}]
  %s2 = inlined_call_operand.vmem [shape: f32[1,128], index: 2, kind: input, shape index: {}]
  %s3 = inlined_call_operand.vmem [shape: f32[1,128], index: 3, kind: input, shape index: {}]
  %s4 = inlined_call_operand.vmem [shape: bf16[32,128], index: 4, kind: output, shape index: {}]
  %s5 = sld [smem:[#allocation0]]
  $region26: #{_lambda_.11} parent=0
    _
  %s7 = ssub.s32 1, %s5
  %s8 = scalar_select 0, %s7, %s5
  // Predicated region
  $region2: #{_lambda_.11} parent=0 // pred_check
    _
  $region3: #{_lambda_.11} parent=0 // pred_check_branch
    %10 = sbr.rel (0) target = $region5
  $region4: #{_lambda_.11} parent=0 // pred_region
    _
  $region5: #{_lambda_.11} parent=0 // pred_fallthru
    _
  // Predicated region
  $region6: #{_lambda_.11} parent=0 // pred_check
    _
  $region7: #{_lambda_.11} parent=0 // pred_check_branch
    %12 = sbr.rel (0) target = $region9
  $region8: #{_lambda_.11} parent=0 // pred_region
    _
  $region9: #{_lambda_.11} parent=0 // pred_fallthru
    _
  // Predicated region
  $region10: #{_lambda_.11} parent=0 // pred_check
    _
  $region11: #{_lambda_.11} parent=0 // pred_check_branch
    %14 = sbr.rel (0) target = $region13
  $region12: #{_lambda_.11} parent=0 // pred_region
    _
  $region13: #{_lambda_.11} parent=0 // pred_fallthru
    _
  // Predicated region
  $region14: #{_lambda_.11} parent=0 // pred_check
    _
  $region15: #{_lambda_.11} parent=0 // pred_check_branch
    %16 = sbr.rel (0) target = $region17
  $region16: #{_lambda_.11} parent=0 // pred_region
    _
  $region17: #{_lambda_.11} parent=0 // pred_fallthru
    _
  %v17 = vld [vmem:[%s0] sm:$0xf]
  %v18 = vld [vmem:[%s0 + $0x4] sm:$0xf]
  %v19 = vld [vmem:[%s0 + $0x8] sm:$0xf]
  %v20 = vld [vmem:[%s0 + $0xc] sm:$0xf]
  %v21 = vunpack.c.l.bf16 %v17
  %v22 = vunpack.c.l.bf16 %v18
  %v23 = vunpack.c.l.bf16 %v19
  %v24 = vunpack.c.l.bf16 %v20
  %v25 = vld [vmem:[%s1] sm:$0xf]
  %v26 = vld [vmem:[%s1 + $0x4] sm:$0xf]
  %v27 = vld [vmem:[%s1 + $0x8] sm:$0xf]
  %v28 = vld [vmem:[%s1 + $0xc] sm:$0xf]
  %v29 = vunpack.c.l.bf16 %v25
  %v30 = vunpack.c.l.bf16 %v26
  %v31 = vunpack.c.l.bf16 %v27
  %v32 = vunpack.c.l.bf16 %v28
  %v33 = vadd.f32 %v21, %v29
  %v34 = vadd.f32 %v22, %v30
  %v35 = vadd.f32 %v23, %v31
  %v36 = vadd.f32 %v24, %v32
  %37 = vadd.xlane.f32.xlu0 %v33
  %v38 = vpop.xlane.xlu0 %37
  %39 = vadd.xlane.f32.xlu0 %v34
  %v40 = vpop.xlane.xlu0 %39
  %41 = vadd.xlane.f32.xlu0 %v35
  %v42 = vpop.xlane.xlu0 %41
  %43 = vadd.xlane.f32.xlu0 %v36
  %v44 = vpop.xlane.xlu0 %43
  %v45 = vrcp.pop 128.0
  %v46 = vmul.f32 128.0, %v45
  %v47 = vsub.f32 1.0, %v46
  %v48 = vmul.f32 %v45, %v47
  %v49 = vadd.f32 %v45, %v48
  %vm50 = vweird.f32 %v45
  %v51 = vsel %vm50, %v45, %v49
  %v52 = vmul.f32 %v38, %v51
  %v53 = vmul.f32 %v40, %v51
  %v54 = vmul.f32 %v42, %v51
  %v55 = vmul.f32 %v44, %v51
  %v56 = vsub.f32 %v33, %v52
  %v57 = vsub.f32 %v34, %v53
  %v58 = vsub.f32 %v35, %v54
  %v59 = vsub.f32 %v36, %v55
  %v60 = vmul.f32 %v56, %v56
  %v61 = vmul.f32 %v57, %v57
  %v62 = vmul.f32 %v58, %v58
  %v63 = vmul.f32 %v59, %v59
  %64 = vadd.xlane.f32.xlu0 %v60
  %v65 = vpop.xlane.xlu0 %64
  %66 = vadd.xlane.f32.xlu0 %v61
  %v67 = vpop.xlane.xlu0 %66
  %68 = vadd.xlane.f32.xlu0 %v62
  %v69 = vpop.xlane.xlu0 %68
  %70 = vadd.xlane.f32.xlu0 %v63
  %v71 = vpop.xlane.xlu0 %70
  %v72 = vmul.f32 %v65, %v51
  %v73 = vmul.f32 %v67, %v51
  %v74 = vmul.f32 %v69, %v51
  %v75 = vmul.f32 %v71, %v51
  %v76 = vadd.f32 %v72, 1e-12
  %v77 = vadd.f32 %v73, 1e-12
  %v78 = vadd.f32 %v74, 1e-12
  %v79 = vadd.f32 %v75, 1e-12
  %v80 = vrsqrt.pop %v76
  %v81 = vmul.f32 %v80, %v76
  %v82 = vmul.f32 %v81, %v80
  %v83 = vmul.f32 0.5, %v82
  %v84 = vsub.f32 1.5, %v83
  %v85 = vmul.f32 %v80, %v84
  %vm86 = vweird.f32 %v76
  %vm87 = vweird.f32 %v80
  %vm88 = vmor %vm86, %vm87
  %v89 = vsel %vm88, %v80, %v85
  %v90 = vrsqrt.pop %v77
  %v91 = vmul.f32 %v90, %v77
  %v92 = vmul.f32 %v91, %v90
  %v93 = vmul.f32 0.5, %v92
  %v94 = vsub.f32 1.5, %v93
  %v95 = vmul.f32 %v90, %v94
  %vm96 = vweird.f32 %v77
  %vm97 = vweird.f32 %v90
  %vm98 = vmor %vm96, %vm97
  %v99 = vsel %vm98, %v90, %v95
  %v100 = vrsqrt.pop %v78
  %v101 = vmul.f32 %v100, %v78
  %v102 = vmul.f32 %v101, %v100
  %v103 = vmul.f32 0.5, %v102
  %v104 = vsub.f32 1.5, %v103
  %v105 = vmul.f32 %v100, %v104
  %vm106 = vweird.f32 %v78
  %vm107 = vweird.f32 %v100
  %vm108 = vmor %vm106, %vm107
  %v109 = vsel %vm108, %v100, %v105
  %v110 = vrsqrt.pop %v79
  %v111 = vmul.f32 %v110, %v79
  %v112 = vmul.f32 %v111, %v110
  %v113 = vmul.f32 0.5, %v112
  %v114 = vsub.f32 1.5, %v113
  %v115 = vmul.f32 %v110, %v114
  %vm116 = vweird.f32 %v79
  %vm117 = vweird.f32 %v110
  %vm118 = vmor %vm116, %vm117
  %v119 = vsel %vm118, %v110, %v115
  %v120 = vmul.f32 %v56, %v89
  %v121 = vmul.f32 %v57, %v99
  %v122 = vmul.f32 %v58, %v109
  %v123 = vmul.f32 %v59, %v119
  %v124 = vld [vmem:[%s2] sm:$0x1]
  %v126 = vperm.slane %v124, 0
  %v128 = vmul.f32 %v120, %v126
  %v129 = vmul.f32 %v121, %v126
  %v130 = vmul.f32 %v122, %v126
  %v131 = vmul.f32 %v123, %v126
  %v132 = vld [vmem:[%s3] sm:$0x1]
  %v134 = vperm.slane %v132, 0
  %v136 = vadd.f32 %v128, %v134
  %v137 = vadd.f32 %v129, %v134
  %v138 = vadd.f32 %v130, %v134
  %v139 = vadd.f32 %v131, %v134
  %v140 = vpack.c.bf16 %v136, %v136
  %v141 = vpack.c.bf16 %v137, %v137
  %v142 = vpack.c.bf16 %v138, %v138
  %v143 = vpack.c.bf16 %v139, %v139
  %144 = vst [vmem:[%s4] sm:$0xf] %v140
  %145 = vst [vmem:[%s4 + $0x4] sm:$0xf] %v141
  %146 = vst [vmem:[%s4 + $0x8] sm:$0xf] %v142
  %147 = vst [vmem:[%s4 + $0xc] sm:$0xf] %v143
  // Predicated region
  $region18: #{_lambda_.11} parent=0 // pred_check
    _
  $region19: #{_lambda_.11} parent=0 // pred_check_branch
    %149 = sbr.rel (0) target = $region21
  $region20: #{_lambda_.11} parent=0 // pred_region
    _
  $region21: #{_lambda_.11} parent=0 // pred_fallthru
    _
  // Predicated region
  $region22: #{_lambda_.11} parent=0 // pred_check
    _
  $region23: #{_lambda_.11} parent=0 // pred_check_branch
    %151 = sbr.rel (0) target = $region25
  $region24: #{_lambda_.11} parent=0 // pred_region
    _
  $region25: #{_lambda_.11} parent=0 // pred_fallthru
    _

// kernel: _lambda_.13
$region0: #{_lambda_.13}
  #allocation0 [shape = 'u32[]', space=smem, size = 0x4, offset = 0x4, fixed_abs, tag = 'smem constant byte address 0x4 - core index']
  #allocation1 [shape = 'u32[72,128]{1,0:T(1,128)}', space=vmem, size = 0x9000, scoped, tag = 'internal scratch']
  %s0 = inlined_call_operand.vmem [shape: f32[2,1,16], index: 0, kind: input, shape index: {}]
  %s1 = inlined_call_operand.vmem [shape: bf16[2,16,384], index: 1, kind: input, shape index: {}, may-alias: {1,2,3}]
  %s2 = inlined_call_operand.vmem [shape: bf16[2,16,384], index: 2, kind: input, shape index: {}, may-alias: {1,2,3}]
  %s3 = inlined_call_operand.vmem [shape: bf16[2,16,384], index: 3, kind: input, shape index: {}, may-alias: {1,2,3}]
  %s4 = inlined_call_operand.vmem [shape: bf16[2,16,128], index: 4, kind: output, shape index: {}]
  %s5 = sld [smem:[#allocation0]]
  $region172: #{_lambda_.13} parent=0
    _
  %s7 = ssub.s32 1, %s5
  %s8 = scalar_select 0, %s7, %s5
  $region1: #{_lambda_.13} parent=0
    #allocation2 [shape = 'u8[8192]{0}', space=vmem, size = 0x2000, scoped, tag = 'input window, operand 1']
    #allocation3 [shape = 'u8[8192]{0}', space=vmem, size = 0x2000, scoped, tag = 'input window, operand 2']
    #allocation4 [shape = 'u8[8192]{0}', space=vmem, size = 0x2000, scoped, tag = 'input window, operand 3']
    loop: start=0, step=1, limit=4
    $region2: #{_lambda_.13} parent=1 // loop_pre_header
      _
    $region3: #{_lambda_.13} parent=1 // loop_header
      %s10 = sphi 0, %s14
      %p11 = scmp.ge.s32.totalorder %s10, 4
      %s17 = sphi 0, %s29
      %s18 = sphi 0, %s25
      %s19 = sphi 0, %s17
      %s20 = sphi 0, %s18
      %s21 = sphi 0, %s19
      %s22 = sphi 0, %s20
      %s32 = sphi 0, %s34
      %s35 = sphi 0, %s32
      %s36 = sphi 0, %s35
      %s52 = sphi 0, %s36
      %s60 = sphi 0, %s62
      %s63 = sphi 0, %s60
      %s64 = sphi 0, %s63
      %s80 = sphi 0, %s64
      %s86 = sphi 0, %s88
      %s89 = sphi 0, %s86
      %s90 = sphi 0, %s89
      %s106 = sphi 0, %s90
      %s112 = sphi 0, %s114
      %s115 = sphi 0, %s112
      %s116 = sphi 0, %s115
      %s132 = sphi 0, %s116
      %s140 = sphi 0, %s142
      %s143 = sphi 0, %s140
      %s144 = sphi 0, %s143
      %s160 = sphi 0, %s144
    $region4: #{_lambda_.13} parent=1 // loop_header_branch
      %13 = sbr.rel (%p11) target = $region8
    $region5: #{_lambda_.13} parent=1 // loop_body
      %s15 = ssub.s32 %s10, 1
      %s16 = ssub.s32 %s10, 2
      %s23 = sadd.s32 1, %s18
      %p24 = scmp.ge.s32.totalorder %s23, 1
      %s25 = scalar_select %p24, 0, %s23
      %s26 = sadd.s32 1, %s17
      %s27 = scalar_select %p24, %s26, %s17
      %p28 = scmp.ge.s32.totalorder %s27, 2
      %s29 = scalar_select %p28, 0, %s27
      %s30 = ssub.s32 %s17, %s29
      %p31 = scmp.eq.s32.totalorder %s30, 0
      %s33 = sadd.s32 %s32, 1
      %s34 = scalar_select %p31, %s32, %s33
      %p37 = pneg %p31
      %p38 = scmp.eq.s32.totalorder %s10, 1
      %p39 = por %p37, %p38
      %p40 = scmp.ne.s32.totalorder %s32, %s35
      %p41 = scmp.eq.s32.totalorder %s10, 0
      %p42 = por %p40, %p41
      %p43 = scmp.ne.s32.totalorder %s32, %s35
      %p44 = scmp.eq.s32.totalorder %s15, 1
      %p45 = por %p43, %p44
      %p46 = scmp.ne.s32.totalorder %s35, %s36
      %p47 = scmp.eq.s32.totalorder %s15, 0
      %p48 = por %p46, %p47
      %p49 = scmp.ne.s32.totalorder %s35, %s36
      %p50 = scmp.eq.s32.totalorder %s16, 1
      %p51 = por %p49, %p50
      %p53 = scmp.ne.s32.totalorder %s36, %s52
      %p54 = scmp.eq.s32.totalorder %s16, 0
      %p55 = por %p53, %p54
      %s56 = ssub.s32 %s17, %s29
      %s57 = ssub.s32 %s18, %s25
      %s58 = sor.u32 %s56, %s57
      %p59 = scmp.eq.s32.totalorder %s58, 0
      %s61 = sadd.s32 %s60, 1
      %s62 = scalar_select %p59, %s60, %s61
      %p65 = pneg %p59
      %p66 = scmp.eq.s32.totalorder %s10, 1
      %p67 = por %p65, %p66
      %p68 = scmp.ne.s32.totalorder %s60, %s63
      %p69 = scmp.eq.s32.totalorder %s10, 0
      %p70 = por %p68, %p69
      %p71 = scmp.ne.s32.totalorder %s60, %s63
      %p72 = scmp.eq.s32.totalorder %s15, 1
      %p73 = por %p71, %p72
      %p74 = scmp.ne.s32.totalorder %s63, %s64
      %p75 = scmp.eq.s32.totalorder %s15, 0
      %p76 = por %p74, %p75
      %p77 = scmp.ne.s32.totalorder %s63, %s64
      %p78 = scmp.eq.s32.totalorder %s16, 1
      %p79 = por %p77, %p78
      %p81 = scmp.ne.s32.totalorder %s64, %s80
      %p82 = scmp.eq.s32.totalorder %s16, 0
      %p83 = por %p81, %p82
      %s84 = ssub.s32 %s17, %s29
      %p85 = scmp.eq.s32.totalorder %s84, 0
      %s87 = sadd.s32 %s86, 1
      %s88 = scalar_select %p85, %s86, %s87
      %p91 = pneg %p85
      %p92 = scmp.eq.s32.totalorder %s10, 1
      %p93 = por %p91, %p92
      %p94 = scmp.ne.s32.totalorder %s86, %s89
      %p95 = scmp.eq.s32.totalorder %s10, 0
      %p96 = por %p94, %p95
      %p97 = scmp.ne.s32.totalorder %s86, %s89
      %p98 = scmp.eq.s32.totalorder %s15, 1
      %p99 = por %p97, %p98
      %p100 = scmp.ne.s32.totalorder %s89, %s90
      %p101 = scmp.eq.s32.totalorder %s15, 0
      %p102 = por %p100, %p101
      %p103 = scmp.ne.s32.totalorder %s89, %s90
      %p104 = scmp.eq.s32.totalorder %s16, 1
      %p105 = por %p103, %p104
      %p107 = scmp.ne.s32.totalorder %s90, %s106
      %p108 = scmp.eq.s32.totalorder %s16, 0
      %p109 = por %p107, %p108
      %s110 = ssub.s32 %s17, %s29
      %p111 = scmp.eq.s32.totalorder %s110, 0
      %s113 = sadd.s32 %s112, 1
      %s114 = scalar_select %p111, %s112, %s113
      %p117 = pneg %p111
      %p118 = scmp.eq.s32.totalorder %s10, 1
      %p119 = por %p117, %p118
      %p120 = scmp.ne.s32.totalorder %s112, %s115
      %p121 = scmp.eq.s32.totalorder %s10, 0
      %p122 = por %p120, %p121
      %p123 = scmp.ne.s32.totalorder %s112, %s115
      %p124 = scmp.eq.s32.totalorder %s15, 1
      %p125 = por %p123, %p124
      %p126 = scmp.ne.s32.totalorder %s115, %s116
      %p127 = scmp.eq.s32.totalorder %s15, 0
      %p128 = por %p126, %p127
      %p129 = scmp.ne.s32.totalorder %s115, %s116
      %p130 = scmp.eq.s32.totalorder %s16, 1
      %p131 = por %p129, %p130
      %p133 = scmp.ne.s32.totalorder %s116, %s132
      %p134 = scmp.eq.s32.totalorder %s16, 0
      %p135 = por %p133, %p134
      %s136 = ssub.s32 %s17, %s29
      %s137 = ssub.s32 %s18, %s25
      %s138 = sor.u32 %s136, %s137
      %p139 = scmp.eq.s32.totalorder %s138, 0
      %s141 = sadd.s32 %s140, 1
      %s142 = scalar_select %p139, %s140, %s141
      %p145 = pneg %p139
      %p146 = scmp.eq.s32.totalorder %s10, 1
      %p147 = por %p145, %p146
      %p148 = scmp.ne.s32.totalorder %s140, %s143
      %p149 = scmp.eq.s32.totalorder %s10, 0
      %p150 = por %p148, %p149
      %p151 = scmp.ne.s32.totalorder %s140, %s143
      %p152 = scmp.eq.s32.totalorder %s15, 1
      %p153 = por %p151, %p152
      %p154 = scmp.ne.s32.totalorder %s143, %s144
      %p155 = scmp.eq.s32.totalorder %s15, 0
      %p156 = por %p154, %p155
      %p157 = scmp.ne.s32.totalorder %s143, %s144
      %p158 = scmp.eq.s32.totalorder %s16, 1
      %p159 = por %p157, %p158
      %p161 = scmp.ne.s32.totalorder %s144, %s160
      %p162 = scmp.eq.s32.totalorder %s16, 0
      %p163 = por %p161, %p162
      %p164 = scmp.le.s32.totalorder 1, %s10
      %p165 = scmp.lt.s32.totalorder %s10, 3
      %p166 = pnand %p164, %p165
      %p167 = pneg %p166
      // Predicated region
      $region9: #{_lambda_.13} parent=5 // pred_check
        _
      $region10: #{_lambda_.13} parent=5 // pred_check_branch
        %169 = sbr.rel (%p166) target = $region12
      $region11: #{_lambda_.13} parent=5 // pred_region
        %s170 = ssub.s32 %s10, 1
      $region12: #{_lambda_.13} parent=5 // pred_fallthru
        _
      %p171 = scmp.lt.s32.totalorder %s10, 2
      // Predicated region
      $region13: #{_lambda_.13} parent=5 // pred_check
        %p172 = pneg %p171
      $region14: #{_lambda_.13} parent=5 // pred_check_branch
        %174 = sbr.rel (%p172) target = $region16
      $region15: #{_lambda_.13} parent=5 // pred_region
        // Predicated region
        $region17: #{_lambda_.13} parent=15 // pred_check
          %p175 = pneg %p42
        $region18: #{_lambda_.13} parent=15 // pred_check_branch
          %177 = sbr.rel (%p175) target = $region20
        $region19: #{_lambda_.13} parent=15 // pred_region
          %p178 = scmp.lt.s32.totalorder %s17, 1
          %s179 = scalar_select %p178, %s17, 1
          %s180 = scalar_lea.vmem %s0, %s179
        $region20: #{_lambda_.13} parent=15 // pred_fallthru
          _
        // Predicated region
        $region21: #{_lambda_.13} parent=15 // pred_check
          %p181 = pneg %p70
        $region22: #{_lambda_.13} parent=15 // pred_check_branch
          %183 = sbr.rel (%p181) target = $region24
        $region23: #{_lambda_.13} parent=15 // pred_region
          %s184 = sand.u32 %s60, 1
          %s185 = sand.u32 %s60, 1
          %s186 = smul.addr %s185, 8
          %s187 = scalar_lea.vmem [#allocation2], %s186
          %s188 = smul.u32 2, %s18
          %s189 = smul.addr %s188, 3
          %s190 = smul.addr %s17, 6
          %s191 = sadd.s32 %s189, %s190
          %s192 = smul.addr %s191, 4
          %s193 = scalar_lea.vmem %s1, %s192
          // Predicated region
          $region25: #{_lambda_.13} parent=23 // pred_check
            _
          $region26: #{_lambda_.13} parent=23 // pred_check_branch
            %195 = sbr.rel (0) target = $region28
          $region27: #{_lambda_.13} parent=23 // pred_region
            // Predicated region
            $region29: #{_lambda_.13} parent=27 // pred_check
              _
            $region30: #{_lambda_.13} parent=27 // pred_check_branch
              %197 = sbr.rel target = $region32
            $region31: #{_lambda_.13} parent=27 // pred_region
              // Predicated region
              $region44: #{_lambda_.13} parent=31 // pred_check
                _
              $region45: #{_lambda_.13} parent=31 // pred_check_branch
                %215 = sbr.rel (0) target = $region47
              $region46: #{_lambda_.13} parent=31 // pred_region
                loop: start=0, step=1, limit=1
                $region48: #{_lambda_.13} parent=46 // loop_pre_header
                  _
                $region49: #{_lambda_.13} parent=46 // loop_header
                  %s217 = sphi 0, %s221
                  %p218 = scmp.ge.s32.totalorder %s217, 1
                  %s222 = sphi %s193, %s193
                  %s223 = sphi %s187, %s187
                $region50: #{_lambda_.13} parent=46 // loop_header_branch
                  %220 = sbr.rel (%p218) target = $region54
                $region51: #{_lambda_.13} parent=46 // loop_body
                  _
                $region52: #{_lambda_.13} parent=46 // loop_footer
                  %s221 = sadd.s32 1, %s217
                $region53: #{_lambda_.13} parent=46 // loop_footer_branch
                  %216 = sbr.rel target = $region49
                $region54: #{_lambda_.13} parent=46 // loop_exit
                  _
                %s225 = ssub.s32 16, 1
                loop: start=0, step=1, limit=1
                $region55: #{_lambda_.13} parent=46 // loop_pre_header
                  _
                $region56: #{_lambda_.13} parent=46 // loop_header
                  %s227 = sphi 0, %s231
                  %p228 = scmp.ge.s32.totalorder %s227, 1
                  %s232 = sphi %s193, %s193
                  %s233 = sphi %s187, %s187
                $region57: #{_lambda_.13} parent=46 // loop_header_branch
                  %230 = sbr.rel (%p228) target = $region61
                $region58: #{_lambda_.13} parent=46 // loop_body
                  %v234 = vld [vmem:[%s232] sm:%s225]
                  %235 = vst [vmem:[%s233] sm:%s225] %v234
                  %v236 = vld [vmem:[%s232 + $0xc] sm:%s225]
                  %237 = vst [vmem:[%s233 + $0x4] sm:%s225] %v236
                $region59: #{_lambda_.13} parent=46 // loop_footer
                  %s231 = sadd.s32 1, %s227
                $region60: #{_lambda_.13} parent=46 // loop_footer_branch
                  %226 = sbr.rel target = $region56
                $region61: #{_lambda_.13} parent=46 // loop_exit
                  _
              $region47: #{_lambda_.13} parent=31 // pred_fallthru
                _
            $region32: #{_lambda_.13} parent=27 // pred_fallthru
              _
            // Predicated region
            $region33: #{_lambda_.13} parent=27 // pred_check
              _
            $region34: #{_lambda_.13} parent=27 // pred_check_branch
              %199 = sbr.rel (0) target = $region36
            $region35: #{_lambda_.13} parent=27 // pred_region
              %s201 = ssub.s32 16, 1
              loop: start=0, step=1, limit=1
              $region37: #{_lambda_.13} parent=35 // loop_pre_header
                _
              $region38: #{_lambda_.13} parent=35 // loop_header
                %s203 = sphi 0, %s207
                %p204 = scmp.ge.s32.totalorder %s203, 1
                %s208 = sphi %s193, %s193
                %s209 = sphi %s187, %s187
              $region39: #{_lambda_.13} parent=35 // loop_header_branch
                %206 = sbr.rel (%p204) target = $region43
              $region40: #{_lambda_.13} parent=35 // loop_body
                %v210 = vld [vmem:[%s208] sm:%s201]
                %211 = vst [vmem:[%s209] sm:%s201] %v210
                %v212 = vld [vmem:[%s208 + $0xc] sm:%s201]
                %213 = vst [vmem:[%s209 + $0x4] sm:%s201] %v212
              $region41: #{_lambda_.13} parent=35 // loop_footer
                %s207 = sadd.s32 1, %s203
              $region42: #{_lambda_.13} parent=35 // loop_footer_branch
                %202 = sbr.rel target = $region38
              $region43: #{_lambda_.13} parent=35 // loop_exit
                _
            $region36: #{_lambda_.13} parent=27 // pred_fallthru
              _
          $region28: #{_lambda_.13} parent=23 // pred_fallthru
            _
          %238 = vnop
        $region24: #{_lambda_.13} parent=15 // pred_fallthru
          _
        // Predicated region
        $region62: #{_lambda_.13} parent=15 // pred_check
          %p239 = pneg %p96
        $region63: #{_lambda_.13} parent=15 // pred_check_branch
          %241 = sbr.rel (%p239) target = $region65
        $region64: #{_lambda_.13} parent=15 // pred_region
          %s242 = sand.u32 %s86, 1
          %s243 = sand.u32 %s86, 1
          %s244 = smul.addr %s243, 8
          %s245 = scalar_lea.vmem [#allocation3], %s244
          %s246 = smul.addr %s17, 6
          %s247 = sadd.s32 1, %s246
          %s248 = smul.addr %s247, 4
          %s249 = scalar_lea.vmem %s2, %s248
          // Predicated region
          $region66: #{_lambda_.13} parent=64 // pred_check
            _
          $region67: #{_lambda_.13} parent=64 // pred_check_branch
            %251 = sbr.rel (0) target = $region69
          $region68: #{_lambda_.13} parent=64 // pred_region
            // Predicated region
            $region70: #{_lambda_.13} parent=68 // pred_check
              _
            $region71: #{_lambda_.13} parent=68 // pred_check_branch
              %253 = sbr.rel target = $region73
            $region72: #{_lambda_.13} parent=68 // pred_region
              // Predicated region
              $region85: #{_lambda_.13} parent=72 // pred_check
                _
              $region86: #{_lambda_.13} parent=72 // pred_check_branch
                %271 = sbr.rel (0) target = $region88
              $region87: #{_lambda_.13} parent=72 // pred_region
                loop: start=0, step=1, limit=1
                $region89: #{_lambda_.13} parent=87 // loop_pre_header
                  _
                $region90: #{_lambda_.13} parent=87 // loop_header
                  %s273 = sphi 0, %s277
                  %p274 = scmp.ge.s32.totalorder %s273, 1
                  %s278 = sphi %s249, %s249
                  %s279 = sphi %s245, %s245
                $region91: #{_lambda_.13} parent=87 // loop_header_branch
                  %276 = sbr.rel (%p274) target = $region95
                $region92: #{_lambda_.13} parent=87 // loop_body
                  _
                $region93: #{_lambda_.13} parent=87 // loop_footer
                  %s277 = sadd.s32 1, %s273
                $region94: #{_lambda_.13} parent=87 // loop_footer_branch
                  %272 = sbr.rel target = $region90
                $region95: #{_lambda_.13} parent=87 // loop_exit
                  _
                %s281 = ssub.s32 16, 1
                loop: start=0, step=1, limit=1
                $region96: #{_lambda_.13} parent=87 // loop_pre_header
                  _
                $region97: #{_lambda_.13} parent=87 // loop_header
                  %s283 = sphi 0, %s287
                  %p284 = scmp.ge.s32.totalorder %s283, 1
                  %s288 = sphi %s249, %s249
                  %s289 = sphi %s245, %s245
                $region98: #{_lambda_.13} parent=87 // loop_header_branch
                  %286 = sbr.rel (%p284) target = $region102
                $region99: #{_lambda_.13} parent=87 // loop_body
                  %v290 = vld [vmem:[%s288] sm:%s281]
                  %291 = vst [vmem:[%s289] sm:%s281] %v290
                  %v292 = vld [vmem:[%s288 + $0xc] sm:%s281]
                  %293 = vst [vmem:[%s289 + $0x4] sm:%s281] %v292
                $region100: #{_lambda_.13} parent=87 // loop_footer
                  %s287 = sadd.s32 1, %s283
                $region101: #{_lambda_.13} parent=87 // loop_footer_branch
                  %282 = sbr.rel target = $region97
                $region102: #{_lambda_.13} parent=87 // loop_exit
                  _
              $region88: #{_lambda_.13} parent=72 // pred_fallthru
                _
            $region73: #{_lambda_.13} parent=68 // pred_fallthru
              _
            // Predicated region
            $region74: #{_lambda_.13} parent=68 // pred_check
              _
            $region75: #{_lambda_.13} parent=68 // pred_check_branch
              %255 = sbr.rel (0) target = $region77
            $region76: #{_lambda_.13} parent=68 // pred_region
              %s257 = ssub.s32 16, 1
              loop: start=0, step=1, limit=1
              $region78: #{_lambda_.13} parent=76 // loop_pre_header
                _
              $region79: #{_lambda_.13} parent=76 // loop_header
                %s259 = sphi 0, %s263
                %p260 = scmp.ge.s32.totalorder %s259, 1
                %s264 = sphi %s249, %s249
                %s265 = sphi %s245, %s245
              $region80: #{_lambda_.13} parent=76 // loop_header_branch
                %262 = sbr.rel (%p260) target = $region84
              $region81: #{_lambda_.13} parent=76 // loop_body
                %v266 = vld [vmem:[%s264] sm:%s257]
                %267 = vst [vmem:[%s265] sm:%s257] %v266
                %v268 = vld [vmem:[%s264 + $0xc] sm:%s257]
                %269 = vst [vmem:[%s265 + $0x4] sm:%s257] %v268
              $region82: #{_lambda_.13} parent=76 // loop_footer
                %s263 = sadd.s32 1, %s259
              $region83: #{_lambda_.13} parent=76 // loop_footer_branch
                %258 = sbr.rel target = $region79
              $region84: #{_lambda_.13} parent=76 // loop_exit
                _
            $region77: #{_lambda_.13} parent=68 // pred_fallthru
              _
          $region69: #{_lambda_.13} parent=64 // pred_fallthru
            _
          %294 = vnop
        $region65: #{_lambda_.13} parent=15 // pred_fallthru
          _
        // Predicated region
        $region103: #{_lambda_.13} parent=15 // pred_check
          %p295 = pneg %p122
        $region104: #{_lambda_.13} parent=15 // pred_check_branch
          %297 = sbr.rel (%p295) target = $region106
        $region105: #{_lambda_.13} parent=15 // pred_region
          %s298 = sand.u32 %s112, 1
          %s299 = sand.u32 %s112, 1
          %s300 = smul.addr %s299, 8
          %s301 = scalar_lea.vmem [#allocation4], %s300
          %s302 = smul.addr %s17, 6
          %s303 = sadd.s32 2, %s302
          %s304 = smul.addr %s303, 4
          %s305 = scalar_lea.vmem %s3, %s304
          // Predicated region
          $region107: #{_lambda_.13} parent=105 // pred_check
            _
          $region108: #{_lambda_.13} parent=105 // pred_check_branch
            %307 = sbr.rel (0) target = $region110
          $region109: #{_lambda_.13} parent=105 // pred_region
            // Predicated region
            $region111: #{_lambda_.13} parent=109 // pred_check
              _
            $region112: #{_lambda_.13} parent=109 // pred_check_branch
              %309 = sbr.rel target = $region114
            $region113: #{_lambda_.13} parent=109 // pred_region
              // Predicated region
              $region126: #{_lambda_.13} parent=113 // pred_check
                _
              $region127: #{_lambda_.13} parent=113 // pred_check_branch
                %327 = sbr.rel (0) target = $region129
              $region128: #{_lambda_.13} parent=113 // pred_region
                loop: start=0, step=1, limit=1
                $region130: #{_lambda_.13} parent=128 // loop_pre_header
                  _
                $region131: #{_lambda_.13} parent=128 // loop_header
                  %s329 = sphi 0, %s333
                  %p330 = scmp.ge.s32.totalorder %s329, 1
                  %s334 = sphi %s305, %s305
                  %s335 = sphi %s301, %s301
                $region132: #{_lambda_.13} parent=128 // loop_header_branch
                  %332 = sbr.rel (%p330) target = $region136
                $region133: #{_lambda_.13} parent=128 // loop_body
                  _
                $region134: #{_lambda_.13} parent=128 // loop_footer
                  %s333 = sadd.s32 1, %s329
                $region135: #{_lambda_.13} parent=128 // loop_footer_branch
                  %328 = sbr.rel target = $region131
                $region136: #{_lambda_.13} parent=128 // loop_exit
                  _
                %s337 = ssub.s32 16, 1
                loop: start=0, step=1, limit=1
                $region137: #{_lambda_.13} parent=128 // loop_pre_header
                  _
                $region138: #{_lambda_.13} parent=128 // loop_header
                  %s339 = sphi 0, %s343
                  %p340 = scmp.ge.s32.totalorder %s339, 1
                  %s344 = sphi %s305, %s305
                  %s345 = sphi %s301, %s301
                $region139: #{_lambda_.13} parent=128 // loop_header_branch
                  %342 = sbr.rel (%p340) target = $region143
                $region140: #{_lambda_.13} parent=128 // loop_body
                  %v346 = vld [vmem:[%s344] sm:%s337]
                  %347 = vst [vmem:[%s345] sm:%s337] %v346
                  %v348 = vld [vmem:[%s344 + $0xc] sm:%s337]
                  %349 = vst [vmem:[%s345 + $0x4] sm:%s337] %v348
                $region141: #{_lambda_.13} parent=128 // loop_footer
                  %s343 = sadd.s32 1, %s339
                $region142: #{_lambda_.13} parent=128 // loop_footer_branch
                  %338 = sbr.rel target = $region138
                $region143: #{_lambda_.13} parent=128 // loop_exit
                  _
              $region129: #{_lambda_.13} parent=113 // pred_fallthru
                _
            $region114: #{_lambda_.13} parent=109 // pred_fallthru
              _
            // Predicated region
            $region115: #{_lambda_.13} parent=109 // pred_check
              _
            $region116: #{_lambda_.13} parent=109 // pred_check_branch
              %311 = sbr.rel (0) target = $region118
            $region117: #{_lambda_.13} parent=109 // pred_region
              %s313 = ssub.s32 16, 1
              loop: start=0, step=1, limit=1
              $region119: #{_lambda_.13} parent=117 // loop_pre_header
                _
              $region120: #{_lambda_.13} parent=117 // loop_header
                %s315 = sphi 0, %s319
                %p316 = scmp.ge.s32.totalorder %s315, 1
                %s320 = sphi %s305, %s305
                %s321 = sphi %s301, %s301
              $region121: #{_lambda_.13} parent=117 // loop_header_branch
                %318 = sbr.rel (%p316) target = $region125
              $region122: #{_lambda_.13} parent=117 // loop_body
                %v322 = vld [vmem:[%s320] sm:%s313]
                %323 = vst [vmem:[%s321] sm:%s313] %v322
                %v324 = vld [vmem:[%s320 + $0xc] sm:%s313]
                %325 = vst [vmem:[%s321 + $0x4] sm:%s313] %v324
              $region123: #{_lambda_.13} parent=117 // loop_footer
                %s319 = sadd.s32 1, %s315
              $region124: #{_lambda_.13} parent=117 // loop_footer_branch
                %314 = sbr.rel target = $region120
              $region125: #{_lambda_.13} parent=117 // loop_exit
                _
            $region118: #{_lambda_.13} parent=109 // pred_fallthru
              _
          $region110: #{_lambda_.13} parent=105 // pred_fallthru
            _
          %350 = vnop
        $region106: #{_lambda_.13} parent=15 // pred_fallthru
          _
      $region16: #{_lambda_.13} parent=5 // pred_fallthru
        _
      %p351 = scmp.le.s32.totalorder 1, %s10
      %p352 = scmp.lt.s32.totalorder %s10, 3
      %p353 = pnand %p351, %p352
      %p354 = pneg %p353
      // Predicated region
      $region144: #{_lambda_.13} parent=5 // pred_check
        _
      $region145: #{_lambda_.13} parent=5 // pred_check_branch
        %356 = sbr.rel (%p353) target = $region147
      $region146: #{_lambda_.13} parent=5 // pred_region
        %s357 = ssub.s32 %s10, 1
        %s358 = sand.u32 %s63, 1
        %s359 = sand.u32 %s63, 1
        %s360 = smul.addr %s359, 8
        %s361 = scalar_lea.vmem [#allocation2], %s360
        // Predicated region
        $region148: #{_lambda_.13} parent=146 // pred_check
          %p362 = pneg %p76
        $region149: #{_lambda_.13} parent=146 // pred_check_branch
          %364 = sbr.rel (%p362) target = $region151
        $region150: #{_lambda_.13} parent=146 // pred_region
          _
        $region151: #{_lambda_.13} parent=146 // pred_fallthru
          _
        %s365 = sand.u32 %s89, 1
        %s366 = sand.u32 %s89, 1
        %s367 = smul.addr %s366, 8
        %s368 = scalar_lea.vmem [#allocation3], %s367
        // Predicated region
        $region152: #{_lambda_.13} parent=146 // pred_check
          %p369 = pneg %p102
        $region153: #{_lambda_.13} parent=146 // pred_check_branch
          %371 = sbr.rel (%p369) target = $region155
        $region154: #{_lambda_.13} parent=146 // pred_region
          _
        $region155: #{_lambda_.13} parent=146 // pred_fallthru
          _
        %s372 = sand.u32 %s115, 1
        %s373 = sand.u32 %s115, 1
        %s374 = smul.addr %s373, 8
        %s375 = scalar_lea.vmem [#allocation4], %s374
        // Predicated region
        $region156: #{_lambda_.13} parent=146 // pred_check
          %p376 = pneg %p128
        $region157: #{_lambda_.13} parent=146 // pred_check_branch
          %378 = sbr.rel (%p376) target = $region159
        $region158: #{_lambda_.13} parent=146 // pred_region
          _
        $region159: #{_lambda_.13} parent=146 // pred_fallthru
          _
        %p379 = scmp.lt.s32.totalorder %s19, 1
        %s380 = scalar_select %p379, %s19, 1
        %s381 = scalar_lea.vmem %s0, %s380
        %p382 = pneg %p48
        %p383 = pneg %p45
        %s384 = sand.u32 %s63, 1
        %s385 = sand.u32 %s63, 1
        %s386 = smul.addr %s385, 8
        %s387 = scalar_lea.vmem [#allocation2], %s386
        %p388 = pneg %p76
        %p389 = pneg %p73
        %s390 = sand.u32 %s89, 1
        %s391 = sand.u32 %s89, 1
        %s392 = smul.addr %s391, 8
        %s393 = scalar_lea.vmem [#allocation3], %s392
        %p394 = pneg %p102
        %p395 = pneg %p99
        %s396 = sand.u32 %s115, 1
        %s397 = sand.u32 %s115, 1
        %s398 = smul.addr %s397, 8
        %s399 = scalar_lea.vmem [#allocation4], %s398
        %p400 = pneg %p128
        %p401 = pneg %p125
        %p402 = pneg %p156
        %p403 = pneg %p153
        %s404 = smul.u32 2, %s20
        %p405 = scmp.lt.s32.totalorder %s19, 1
        %s406 = scalar_select %p405, %s19, 1
        %p407 = scmp.lt.s32.totalorder %s404, 1
        %s408 = scalar_select %p407, %s404, 1
        %s409 = smul.addr %s406, 2
        %s410 = sadd.s32 %s408, %s409
        %s411 = smul.addr %s410, 4
        %s412 = scalar_lea.vmem %s4, %s411
        %p413 = scmp.lt.s32.totalorder %s19, 1
        %s414 = scalar_select %p413, %s19, 1
        %s415 = scalar_lea.vmem %s0, %s414
        %s416 = smul.u32 2, %s20
        %s417 = smul.u32 2, %s20
        %p418 = scmp.lt.s32.totalorder %s19, 1
        %s419 = scalar_select %p418, %s19, 1
        %p420 = scmp.lt.s32.totalorder %s417, 1
        %s421 = scalar_select %p420, %s417, 1
        %s422 = smul.addr %s419, 2
        %s423 = sadd.s32 %s421, %s422
        %s424 = smul.addr %s423, 4
        %s425 = scalar_lea.vmem %s4, %s424
        %s426 = smul.u32 2, %s20
        %v428 = vld [vmem:[%s415] sm:$0x1]
        %v429 = vld [vmem:[%s361] sm:$0xf]
        %v430 = vld [vmem:[%s361 + $0x4] sm:$0xf]
        %v431 = vld [vmem:[%s368] sm:$0xf]
        %v432 = vld [vmem:[%s368 + $0x4] sm:$0xf]
        %v433 = vld [vmem:[%s375] sm:$0xf]
        %v434 = vld [vmem:[%s375 + $0x4] sm:$0xf]
        %v436 = vperm.slane %v428, 0
        %v440 = vunpack.c.l.b16 %v429
        %v441 = vunpack.c.l.b16 %v430
        %v442 = vpack.c.b16 %v441, %v440
        %v445 = vunpack.c.l.b16 %v431
        %v446 = vunpack.c.l.b16 %v432
        %v447 = vpack.c.b16 %v446, %v445
        %vm448 = vcmask 523264
        %v450 = vsel %vm448, %v442, 0
        %v453 = vsel %vm448, %v447, 0
        %455 = vmatpush.bf16.xpose.msra.mxu0 0
        %456 = vmatpush.bf16.xpose.msra.mxu0 0
        %457 = vmatpush.bf16.xpose.msra.mxu0 0
        %458 = vmatpush.bf16.xpose.msra.mxu0 0
        %459 = vmatpush.bf16.xpose.msra.mxu0 0
        %460 = vmatpush.bf16.xpose.msra.mxu0 0
        %461 = vmatpush.bf16.xpose.msra.mxu0 0
        %462 = vmatpush.bf16.xpose.msra.mxu0 %v453
        %463 = vmatmul.bf16.gmra.mxu0 %v450
        %v464 = vpop.f32.mrf.mxu0
        %v465 = vadd.f32 %v436, %v464
        %v466 = vpop.f32.mrf.mxu0
        %v467 = vadd.f32 %v436, %v466
        %468 = vdwg.mxu0
        %vm469 = vcmask 130048
        %v470 = vsel %vm469, %v465, -inf
        %471 = vmax.xlane.f32.xlu0 %v470
        %v472 = vpop.xlane.xlu0 %471
        %v473 = vsel %vm469, %v467, -inf
        %474 = vmax.xlane.f32.xlu0 %v473
        %v475 = vpop.xlane.xlu0 %474
        %v476 = vsub.f32 %v465, %v472
        %v477 = vsub.f32 %v467, %v475
        %v478 = vmul.f32 %v476, 1.442695
        %v479 = vpow.pop %v478
        %v480 = vmul.f32 %v477, 1.442695
        %v481 = vpow.pop %v480
        %v482 = vsel %vm469, %v479, 0.0
        %483 = vadd.xlane.f32.xlu0 %v482
        %v484 = vpop.xlane.xlu0 %483
        %v485 = vsel %vm469, %v481, 0.0
        %486 = vadd.xlane.f32.xlu0 %v485
        %v487 = vpop.xlane.xlu0 %486
        %v488 = vrcp.pop %v484
        %v489 = vmul.f32 %v484, %v488
        %v490 = vsub.f32 1.0, %v489
        %v491 = vmul.f32 %v488, %v490
        %v492 = vadd.f32 %v488, %v491
        %vm493 = vweird.f32 %v484
        %vm494 = vweird.f32 %v488
        %vm495 = vmor %vm493, %vm494
        %v496 = vsel %vm495, %v488, %v492
        %v497 = vand.u32 2147483647, %v484
        %vm498 = vcmp.eq.f32.partialorder %v497, 8.507059e+37
        %v499 = vand.u32 %v484, 2147483648
        %v500 = vor.u32 1.1754944e-38, %v499
        %v501 = vsel %vm498, %v500, %v496
        %v502 = vmul.f32 %v479, %v501
        %v503 = vrcp.pop %v487
        %v504 = vmul.f32 %v487, %v503
        %v505 = vsub.f32 1.0, %v504
        %v506 = vmul.f32 %v503, %v505
        %v507 = vadd.f32 %v503, %v506
        %vm508 = vweird.f32 %v487
        %vm509 = vweird.f32 %v503
        %vm510 = vmor %vm508, %vm509
        %v511 = vsel %vm510, %v503, %v507
        %v512 = vand.u32 2147483647, %v487
        %vm513 = vcmp.eq.f32.partialorder %v512, 8.507059e+37
        %v514 = vand.u32 %v487, 2147483648
        %v515 = vor.u32 1.1754944e-38, %v514
        %v516 = vsel %vm513, %v515, %v511
        %v517 = vmul.f32 %v481, %v516
        %v518 = vpack.c.bf16 %v517, %v502
        %v521 = vunpack.c.l.b16 %v433
        %v522 = vunpack.c.l.b16 %v434
        %v523 = vpack.c.b16 %v522, %v521
        %v526 = vsel %vm469, %v518, 0
        %528 = vmatpush.bf16.msra.mxu0 0
        %529 = vmatpush.bf16.msra.mxu0 0
        %530 = vmatpush.bf16.msra.mxu0 0
        %531 = vmatpush.bf16.msra.mxu0 0
        %532 = vmatpush.bf16.msra.mxu0 0
        %533 = vmatpush.bf16.msra.mxu0 0
        %534 = vmatpush.bf16.msra.mxu0 0
        %535 = vmatpush.bf16.msra.mxu0 %v523
        %536 = vmatmul.bf16.gmra.mxu0 %v526
        %v537 = vpop.f32.mrf.mxu0
        %v538 = vadd.f32 0.0, %v537
        %v539 = vpop.f32.mrf.mxu0
        %v540 = vadd.f32 0.0, %v539
        %541 = vdwg.mxu0
        %v542 = vld [vmem:[%s361] sm:$0xf]
        %v543 = vld [vmem:[%s361 + $0x4] sm:$0xf]
        %v544 = vld [vmem:[%s368] sm:$0xf]
        %v545 = vld [vmem:[%s368 + $0x4] sm:$0xf]
        %v546 = vld [vmem:[%s375] sm:$0xf]
        %v547 = vld [vmem:[%s375 + $0x4] sm:$0xf]
        %v550 = vunpack.c.l.b16 %v542
        %v551 = vunpack.c.l.b16 %v543
        %v552 = vpack.c.b16 %v551, %v550
        %553 = vrot.lane.b32.xlu0 %v552, 64
        %v554 = vpop.permute.xlu0 %553
        %v557 = vunpack.c.l.b16 %v544
        %v558 = vunpack.c.l.b16 %v545
        %v559 = vpack.c.b16 %v558, %v557
        %560 = vrot.lane.b32.xlu0 %v559, 64
        %v561 = vpop.permute.xlu0 %560
        %v563 = vsel %vm448, %v554, 0
        %v566 = vsel %vm448, %v561, 0
        %568 = vmatpush.bf16.xpose.msra.mxu0 0
        %569 = vmatpush.bf16.xpose.msra.mxu0 0
        %570 = vmatpush.bf16.xpose.msra.mxu0 0
        %571 = vmatpush.bf16.xpose.msra.mxu0 0
        %572 = vmatpush.bf16.xpose.msra.mxu0 0
        %573 = vmatpush.bf16.xpose.msra.mxu0 0
        %574 = vmatpush.bf16.xpose.msra.mxu0 0
        %575 = vmatpush.bf16.xpose.msra.mxu0 %v566
        %576 = vmatmul.bf16.gmra.mxu0 %v563
        %v577 = vpop.f32.mrf.mxu0
        %v578 = vadd.f32 %v436, %v577
        %v579 = vpop.f32.mrf.mxu0
        %v580 = vadd.f32 %v436, %v579
        %581 = vdwg.mxu0
        %v582 = vsel %vm469, %v578, -inf
        %583 = vmax.xlane.f32.xlu0 %v582
        %v584 = vpop.xlane.xlu0 %583
        %v585 = vsel %vm469, %v580, -inf
        %586 = vmax.xlane.f32.xlu0 %v585
        %v587 = vpop.xlane.xlu0 %586
        %v588 = vsub.f32 %v578, %v584
        %v589 = vsub.f32 %v580, %v587
        %v590 = vmul.f32 %v588, 1.442695
        %v591 = vpow.pop %v590
        %v592 = vmul.f32 %v589, 1.442695
        %v593 = vpow.pop %v592
        %v594 = vsel %vm469, %v591, 0.0
        %595 = vadd.xlane.f32.xlu0 %v594
        %v596 = vpop.xlane.xlu0 %595
        %v597 = vsel %vm469, %v593, 0.0
        %598 = vadd.xlane.f32.xlu0 %v597
        %v599 = vpop.xlane.xlu0 %598
        %v600 = vrcp.pop %v596
        %v601 = vmul.f32 %v596, %v600
        %v602 = vsub.f32 1.0, %v601
        %v603 = vmul.f32 %v600, %v602
        %v604 = vadd.f32 %v600, %v603
        %vm605 = vweird.f32 %v596
        %vm606 = vweird.f32 %v600
        %vm607 = vmor %vm605, %vm606
        %v608 = vsel %vm607, %v600, %v604
        %v609 = vand.u32 2147483647, %v596
        %vm610 = vcmp.eq.f32.partialorder %v609, 8.507059e+37
        %v611 = vand.u32 %v596, 2147483648
        %v612 = vor.u32 1.1754944e-38, %v611
        %v613 = vsel %vm610, %v612, %v608
        %v614 = vmul.f32 %v591, %v613
        %v615 = vrcp.pop %v599
        %v616 = vmul.f32 %v599, %v615
        %v617 = vsub.f32 1.0, %v616
        %v618 = vmul.f32 %v615, %v617
        %v619 = vadd.f32 %v615, %v618
        %vm620 = vweird.f32 %v599
        %vm621 = vweird.f32 %v615
        %vm622 = vmor %vm620, %vm621
        %v623 = vsel %vm622, %v615, %v619
        %v624 = vand.u32 2147483647, %v599
        %vm625 = vcmp.eq.f32.partialorder %v624, 8.507059e+37
        %v626 = vand.u32 %v599, 2147483648
        %v627 = vor.u32 1.1754944e-38, %v626
        %v628 = vsel %vm625, %v627, %v623
        %v629 = vmul.f32 %v593, %v628
        %v630 = vpack.c.bf16 %v629, %v614
        %v633 = vunpack.c.l.b16 %v546
        %v634 = vunpack.c.l.b16 %v547
        %v635 = vpack.c.b16 %v634, %v633
        %636 = vrot.lane.b32.xlu0 %v635, 64
        %v637 = vpop.permute.xlu0 %636
        %v640 = vsel %vm469, %v630, 0
        %642 = vmatpush.bf16.msra.mxu0 0
        %643 = vmatpush.bf16.msra.mxu0 0
        %644 = vmatpush.bf16.msra.mxu0 0
        %645 = vmatpush.bf16.msra.mxu0 0
        %646 = vmatpush.bf16.msra.mxu0 0
        %647 = vmatpush.bf16.msra.mxu0 0
        %648 = vmatpush.bf16.msra.mxu0 0
        %649 = vmatpush.bf16.msra.mxu0 %v637
        %650 = vmatmul.bf16.gmra.mxu0 %v640
        %v651 = vpop.f32.mrf.mxu0
        %v652 = vadd.f32 0.0, %v651
        %v653 = vpop.f32.mrf.mxu0
        %v654 = vadd.f32 0.0, %v653
        %655 = vdwg.mxu0
        %658 = vrot.lane.b32.xlu0 %v652, 64
        %v659 = vpop.permute.xlu0 %658
        %660 = vrot.lane.b32.xlu0 %v654, 64
        %v661 = vpop.permute.xlu0 %660
        %v664 = vsel %vm448, %v538, %v659
        %v665 = vsel %vm448, %v540, %v661
        %v666 = vpack.c.bf16 %v664, %v664
        %v667 = vpack.c.bf16 %v665, %v665
        %668 = vst [vmem:[%s425] sm:$0xf] %v666
        %669 = vst [vmem:[%s425 + $0x4] sm:$0xf] %v667
        %s670 = smul.u32 2, %s20
        %p671 = scmp.lt.s32.totalorder %s19, 1
        %s672 = scalar_select %p671, %s19, 1
        %p673 = scmp.lt.s32.totalorder %s670, 1
        %s674 = scalar_select %p673, %s670, 1
        %s675 = smul.addr %s672, 2
        %s676 = sadd.s32 %s674, %s675
        %s677 = smul.addr %s676, 4
        %s678 = scalar_lea.vmem %s4, %s677
        // Predicated region
        $region160: #{_lambda_.13} parent=146 // pred_check
          %p679 = pneg %p153
        $region161: #{_lambda_.13} parent=146 // pred_check_branch
          %681 = sbr.rel (%p679) target = $region163
        $region162: #{_lambda_.13} parent=146 // pred_region
          %s682 = smul.u32 2, %s20
        $region163: #{_lambda_.13} parent=146 // pred_fallthru
          _
      $region147: #{_lambda_.13} parent=5 // pred_fallthru
        _
      %p683 = scmp.le.s32.totalorder 2, %s10
      // Predicated region
      $region164: #{_lambda_.13} parent=5 // pred_check
        %p684 = pneg %p683
      $region165: #{_lambda_.13} parent=5 // pred_check_branch
        %686 = sbr.rel (%p684) target = $region167
      $region166: #{_lambda_.13} parent=5 // pred_region
        %s687 = ssub.s32 %s10, 2
        // Predicated region
        $region168: #{_lambda_.13} parent=166 // pred_check
          %p688 = pneg %p159
        $region169: #{_lambda_.13} parent=166 // pred_check_branch
          %690 = sbr.rel (%p688) target = $region171
        $region170: #{_lambda_.13} parent=166 // pred_region
          %s691 = smul.u32 2, %s22
          %p692 = scmp.lt.s32.totalorder %s21, 1
          %s693 = scalar_select %p692, %s21, 1
          %p694 = scmp.lt.s32.totalorder %s691, 1
          %s695 = scalar_select %p694, %s691, 1
          %s696 = smul.addr %s693, 2
          %s697 = sadd.s32 %s695, %s696
          %s698 = smul.addr %s697, 4
          %s699 = scalar_lea.vmem %s4, %s698
        $region171: #{_lambda_.13} parent=166 // pred_fallthru
          _
      $region167: #{_lambda_.13} parent=5 // pred_fallthru
        _
    $region6: #{_lambda_.13} parent=1 // loop_footer
      %s14 = sadd.s32 1, %s10
    $region7: #{_lambda_.13} parent=1 // loop_footer_branch
      %9 = sbr.rel target = $region3
    $region8: #{_lambda_.13} parent=1 // loop_exit
      _

// kernel: _lambda_.14
$region0: #{_lambda_.14}
  #allocation0 [shape = 'u32[]', space=smem, size = 0x4, offset = 0x4, fixed_abs, tag = 'smem constant byte address 0x4 - core index']
  #allocation1 [shape = 'u32[72,128]{1,0:T(1,128)}', space=vmem, size = 0x9000, scoped, tag = 'internal scratch']
  #allocation2 [shape = 'f32[32,128]{1,0:T(8,128)}', space=vmem, size = 0x4000, scoped, tag = 'scratch operand']
  %s0 = inlined_call_operand.vmem [shape: bf16[32,128], index: 0, kind: input, shape index: {}]
  %s1 = inlined_call_operand.vmem [shape: bf16[128,128], index: 1, kind: input, shape index: {}]
  %s2 = inlined_call_operand.vmem [shape: f32[1,128], index: 2, kind: input, shape index: {}]
  %s3 = inlined_call_operand.vmem [shape: bf16[32,128], index: 3, kind: input, shape index: {}]
  %s4 = inlined_call_operand.vmem [shape: f32[1,128], index: 4, kind: input, shape index: {}]
  %s5 = inlined_call_operand.vmem [shape: f32[1,128], index: 5, kind: input, shape index: {}]
  %s6 = inlined_call_operand.vmem [shape: bf16[32,128], index: 6, kind: output, shape index: {}]
  %s7 = sld [smem:[#allocation0]]
  $region42: #{_lambda_.14} parent=0
    _
  %s9 = ssub.s32 1, %s7
  %s10 = scalar_select 0, %s9, %s7
  // Predicated region
  $region2: #{_lambda_.14} parent=0 // pred_check
    _
  $region3: #{_lambda_.14} parent=0 // pred_check_branch
    %12 = sbr.rel (0) target = $region5
  $region4: #{_lambda_.14} parent=0 // pred_region
    _
  $region5: #{_lambda_.14} parent=0 // pred_fallthru
    _
  // Predicated region
  $region6: #{_lambda_.14} parent=0 // pred_check
    _
  $region7: #{_lambda_.14} parent=0 // pred_check_branch
    %14 = sbr.rel (0) target = $region9
  $region8: #{_lambda_.14} parent=0 // pred_region
    _
  $region9: #{_lambda_.14} parent=0 // pred_fallthru
    _
  // Predicated region
  $region10: #{_lambda_.14} parent=0 // pred_check
    _
  $region11: #{_lambda_.14} parent=0 // pred_check_branch
    %16 = sbr.rel (0) target = $region13
  $region12: #{_lambda_.14} parent=0 // pred_region
    _
  $region13: #{_lambda_.14} parent=0 // pred_fallthru
    _
  // Predicated region
  $region14: #{_lambda_.14} parent=0 // pred_check
    _
  $region15: #{_lambda_.14} parent=0 // pred_check_branch
    %18 = sbr.rel (0) target = $region17
  $region16: #{_lambda_.14} parent=0 // pred_region
    _
  $region17: #{_lambda_.14} parent=0 // pred_fallthru
    _
  // Predicated region
  $region18: #{_lambda_.14} parent=0 // pred_check
    _
  $region19: #{_lambda_.14} parent=0 // pred_check_branch
    %20 = sbr.rel (0) target = $region21
  $region20: #{_lambda_.14} parent=0 // pred_region
    _
  $region21: #{_lambda_.14} parent=0 // pred_fallthru
    _
  // Predicated region
  $region22: #{_lambda_.14} parent=0 // pred_check
    _
  $region23: #{_lambda_.14} parent=0 // pred_check_branch
    %22 = sbr.rel (0) target = $region25
  $region24: #{_lambda_.14} parent=0 // pred_region
    _
  $region25: #{_lambda_.14} parent=0 // pred_fallthru
    _
  %p23 = scmp.eq.s32.totalorder 0, 0
  // Predicated region
  $region26: #{_lambda_.14} parent=0 // pred_check
    %p24 = pneg %p23
  $region27: #{_lambda_.14} parent=0 // pred_check_branch
    %26 = sbr.rel (%p24) target = $region29
  $region28: #{_lambda_.14} parent=0 // pred_region
    %27 = vst [vmem:[#allocation2] sm:$0xff] 0.0
    %28 = vst [vmem:[#allocation2 + $0x8] sm:$0xff] 0.0
    %29 = vst [vmem:[#allocation2 + $0x10] sm:$0xff] 0.0
    %30 = vst [vmem:[#allocation2 + $0x18] sm:$0xff] 0.0
  $region29: #{_lambda_.14} parent=0 // pred_fallthru
    _
  %v31 = vld [vmem:[#allocation2] sm:$0xff]
  %v32 = vld [vmem:[#allocation2 + $0x8] sm:$0xff]
  %v33 = vld [vmem:[#allocation2 + $0x10] sm:$0xff]
  %v34 = vld [vmem:[#allocation2 + $0x18] sm:$0xff]
  %v35 = vld [vmem:[%s0] sm:$0xf]
  %v36 = vld [vmem:[%s0 + $0x4] sm:$0xf]
  %v37 = vld [vmem:[%s0 + $0x8] sm:$0xf]
  %v38 = vld [vmem:[%s0 + $0xc] sm:$0xf]
  %v39 = vld [vmem:[%s1] sm:$0xf]
  %v40 = vld [vmem:[%s1 + $0x4] sm:$0xf]
  %v41 = vld [vmem:[%s1 + $0x8] sm:$0xf]
  %v42 = vld [vmem:[%s1 + $0xc] sm:$0xf]
  %v43 = vld [vmem:[%s1 + $0x10] sm:$0xf]
  %v44 = vld [vmem:[%s1 + $0x14] sm:$0xf]
  %v45 = vld [vmem:[%s1 + $0x18] sm:$0xf]
  %v46 = vld [vmem:[%s1 + $0x1c] sm:$0xf]
  %v47 = vld [vmem:[%s1 + $0x20] sm:$0xf]
  %v48 = vld [vmem:[%s1 + $0x24] sm:$0xf]
  %v49 = vld [vmem:[%s1 + $0x28] sm:$0xf]
  %v50 = vld [vmem:[%s1 + $0x2c] sm:$0xf]
  %v51 = vld [vmem:[%s1 + $0x30] sm:$0xf]
  %v52 = vld [vmem:[%s1 + $0x34] sm:$0xf]
  %v53 = vld [vmem:[%s1 + $0x38] sm:$0xf]
  %v54 = vld [vmem:[%s1 + $0x3c] sm:$0xf]
  %v59 = vunpack.c.l.b16 %v35
  %v60 = vunpack.c.l.b16 %v36
  %v61 = vunpack.c.l.b16 %v37
  %v62 = vunpack.c.l.b16 %v38
  %v63 = vpack.c.b16 %v60, %v59
  %v64 = vpack.c.b16 %v62, %v61
  %v83 = vunpack.c.l.b16 %v39
  %v84 = vunpack.c.l.b16 %v40
  %v85 = vunpack.c.l.b16 %v41
  %v86 = vunpack.c.l.b16 %v42
  %v87 = vunpack.c.l.b16 %v43
  %v88 = vunpack.c.l.b16 %v44
  %v89 = vunpack.c.l.b16 %v45
  %v90 = vunpack.c.l.b16 %v46
  %v91 = vunpack.c.l.b16 %v47
  %v92 = vunpack.c.l.b16 %v48
  %v93 = vunpack.c.l.b16 %v49
  %v94 = vunpack.c.l.b16 %v50
  %v95 = vunpack.c.l.b16 %v51
  %v96 = vunpack.c.l.b16 %v52
  %v97 = vunpack.c.l.b16 %v53
  %v98 = vunpack.c.l.b16 %v54
  %v99 = vpack.c.b16 %v84, %v83
  %v100 = vpack.c.b16 %v86, %v85
  %v101 = vpack.c.b16 %v88, %v87
  %v102 = vpack.c.b16 %v90, %v89
  %v103 = vpack.c.b16 %v92, %v91
  %v104 = vpack.c.b16 %v94, %v93
  %v105 = vpack.c.b16 %v96, %v95
  %v106 = vpack.c.b16 %v98, %v97
  %115 = vmatpush.bf16.msra.mxu0 %v106
  %116 = vmatpush.bf16.msra.mxu0 %v105
  %117 = vmatpush.bf16.msra.mxu0 %v104
  %118 = vmatpush.bf16.msra.mxu0 %v103
  %119 = vmatpush.bf16.msra.mxu0 %v102
  %120 = vmatpush.bf16.msra.mxu0 %v101
  %121 = vmatpush.bf16.msra.mxu0 %v100
  %122 = vmatpush.bf16.msra.mxu0 %v99
  %123 = vmatmul.bf16.gmra.mxu0 %v63
  %v124 = vpop.f32.mrf.mxu0
  %v125 = vadd.f32 0.0, %v124
  %v126 = vpop.f32.mrf.mxu0
  %v127 = vadd.f32 0.0, %v126
  %128 = vmatmul.bf16.gmra.mxu0 %v64
  %v129 = vpop.f32.mrf.mxu0
  %v130 = vadd.f32 0.0, %v129
  %v131 = vpop.f32.mrf.mxu0
  %v132 = vadd.f32 0.0, %v131
  %133 = vdwg.mxu0
  %v134 = vadd.f32 %v31, %v125
  %v135 = vadd.f32 %v32, %v127
  %v136 = vadd.f32 %v33, %v130
  %v137 = vadd.f32 %v34, %v132
  %138 = vst [vmem:[#allocation2] sm:$0xff] %v134
  %139 = vst [vmem:[#allocation2 + $0x8] sm:$0xff] %v135
  %140 = vst [vmem:[#allocation2 + $0x10] sm:$0xff] %v136
  %141 = vst [vmem:[#allocation2 + $0x18] sm:$0xff] %v137
  // Predicated region
  $region30: #{_lambda_.14} parent=0 // pred_check
    %p142 = pneg %p23
  $region31: #{_lambda_.14} parent=0 // pred_check_branch
    %144 = sbr.rel (%p142) target = $region33
  $region32: #{_lambda_.14} parent=0 // pred_region
    %v145 = vld [vmem:[#allocation2] sm:$0xff]
    %v146 = vld [vmem:[#allocation2 + $0x8] sm:$0xff]
    %v147 = vld [vmem:[#allocation2 + $0x10] sm:$0xff]
    %v148 = vld [vmem:[#allocation2 + $0x18] sm:$0xff]
    %v149 = vld [vmem:[%s2] sm:$0x1]
    %v151 = vperm.slane %v149, 0
    %v153 = vadd.f32 %v145, %v151
    %v154 = vadd.f32 %v146, %v151
    %v155 = vadd.f32 %v147, %v151
    %v156 = vadd.f32 %v148, %v151
    %v157 = vld [vmem:[%s3] sm:$0xf]
    %v158 = vld [vmem:[%s3 + $0x4] sm:$0xf]
    %v159 = vld [vmem:[%s3 + $0x8] sm:$0xf]
    %v160 = vld [vmem:[%s3 + $0xc] sm:$0xf]
    %v161 = vunpack.c.l.bf16 %v157
    %v162 = vunpack.c.l.bf16 %v158
    %v163 = vunpack.c.l.bf16 %v159
    %v164 = vunpack.c.l.bf16 %v160
    %v165 = vadd.f32 %v153, %v161
    %v166 = vadd.f32 %v154, %v162
    %v167 = vadd.f32 %v155, %v163
    %v168 = vadd.f32 %v156, %v164
    %169 = vadd.xlane.f32.xlu0 %v165
    %v170 = vpop.xlane.xlu0 %169
    %171 = vadd.xlane.f32.xlu0 %v166
    %v172 = vpop.xlane.xlu0 %171
    %173 = vadd.xlane.f32.xlu0 %v167
    %v174 = vpop.xlane.xlu0 %173
    %175 = vadd.xlane.f32.xlu0 %v168
    %v176 = vpop.xlane.xlu0 %175
    %v177 = vrcp.pop 128.0
    %v178 = vmul.f32 128.0, %v177
    %v179 = vsub.f32 1.0, %v178
    %v180 = vmul.f32 %v177, %v179
    %v181 = vadd.f32 %v177, %v180
    %vm182 = vweird.f32 %v177
    %v183 = vsel %vm182, %v177, %v181
    %v184 = vmul.f32 %v170, %v183
    %v185 = vmul.f32 %v172, %v183
    %v186 = vmul.f32 %v174, %v183
    %v187 = vmul.f32 %v176, %v183
    %v188 = vsub.f32 %v165, %v184
    %v189 = vsub.f32 %v166, %v185
    %v190 = vsub.f32 %v167, %v186
    %v191 = vsub.f32 %v168, %v187
    %v192 = vmul.f32 %v188, %v188
    %v193 = vmul.f32 %v189, %v189
    %v194 = vmul.f32 %v190, %v190
    %v195 = vmul.f32 %v191, %v191
    %196 = vadd.xlane.f32.xlu0 %v192
    %v197 = vpop.xlane.xlu0 %196
    %198 = vadd.xlane.f32.xlu0 %v193
    %v199 = vpop.xlane.xlu0 %198
    %200 = vadd.xlane.f32.xlu0 %v194
    %v201 = vpop.xlane.xlu0 %200
    %202 = vadd.xlane.f32.xlu0 %v195
    %v203 = vpop.xlane.xlu0 %202
    %v204 = vmul.f32 %v197, %v183
    %v205 = vmul.f32 %v199, %v183
    %v206 = vmul.f32 %v201, %v183
    %v207 = vmul.f32 %v203, %v183
    %v208 = vadd.f32 %v204, 1e-12
    %v209 = vadd.f32 %v205, 1e-12
    %v210 = vadd.f32 %v206, 1e-12
    %v211 = vadd.f32 %v207, 1e-12
    %v212 = vrsqrt.pop %v208
    %v213 = vmul.f32 %v212, %v208
    %v214 = vmul.f32 %v213, %v212
    %v215 = vmul.f32 0.5, %v214
    %v216 = vsub.f32 1.5, %v215
    %v217 = vmul.f32 %v212, %v216
    %vm218 = vweird.f32 %v208
    %vm219 = vweird.f32 %v212
    %vm220 = vmor %vm218, %vm219
    %v221 = vsel %vm220, %v212, %v217
    %v222 = vrsqrt.pop %v209
    %v223 = vmul.f32 %v222, %v209
    %v224 = vmul.f32 %v223, %v222
    %v225 = vmul.f32 0.5, %v224
    %v226 = vsub.f32 1.5, %v225
    %v227 = vmul.f32 %v222, %v226
    %vm228 = vweird.f32 %v209
    %vm229 = vweird.f32 %v222
    %vm230 = vmor %vm228, %vm229
    %v231 = vsel %vm230, %v222, %v227
    %v232 = vrsqrt.pop %v210
    %v233 = vmul.f32 %v232, %v210
    %v234 = vmul.f32 %v233, %v232
    %v235 = vmul.f32 0.5, %v234
    %v236 = vsub.f32 1.5, %v235
    %v237 = vmul.f32 %v232, %v236
    %vm238 = vweird.f32 %v210
    %vm239 = vweird.f32 %v232
    %vm240 = vmor %vm238, %vm239
    %v241 = vsel %vm240, %v232, %v237
    %v242 = vrsqrt.pop %v211
    %v243 = vmul.f32 %v242, %v211
    %v244 = vmul.f32 %v243, %v242
    %v245 = vmul.f32 0.5, %v244
    %v246 = vsub.f32 1.5, %v245
    %v247 = vmul.f32 %v242, %v246
    %vm248 = vweird.f32 %v211
    %vm249 = vweird.f32 %v242
    %vm250 = vmor %vm248, %vm249
    %v251 = vsel %vm250, %v242, %v247
    %v252 = vmul.f32 %v188, %v221
    %v253 = vmul.f32 %v189, %v231
    %v254 = vmul.f32 %v190, %v241
    %v255 = vmul.f32 %v191, %v251
    %v256 = vld [vmem:[%s4] sm:$0x1]
    %v258 = vperm.slane %v256, 0
    %v260 = vmul.f32 %v252, %v258
    %v261 = vmul.f32 %v253, %v258
    %v262 = vmul.f32 %v254, %v258
    %v263 = vmul.f32 %v255, %v258
    %v264 = vld [vmem:[%s5] sm:$0x1]
    %v266 = vperm.slane %v264, 0
    %v268 = vadd.f32 %v260, %v266
    %v269 = vadd.f32 %v261, %v266
    %v270 = vadd.f32 %v262, %v266
    %v271 = vadd.f32 %v263, %v266
    %v272 = vpack.c.bf16 %v268, %v268
    %v273 = vpack.c.bf16 %v269, %v269
    %v274 = vpack.c.bf16 %v270, %v270
    %v275 = vpack.c.bf16 %v271, %v271
    %276 = vst [vmem:[%s6] sm:$0xf] %v272
    %277 = vst [vmem:[%s6 + $0x4] sm:$0xf] %v273
    %278 = vst [vmem:[%s6 + $0x8] sm:$0xf] %v274
    %279 = vst [vmem:[%s6 + $0xc] sm:$0xf] %v275
  $region33: #{_lambda_.14} parent=0 // pred_fallthru
    _
  // Predicated region
  $region34: #{_lambda_.14} parent=0 // pred_check
    _
  $region35: #{_lambda_.14} parent=0 // pred_check_branch
    %281 = sbr.rel (0) target = $region37
  $region36: #{_lambda_.14} parent=0 // pred_region
    _
  $region37: #{_lambda_.14} parent=0 // pred_fallthru
    _
  // Predicated region
  $region38: #{_lambda_.14} parent=0 // pred_check
    _
  $region39: #{_lambda_.14} parent=0 // pred_check_branch
    %283 = sbr.rel (0) target = $region41
  $region40: #{_lambda_.14} parent=0 // pred_region
    _
  $region41: #{_lambda_.14} parent=0 // pred_fallthru
    _

// kernel: _lambda_.12
$region0: #{_lambda_.12}
  #allocation0 [shape = 'u32[]', space=smem, size = 0x4, offset = 0x4, fixed_abs, tag = 'smem constant byte address 0x4 - core index']
  #allocation1 [shape = 'u32[72,128]{1,0:T(1,128)}', space=vmem, size = 0x9000, scoped, tag = 'internal scratch']
  #allocation2 [shape = 'f32[32,384]{1,0:T(8,128)}', space=vmem, size = 0xc000, scoped, tag = 'scratch operand']
  %s0 = inlined_call_operand.vmem [shape: bf16[32,128], index: 0, kind: input, shape index: {}]
  %s1 = inlined_call_operand.vmem [shape: bf16[128,384], index: 1, kind: input, shape index: {}]
  %s2 = inlined_call_operand.vmem [shape: f32[1,384], index: 2, kind: input, shape index: {}]
  %s3 = inlined_call_operand.vmem [shape: bf16[32,384], index: 3, kind: output, shape index: {}]
  %s4 = sld [smem:[#allocation0]]
  $region30: #{_lambda_.12} parent=0
    _
  %s6 = ssub.s32 1, %s4
  %s7 = scalar_select 0, %s6, %s4
  // Predicated region
  $region2: #{_lambda_.12} parent=0 // pred_check
    _
  $region3: #{_lambda_.12} parent=0 // pred_check_branch
    %9 = sbr.rel (0) target = $region5
  $region4: #{_lambda_.12} parent=0 // pred_region
    _
  $region5: #{_lambda_.12} parent=0 // pred_fallthru
    _
  // Predicated region
  $region6: #{_lambda_.12} parent=0 // pred_check
    _
  $region7: #{_lambda_.12} parent=0 // pred_check_branch
    %11 = sbr.rel (0) target = $region9
  $region8: #{_lambda_.12} parent=0 // pred_region
    _
  $region9: #{_lambda_.12} parent=0 // pred_fallthru
    _
  // Predicated region
  $region10: #{_lambda_.12} parent=0 // pred_check
    _
  $region11: #{_lambda_.12} parent=0 // pred_check_branch
    %13 = sbr.rel (0) target = $region13
  $region12: #{_lambda_.12} parent=0 // pred_region
    _
  $region13: #{_lambda_.12} parent=0 // pred_fallthru
    _
  %p14 = scmp.eq.s32.totalorder 0, 0
  // Predicated region
  $region14: #{_lambda_.12} parent=0 // pred_check
    %p15 = pneg %p14
  $region15: #{_lambda_.12} parent=0 // pred_check_branch
    %17 = sbr.rel (%p15) target = $region17
  $region16: #{_lambda_.12} parent=0 // pred_region
    %18 = vst [vmem:[#allocation2] sm:$0xff] 0.0
    %19 = vst [vmem:[#allocation2 + $0x8] sm:$0xff] 0.0
    %20 = vst [vmem:[#allocation2 + $0x10] sm:$0xff] 0.0
    %21 = vst [vmem:[#allocation2 + $0x18] sm:$0xff] 0.0
    %22 = vst [vmem:[#allocation2 + $0x20] sm:$0xff] 0.0
    %23 = vst [vmem:[#allocation2 + $0x28] sm:$0xff] 0.0
    %24 = vst [vmem:[#allocation2 + $0x30] sm:$0xff] 0.0
    %25 = vst [vmem:[#allocation2 + $0x38] sm:$0xff] 0.0
    %26 = vst [vmem:[#allocation2 + $0x40] sm:$0xff] 0.0
    %27 = vst [vmem:[#allocation2 + $0x48] sm:$0xff] 0.0
    %28 = vst [vmem:[#allocation2 + $0x50] sm:$0xff] 0.0
    %29 = vst [vmem:[#allocation2 + $0x58] sm:$0xff] 0.0
  $region17: #{_lambda_.12} parent=0 // pred_fallthru
    _
  %v30 = vld [vmem:[#allocation2] sm:$0xff]
  %v31 = vld [vmem:[#allocation2 + $0x8] sm:$0xff]
  %v32 = vld [vmem:[#allocation2 + $0x10] sm:$0xff]
  %v33 = vld [vmem:[#allocation2 + $0x18] sm:$0xff]
  %v34 = vld [vmem:[#allocation2 + $0x20] sm:$0xff]
  %v35 = vld [vmem:[#allocation2 + $0x28] sm:$0xff]
  %v36 = vld [vmem:[#allocation2 + $0x30] sm:$0xff]
  %v37 = vld [vmem:[#allocation2 + $0x38] sm:$0xff]
  %v38 = vld [vmem:[#allocation2 + $0x40] sm:$0xff]
  %v39 = vld [vmem:[#allocation2 + $0x48] sm:$0xff]
  %v40 = vld [vmem:[#allocation2 + $0x50] sm:$0xff]
  %v41 = vld [vmem:[#allocation2 + $0x58] sm:$0xff]
  %v42 = vld [vmem:[%s0] sm:$0xf]
  %v43 = vld [vmem:[%s0 + $0x4] sm:$0xf]
  %v44 = vld [vmem:[%s0 + $0x8] sm:$0xf]
  %v45 = vld [vmem:[%s0 + $0xc] sm:$0xf]
  %v46 = vld [vmem:[%s1] sm:$0xff]
  %v47 = vld [vmem:[%s1 + $0x8] sm:$0xf]
  %v48 = vld [vmem:[%s1 + $0xc] sm:$0xff]
  %v49 = vld [vmem:[%s1 + $0x14] sm:$0xf]
  %v50 = vld [vmem:[%s1 + $0x18] sm:$0xff]
  %v51 = vld [vmem:[%s1 + $0x20] sm:$0xf]
  %v52 = vld [vmem:[%s1 + $0x24] sm:$0xff]
  %v53 = vld [vmem:[%s1 + $0x2c] sm:$0xf]
  %v54 = vld [vmem:[%s1 + $0x30] sm:$0xff]
  %v55 = vld [vmem:[%s1 + $0x38] sm:$0xf]
  %v56 = vld [vmem:[%s1 + $0x3c] sm:$0xff]
  %v57 = vld [vmem:[%s1 + $0x44] sm:$0xf]
  %v58 = vld [vmem:[%s1 + $0x48] sm:$0xff]
  %v59 = vld [vmem:[%s1 + $0x50] sm:$0xf]
  %v60 = vld [vmem:[%s1 + $0x54] sm:$0xff]
  %v61 = vld [vmem:[%s1 + $0x5c] sm:$0xf]
  %v62 = vld [vmem:[%s1 + $0x60] sm:$0xff]
  %v63 = vld [vmem:[%s1 + $0x68] sm:$0xf]
  %v64 = vld [vmem:[%s1 + $0x6c] sm:$0xff]
  %v65 = vld [vmem:[%s1 + $0x74] sm:$0xf]
  %v66 = vld [vmem:[%s1 + $0x78] sm:$0xff]
  %v67 = vld [vmem:[%s1 + $0x80] sm:$0xf]
  %v68 = vld [vmem:[%s1 + $0x84] sm:$0xff]
  %v69 = vld [vmem:[%s1 + $0x8c] sm:$0xf]
  %v70 = vld [vmem:[%s1 + $0x90] sm:$0xff]
  %v71 = vld [vmem:[%s1 + $0x98] sm:$0xf]
  %v72 = vld [vmem:[%s1 + $0x9c] sm:$0xff]
  %v73 = vld [vmem:[%s1 + $0xa4] sm:$0xf]
  %v74 = vld [vmem:[%s1 + $0xa8] sm:$0xff]
  %v75 = vld [vmem:[%s1 + $0xb0] sm:$0xf]
  %v76 = vld [vmem:[%s1 + $0xb4] sm:$0xff]
  %v77 = vld [vmem:[%s1 + $0xbc] sm:$0xf]
  %v82 = vunpack.c.l.b16 %v42
  %v83 = vunpack.c.l.b16 %v43
  %v84 = vunpack.c.l.b16 %v44
  %v85 = vunpack.c.l.b16 %v45
  %v86 = vpack.c.b16 %v83, %v82
  %v87 = vpack.c.b16 %v85, %v84
  %v122 = vunpack.c.l.b16 %v46
  %v123 = vunpack.c.h.b16 %v46
  %v124 = vunpack.c.l.b16 %v47
  %v125 = vunpack.c.l.b16 %v48
  %v126 = vunpack.c.h.b16 %v48
  %v127 = vunpack.c.l.b16 %v49
  %v128 = vunpack.c.l.b16 %v50
  %v129 = vunpack.c.h.b16 %v50
  %v130 = vunpack.c.l.b16 %v51
  %v131 = vunpack.c.l.b16 %v52
  %v132 = vunpack.c.h.b16 %v52
  %v133 = vunpack.c.l.b16 %v53
  %v134 = vunpack.c.l.b16 %v54
  %v135 = vunpack.c.h.b16 %v54
  %v136 = vunpack.c.l.b16 %v55
  %v137 = vunpack.c.l.b16 %v56
  %v138 = vunpack.c.h.b16 %v56
  %v139 = vunpack.c.l.b16 %v57
  %v140 = vunpack.c.l.b16 %v58
  %v141 = vunpack.c.h.b16 %v58
  %v142 = vunpack.c.l.b16 %v59
  %v143 = vunpack.c.l.b16 %v60
  %v144 = vunpack.c.h.b16 %v60
  %v145 = vunpack.c.l.b16 %v61
  %v146 = vunpack.c.l.b16 %v62
  %v147 = vunpack.c.h.b16 %v62
  %v148 = vunpack.c.l.b16 %v63
  %v149 = vunpack.c.l.b16 %v64
  %v150 = vunpack.c.h.b16 %v64
  %v151 = vunpack.c.l.b16 %v65
  %v152 = vunpack.c.l.b16 %v66
  %v153 = vunpack.c.h.b16 %v66
  %v154 = vunpack.c.l.b16 %v67
  %v155 = vunpack.c.l.b16 %v68
  %v156 = vunpack.c.h.b16 %v68
  %v157 = vunpack.c.l.b16 %v69
  %v158 = vunpack.c.l.b16 %v70
  %v159 = vunpack.c.h.b16 %v70
  %v160 = vunpack.c.l.b16 %v71
  %v161 = vunpack.c.l.b16 %v72
  %v162 = vunpack.c.h.b16 %v72
  %v163 = vunpack.c.l.b16 %v73
  %v164 = vunpack.c.l.b16 %v74
  %v165 = vunpack.c.h.b16 %v74
  %v166 = vunpack.c.l.b16 %v75
  %v167 = vunpack.c.l.b16 %v76
  %v168 = vunpack.c.h.b16 %v76
  %v169 = vunpack.c.l.b16 %v77
  %v170 = vpack.c.b16 %v125, %v122
  %v171 = vpack.c.b16 %v126, %v123
  %v172 = vpack.c.b16 %v127, %v124
  %v173 = vpack.c.b16 %v131, %v128
  %v174 = vpack.c.b16 %v132, %v129
  %v175 = vpack.c.b16 %v133, %v130
  %v176 = vpack.c.b16 %v137, %v134
  %v177 = vpack.c.b16 %v138, %v135
  %v178 = vpack.c.b16 %v139, %v136
  %v179 = vpack.c.b16 %v143, %v140
  %v180 = vpack.c.b16 %v144, %v141
  %v181 = vpack.c.b16 %v145, %v142
  %v182 = vpack.c.b16 %v149, %v146
  %v183 = vpack.c.b16 %v150, %v147
  %v184 = vpack.c.b16 %v151, %v148
  %v185 = vpack.c.b16 %v155, %v152
  %v186 = vpack.c.b16 %v156, %v153
  %v187 = vpack.c.b16 %v157, %v154
  %v188 = vpack.c.b16 %v161, %v158
  %v189 = vpack.c.b16 %v162, %v159
  %v190 = vpack.c.b16 %v163, %v160
  %v191 = vpack.c.b16 %v167, %v164
  %v192 = vpack.c.b16 %v168, %v165
  %v193 = vpack.c.b16 %v169, %v166
  %218 = vmatpush.bf16.msra.mxu0 %v191
  %219 = vmatpush.bf16.msra.mxu0 %v188
  %220 = vmatpush.bf16.msra.mxu0 %v185
  %221 = vmatpush.bf16.msra.mxu0 %v182
  %222 = vmatpush.bf16.msra.mxu0 %v179
  %223 = vmatpush.bf16.msra.mxu0 %v176
  %224 = vmatpush.bf16.msra.mxu0 %v173
  %225 = vmatpush.bf16.msra.mxu0 %v170
  %226 = vmatmul.bf16.gmra.mxu0 %v86
  %v227 = vpop.f32.mrf.mxu0
  %v228 = vadd.f32 0.0, %v227
  %v229 = vpop.f32.mrf.mxu0
  %v230 = vadd.f32 0.0, %v229
  %231 = vmatmul.bf16.gmra.mxu0 %v87
  %v232 = vpop.f32.mrf.mxu0
  %v233 = vadd.f32 0.0, %v232
  %v234 = vpop.f32.mrf.mxu0
  %v235 = vadd.f32 0.0, %v234
  %236 = vdwg.mxu0
  %237 = vmatpush.bf16.msra.mxu0 %v192
  %238 = vmatpush.bf16.msra.mxu0 %v189
  %239 = vmatpush.bf16.msra.mxu0 %v186
  %240 = vmatpush.bf16.msra.mxu0 %v183
  %241 = vmatpush.bf16.msra.mxu0 %v180
  %242 = vmatpush.bf16.msra.mxu0 %v177
  %243 = vmatpush.bf16.msra.mxu0 %v174
  %244 = vmatpush.bf16.msra.mxu0 %v171
  %245 = vmatmul.bf16.gmra.mxu0 %v86
  %v246 = vpop.f32.mrf.mxu0
  %v247 = vadd.f32 0.0, %v246
  %v248 = vpop.f32.mrf.mxu0
  %v249 = vadd.f32 0.0, %v248
  %250 = vmatmul.bf16.gmra.mxu0 %v87
  %v251 = vpop.f32.mrf.mxu0
  %v252 = vadd.f32 0.0, %v251
  %v253 = vpop.f32.mrf.mxu0
  %v254 = vadd.f32 0.0, %v253
  %255 = vdwg.mxu0
  %256 = vmatpush.bf16.msra.mxu0 %v193
  %257 = vmatpush.bf16.msra.mxu0 %v190
  %258 = vmatpush.bf16.msra.mxu0 %v187
  %259 = vmatpush.bf16.msra.mxu0 %v184
  %260 = vmatpush.bf16.msra.mxu0 %v181
  %261 = vmatpush.bf16.msra.mxu0 %v178
  %262 = vmatpush.bf16.msra.mxu0 %v175
  %263 = vmatpush.bf16.msra.mxu0 %v172
  %264 = vmatmul.bf16.gmra.mxu0 %v86
  %v265 = vpop.f32.mrf.mxu0
  %v266 = vadd.f32 0.0, %v265
  %v267 = vpop.f32.mrf.mxu0
  %v268 = vadd.f32 0.0, %v267
  %269 = vmatmul.bf16.gmra.mxu0 %v87
  %v270 = vpop.f32.mrf.mxu0
  %v271 = vadd.f32 0.0, %v270
  %v272 = vpop.f32.mrf.mxu0
  %v273 = vadd.f32 0.0, %v272
  %274 = vdwg.mxu0
  %v275 = vadd.f32 %v30, %v228
  %v276 = vadd.f32 %v31, %v247
  %v277 = vadd.f32 %v32, %v266
  %v278 = vadd.f32 %v33, %v230
  %v279 = vadd.f32 %v34, %v249
  %v280 = vadd.f32 %v35, %v268
  %v281 = vadd.f32 %v36, %v233
  %v282 = vadd.f32 %v37, %v252
  %v283 = vadd.f32 %v38, %v271
  %v284 = vadd.f32 %v39, %v235
  %v285 = vadd.f32 %v40, %v254
  %v286 = vadd.f32 %v41, %v273
  %287 = vst [vmem:[#allocation2] sm:$0xff] %v275
  %288 = vst [vmem:[#allocation2 + $0x8] sm:$0xff] %v276
  %289 = vst [vmem:[#allocation2 + $0x10] sm:$0xff] %v277
  %290 = vst [vmem:[#allocation2 + $0x18] sm:$0xff] %v278
  %291 = vst [vmem:[#allocation2 + $0x20] sm:$0xff] %v279
  %292 = vst [vmem:[#allocation2 + $0x28] sm:$0xff] %v280
  %293 = vst [vmem:[#allocation2 + $0x30] sm:$0xff] %v281
  %294 = vst [vmem:[#allocation2 + $0x38] sm:$0xff] %v282
  %295 = vst [vmem:[#allocation2 + $0x40] sm:$0xff] %v283
  %296 = vst [vmem:[#allocation2 + $0x48] sm:$0xff] %v284
  %297 = vst [vmem:[#allocation2 + $0x50] sm:$0xff] %v285
  %298 = vst [vmem:[#allocation2 + $0x58] sm:$0xff] %v286
  // Predicated region
  $region18: #{_lambda_.12} parent=0 // pred_check
    %p299 = pneg %p14
  $region19: #{_lambda_.12} parent=0 // pred_check_branch
    %301 = sbr.rel (%p299) target = $region21
  $region20: #{_lambda_.12} parent=0 // pred_region
    %v302 = vld [vmem:[#allocation2] sm:$0xff]
    %v303 = vld [vmem:[#allocation2 + $0x8] sm:$0xff]
    %v304 = vld [vmem:[#allocation2 + $0x10] sm:$0xff]
    %v305 = vld [vmem:[#allocation2 + $0x18] sm:$0xff]
    %v306 = vld [vmem:[#allocation2 + $0x20] sm:$0xff]
    %v307 = vld [vmem:[#allocation2 + $0x28] sm:$0xff]
    %v308 = vld [vmem:[#allocation2 + $0x30] sm:$0xff]
    %v309 = vld [vmem:[#allocation2 + $0x38] sm:$0xff]
    %v310 = vld [vmem:[#allocation2 + $0x40] sm:$0xff]
    %v311 = vld [vmem:[#allocation2 + $0x48] sm:$0xff]
    %v312 = vld [vmem:[#allocation2 + $0x50] sm:$0xff]
    %v313 = vld [vmem:[#allocation2 + $0x58] sm:$0xff]
    %v314 = vld [vmem:[%s2] sm:$0x7]
    %v316 = vperm.slane %v314, 0
    %v317 = vperm.slane %v314, 1
    %v318 = vperm.slane %v314, 2
    %v322 = vadd.f32 %v302, %v316
    %v323 = vadd.f32 %v303, %v317
    %v324 = vadd.f32 %v304, %v318
    %v325 = vadd.f32 %v305, %v316
    %v326 = vadd.f32 %v306, %v317
    %v327 = vadd.f32 %v307, %v318
    %v328 = vadd.f32 %v308, %v316
    %v329 = vadd.f32 %v309, %v317
    %v330 = vadd.f32 %v310, %v318
    %v331 = vadd.f32 %v311, %v316
    %v332 = vadd.f32 %v312, %v317
    %v333 = vadd.f32 %v313, %v318
    %v334 = vpack.c.bf16 %v323, %v322
    %v335 = vpack.c.bf16 %v324, %v324
    %v336 = vpack.c.bf16 %v326, %v325
    %v337 = vpack.c.bf16 %v327, %v327
    %v338 = vpack.c.bf16 %v329, %v328
    %v339 = vpack.c.bf16 %v330, %v330
    %v340 = vpack.c.bf16 %v332, %v331
    %v341 = vpack.c.bf16 %v333, %v333
    %342 = vst [vmem:[%s3] sm:$0xff] %v334
    %343 = vst [vmem:[%s3 + $0x8] sm:$0xf] %v335
    %344 = vst [vmem:[%s3 + $0xc] sm:$0xff] %v336
    %345 = vst [vmem:[%s3 + $0x14] sm:$0xf] %v337
    %346 = vst [vmem:[%s3 + $0x18] sm:$0xff] %v338
    %347 = vst [vmem:[%s3 + $0x20] sm:$0xf] %v339
    %348 = vst [vmem:[%s3 + $0x24] sm:$0xff] %v340
    %349 = vst [vmem:[%s3 + $0x2c] sm:$0xf] %v341
  $region21: #{_lambda_.12} parent=0 // pred_fallthru
    _
  // Predicated region
  $region22: #{_lambda_.12} parent=0 // pred_check
    _
  $region23: #{_lambda_.12} parent=0 // pred_check_branch
    %351 = sbr.rel (0) target = $region25
  $region24: #{_lambda_.12} parent=0 // pred_region
    _
  $region25: #{_lambda_.12} parent=0 // pred_fallthru
    _
  // Predicated region
  $region26: #{_lambda_.12} parent=0 // pred_check
    _
  $region27: #{_lambda_.12} parent=0 // pred_check_branch
    %353 = sbr.rel (0) target = $region29
  $region28: #{_lambda_.12} parent=0 // pred_region
    _
  $region29: #{_lambda_.12} parent=0 // pred_fallthru
    _

// kernel: _lambda_.15
$region0: #{_lambda_.15}
  #allocation0 [shape = 'u32[]', space=smem, size = 0x4, offset = 0x4, fixed_abs, tag = 'smem constant byte address 0x4 - core index']
  #allocation1 [shape = 'u32[72,128]{1,0:T(1,128)}', space=vmem, size = 0x9000, scoped, tag = 'internal scratch']
  #allocation2 [shape = 'f32[32,256]{1,0:T(8,128)}', space=vmem, size = 0x8000, scoped, tag = 'scratch operand']
  %s0 = inlined_call_operand.vmem [shape: bf16[32,128], index: 0, kind: input, shape index: {}]
  %s1 = inlined_call_operand.vmem [shape: bf16[128,256], index: 1, kind: input, shape index: {}]
  %s2 = inlined_call_operand.vmem [shape: f32[1,256], index: 2, kind: input, shape index: {}]
  %s3 = inlined_call_operand.vmem [shape: bf16[32,256], index: 3, kind: output, shape index: {}]
  %s4 = sld [smem:[#allocation0]]
  $region30: #{_lambda_.15} parent=0
    _
  %s6 = ssub.s32 1, %s4
  %s7 = scalar_select 0, %s6, %s4
  // Predicated region
  $region2: #{_lambda_.15} parent=0 // pred_check
    _
  $region3: #{_lambda_.15} parent=0 // pred_check_branch
    %9 = sbr.rel (0) target = $region5
  $region4: #{_lambda_.15} parent=0 // pred_region
    _
  $region5: #{_lambda_.15} parent=0 // pred_fallthru
    _
  // Predicated region
  $region6: #{_lambda_.15} parent=0 // pred_check
    _
  $region7: #{_lambda_.15} parent=0 // pred_check_branch
    %11 = sbr.rel (0) target = $region9
  $region8: #{_lambda_.15} parent=0 // pred_region
    _
  $region9: #{_lambda_.15} parent=0 // pred_fallthru
    _
  // Predicated region
  $region10: #{_lambda_.15} parent=0 // pred_check
    _
  $region11: #{_lambda_.15} parent=0 // pred_check_branch
    %13 = sbr.rel (0) target = $region13
  $region12: #{_lambda_.15} parent=0 // pred_region
    _
  $region13: #{_lambda_.15} parent=0 // pred_fallthru
    _
  %p14 = scmp.eq.s32.totalorder 0, 0
  // Predicated region
  $region14: #{_lambda_.15} parent=0 // pred_check
    %p15 = pneg %p14
  $region15: #{_lambda_.15} parent=0 // pred_check_branch
    %17 = sbr.rel (%p15) target = $region17
  $region16: #{_lambda_.15} parent=0 // pred_region
    %18 = vst [vmem:[#allocation2] sm:$0xff] 0.0
    %19 = vst [vmem:[#allocation2 + $0x8] sm:$0xff] 0.0
    %20 = vst [vmem:[#allocation2 + $0x10] sm:$0xff] 0.0
    %21 = vst [vmem:[#allocation2 + $0x18] sm:$0xff] 0.0
    %22 = vst [vmem:[#allocation2 + $0x20] sm:$0xff] 0.0
    %23 = vst [vmem:[#allocation2 + $0x28] sm:$0xff] 0.0
    %24 = vst [vmem:[#allocation2 + $0x30] sm:$0xff] 0.0
    %25 = vst [vmem:[#allocation2 + $0x38] sm:$0xff] 0.0
  $region17: #{_lambda_.15} parent=0 // pred_fallthru
    _
  %v26 = vld [vmem:[#allocation2] sm:$0xff]
  %v27 = vld [vmem:[#allocation2 + $0x8] sm:$0xff]
  %v28 = vld [vmem:[#allocation2 + $0x10] sm:$0xff]
  %v29 = vld [vmem:[#allocation2 + $0x18] sm:$0xff]
  %v30 = vld [vmem:[#allocation2 + $0x20] sm:$0xff]
  %v31 = vld [vmem:[#allocation2 + $0x28] sm:$0xff]
  %v32 = vld [vmem:[#allocation2 + $0x30] sm:$0xff]
  %v33 = vld [vmem:[#allocation2 + $0x38] sm:$0xff]
  %v34 = vld [vmem:[%s0] sm:$0xf]
  %v35 = vld [vmem:[%s0 + $0x4] sm:$0xf]
  %v36 = vld [vmem:[%s0 + $0x8] sm:$0xf]
  %v37 = vld [vmem:[%s0 + $0xc] sm:$0xf]
  %v38 = vld [vmem:[%s1] sm:$0xff]
  %v39 = vld [vmem:[%s1 + $0x8] sm:$0xff]
  %v40 = vld [vmem:[%s1 + $0x10] sm:$0xff]
  %v41 = vld [vmem:[%s1 + $0x18] sm:$0xff]
  %v42 = vld [vmem:[%s1 + $0x20] sm:$0xff]
  %v43 = vld [vmem:[%s1 + $0x28] sm:$0xff]
  %v44 = vld [vmem:[%s1 + $0x30] sm:$0xff]
  %v45 = vld [vmem:[%s1 + $0x38] sm:$0xff]
  %v46 = vld [vmem:[%s1 + $0x40] sm:$0xff]
  %v47 = vld [vmem:[%s1 + $0x48] sm:$0xff]
  %v48 = vld [vmem:[%s1 + $0x50] sm:$0xff]
  %v49 = vld [vmem:[%s1 + $0x58] sm:$0xff]
  %v50 = vld [vmem:[%s1 + $0x60] sm:$0xff]
  %v51 = vld [vmem:[%s1 + $0x68] sm:$0xff]
  %v52 = vld [vmem:[%s1 + $0x70] sm:$0xff]
  %v53 = vld [vmem:[%s1 + $0x78] sm:$0xff]
  %v58 = vunpack.c.l.b16 %v34
  %v59 = vunpack.c.l.b16 %v35
  %v60 = vunpack.c.l.b16 %v36
  %v61 = vunpack.c.l.b16 %v37
  %v62 = vpack.c.b16 %v59, %v58
  %v63 = vpack.c.b16 %v61, %v60
  %v82 = vunpack.c.l.b16 %v38
  %v83 = vunpack.c.h.b16 %v38
  %v84 = vunpack.c.l.b16 %v39
  %v85 = vunpack.c.h.b16 %v39
  %v86 = vunpack.c.l.b16 %v40
  %v87 = vunpack.c.h.b16 %v40
  %v88 = vunpack.c.l.b16 %v41
  %v89 = vunpack.c.h.b16 %v41
  %v90 = vunpack.c.l.b16 %v42
  %v91 = vunpack.c.h.b16 %v42
  %v92 = vunpack.c.l.b16 %v43
  %v93 = vunpack.c.h.b16 %v43
  %v94 = vunpack.c.l.b16 %v44
  %v95 = vunpack.c.h.b16 %v44
  %v96 = vunpack.c.l.b16 %v45
  %v97 = vunpack.c.h.b16 %v45
  %v98 = vunpack.c.l.b16 %v46
  %v99 = vunpack.c.h.b16 %v46
  %v100 = vunpack.c.l.b16 %v47
  %v101 = vunpack.c.h.b16 %v47
  %v102 = vunpack.c.l.b16 %v48
  %v103 = vunpack.c.h.b16 %v48
  %v104 = vunpack.c.l.b16 %v49
  %v105 = vunpack.c.h.b16 %v49
  %v106 = vunpack.c.l.b16 %v50
  %v107 = vunpack.c.h.b16 %v50
  %v108 = vunpack.c.l.b16 %v51
  %v109 = vunpack.c.h.b16 %v51
  %v110 = vunpack.c.l.b16 %v52
  %v111 = vunpack.c.h.b16 %v52
  %v112 = vunpack.c.l.b16 %v53
  %v113 = vunpack.c.h.b16 %v53
  %v114 = vpack.c.b16 %v84, %v82
  %v115 = vpack.c.b16 %v85, %v83
  %v116 = vpack.c.b16 %v88, %v86
  %v117 = vpack.c.b16 %v89, %v87
  %v118 = vpack.c.b16 %v92, %v90
  %v119 = vpack.c.b16 %v93, %v91
  %v120 = vpack.c.b16 %v96, %v94
  %v121 = vpack.c.b16 %v97, %v95
  %v122 = vpack.c.b16 %v100, %v98
  %v123 = vpack.c.b16 %v101, %v99
  %v124 = vpack.c.b16 %v104, %v102
  %v125 = vpack.c.b16 %v105, %v103
  %v126 = vpack.c.b16 %v108, %v106
  %v127 = vpack.c.b16 %v109, %v107
  %v128 = vpack.c.b16 %v112, %v110
  %v129 = vpack.c.b16 %v113, %v111
  %146 = vmatpush.bf16.msra.mxu0 %v128
  %147 = vmatpush.bf16.msra.mxu0 %v126
  %148 = vmatpush.bf16.msra.mxu0 %v124
  %149 = vmatpush.bf16.msra.mxu0 %v122
  %150 = vmatpush.bf16.msra.mxu0 %v120
  %151 = vmatpush.bf16.msra.mxu0 %v118
  %152 = vmatpush.bf16.msra.mxu0 %v116
  %153 = vmatpush.bf16.msra.mxu0 %v114
  %154 = vmatmul.bf16.gmra.mxu0 %v62
  %v155 = vpop.f32.mrf.mxu0
  %v156 = vadd.f32 0.0, %v155
  %v157 = vpop.f32.mrf.mxu0
  %v158 = vadd.f32 0.0, %v157
  %159 = vmatmul.bf16.gmra.mxu0 %v63
  %v160 = vpop.f32.mrf.mxu0
  %v161 = vadd.f32 0.0, %v160
  %v162 = vpop.f32.mrf.mxu0
  %v163 = vadd.f32 0.0, %v162
  %164 = vdwg.mxu0
  %165 = vmatpush.bf16.msra.mxu0 %v129
  %166 = vmatpush.bf16.msra.mxu0 %v127
  %167 = vmatpush.bf16.msra.mxu0 %v125
  %168 = vmatpush.bf16.msra.mxu0 %v123
  %169 = vmatpush.bf16.msra.mxu0 %v121
  %170 = vmatpush.bf16.msra.mxu0 %v119
  %171 = vmatpush.bf16.msra.mxu0 %v117
  %172 = vmatpush.bf16.msra.mxu0 %v115
  %173 = vmatmul.bf16.gmra.mxu0 %v62
  %v174 = vpop.f32.mrf.mxu0
  %v175 = vadd.f32 0.0, %v174
  %v176 = vpop.f32.mrf.mxu0
  %v177 = vadd.f32 0.0, %v176
  %178 = vmatmul.bf16.gmra.mxu0 %v63
  %v179 = vpop.f32.mrf.mxu0
  %v180 = vadd.f32 0.0, %v179
  %v181 = vpop.f32.mrf.mxu0
  %v182 = vadd.f32 0.0, %v181
  %183 = vdwg.mxu0
  %v184 = vadd.f32 %v26, %v156
  %v185 = vadd.f32 %v27, %v175
  %v186 = vadd.f32 %v28, %v158
  %v187 = vadd.f32 %v29, %v177
  %v188 = vadd.f32 %v30, %v161
  %v189 = vadd.f32 %v31, %v180
  %v190 = vadd.f32 %v32, %v163
  %v191 = vadd.f32 %v33, %v182
  %192 = vst [vmem:[#allocation2] sm:$0xff] %v184
  %193 = vst [vmem:[#allocation2 + $0x8] sm:$0xff] %v185
  %194 = vst [vmem:[#allocation2 + $0x10] sm:$0xff] %v186
  %195 = vst [vmem:[#allocation2 + $0x18] sm:$0xff] %v187
  %196 = vst [vmem:[#allocation2 + $0x20] sm:$0xff] %v188
  %197 = vst [vmem:[#allocation2 + $0x28] sm:$0xff] %v189
  %198 = vst [vmem:[#allocation2 + $0x30] sm:$0xff] %v190
  %199 = vst [vmem:[#allocation2 + $0x38] sm:$0xff] %v191
  // Predicated region
  $region18: #{_lambda_.15} parent=0 // pred_check
    %p200 = pneg %p14
  $region19: #{_lambda_.15} parent=0 // pred_check_branch
    %202 = sbr.rel (%p200) target = $region21
  $region20: #{_lambda_.15} parent=0 // pred_region
    %v203 = vld [vmem:[#allocation2] sm:$0xff]
    %v204 = vld [vmem:[#allocation2 + $0x8] sm:$0xff]
    %v205 = vld [vmem:[#allocation2 + $0x10] sm:$0xff]
    %v206 = vld [vmem:[#allocation2 + $0x18] sm:$0xff]
    %v207 = vld [vmem:[#allocation2 + $0x20] sm:$0xff]
    %v208 = vld [vmem:[#allocation2 + $0x28] sm:$0xff]
    %v209 = vld [vmem:[#allocation2 + $0x30] sm:$0xff]
    %v210 = vld [vmem:[#allocation2 + $0x38] sm:$0xff]
    %v211 = vld [vmem:[%s2] sm:$0x3]
    %v213 = vperm.slane %v211, 0
    %v214 = vperm.slane %v211, 1
    %v217 = vadd.f32 %v203, %v213
    %v218 = vadd.f32 %v204, %v214
    %v219 = vadd.f32 %v205, %v213
    %v220 = vadd.f32 %v206, %v214
    %v221 = vadd.f32 %v207, %v213
    %v222 = vadd.f32 %v208, %v214
    %v223 = vadd.f32 %v209, %v213
    %v224 = vadd.f32 %v210, %v214
    %v225 = vmul.f32 %v217, 0.5
    %v226 = vmul.f32 %v218, 0.5
    %v227 = vmul.f32 %v219, 0.5
    %v228 = vmul.f32 %v220, 0.5
    %v229 = vmul.f32 %v221, 0.5
    %v230 = vmul.f32 %v222, 0.5
    %v231 = vmul.f32 %v223, 0.5
    %v232 = vmul.f32 %v224, 0.5
    %v233 = vmul.f32 %v217, 0.044715
    %v234 = vmul.f32 %v218, 0.044715
    %v235 = vmul.f32 %v219, 0.044715
    %v236 = vmul.f32 %v220, 0.044715
    %v237 = vmul.f32 %v221, 0.044715
    %v238 = vmul.f32 %v222, 0.044715
    %v239 = vmul.f32 %v223, 0.044715
    %v240 = vmul.f32 %v224, 0.044715
    %v241 = vmul.f32 %v233, %v217
    %v242 = vmul.f32 %v234, %v218
    %v243 = vmul.f32 %v235, %v219
    %v244 = vmul.f32 %v236, %v220
    %v245 = vmul.f32 %v237, %v221
    %v246 = vmul.f32 %v238, %v222
    %v247 = vmul.f32 %v239, %v223
    %v248 = vmul.f32 %v240, %v224
    %v249 = vmul.f32 %v241, %v217
    %v250 = vmul.f32 %v242, %v218
    %v251 = vmul.f32 %v243, %v219
    %v252 = vmul.f32 %v244, %v220
    %v253 = vmul.f32 %v245, %v221
    %v254 = vmul.f32 %v246, %v222
    %v255 = vmul.f32 %v247, %v223
    %v256 = vmul.f32 %v248, %v224
    %v257 = vadd.f32 %v217, %v249
    %v258 = vadd.f32 %v218, %v250
    %v259 = vadd.f32 %v219, %v251
    %v260 = vadd.f32 %v220, %v252
    %v261 = vadd.f32 %v221, %v253
    %v262 = vadd.f32 %v222, %v254
    %v263 = vadd.f32 %v223, %v255
    %v264 = vadd.f32 %v224, %v256
    %v265 = vmul.f32 %v257, 0.7978846
    %v266 = vmul.f32 %v258, 0.7978846
    %v267 = vmul.f32 %v259, 0.7978846
    %v268 = vmul.f32 %v260, 0.7978846
    %v269 = vmul.f32 %v261, 0.7978846
    %v270 = vmul.f32 %v262, 0.7978846
    %v271 = vmul.f32 %v263, 0.7978846
    %v272 = vmul.f32 %v264, 0.7978846
    %v273 = vtanh.pop %v265
    %v274 = vtanh.pop %v266
    %v275 = vtanh.pop %v267
    %v276 = vtanh.pop %v268
    %v277 = vtanh.pop %v269
    %v278 = vtanh.pop %v270
    %v279 = vtanh.pop %v271
    %v280 = vtanh.pop %v272
    %v281 = vadd.f32 %v273, 1.0
    %v282 = vadd.f32 %v274, 1.0
    %v283 = vadd.f32 %v275, 1.0
    %v284 = vadd.f32 %v276, 1.0
    %v285 = vadd.f32 %v277, 1.0
    %v286 = vadd.f32 %v278, 1.0
    %v287 = vadd.f32 %v279, 1.0
    %v288 = vadd.f32 %v280, 1.0
    %v289 = vmul.f32 %v225, %v281
    %v290 = vmul.f32 %v226, %v282
    %v291 = vmul.f32 %v227, %v283
    %v292 = vmul.f32 %v228, %v284
    %v293 = vmul.f32 %v229, %v285
    %v294 = vmul.f32 %v230, %v286
    %v295 = vmul.f32 %v231, %v287
    %v296 = vmul.f32 %v232, %v288
    %v297 = vpack.c.bf16 %v290, %v289
    %v298 = vpack.c.bf16 %v292, %v291
    %v299 = vpack.c.bf16 %v294, %v293
    %v300 = vpack.c.bf16 %v296, %v295
    %301 = vst [vmem:[%s3] sm:$0xff] %v297
    %302 = vst [vmem:[%s3 + $0x8] sm:$0xff] %v298
    %303 = vst [vmem:[%s3 + $0x10] sm:$0xff] %v299
    %304 = vst [vmem:[%s3 + $0x18] sm:$0xff] %v300
  $region21: #{_lambda_.15} parent=0 // pred_fallthru
    _
  // Predicated region
  $region22: #{_lambda_.15} parent=0 // pred_check
    _
  $region23: #{_lambda_.15} parent=0 // pred_check_branch
    %306 = sbr.rel (0) target = $region25
  $region24: #{_lambda_.15} parent=0 // pred_region
    _
  $region25: #{_lambda_.15} parent=0 // pred_fallthru
    _
  // Predicated region
  $region26: #{_lambda_.15} parent=0 // pred_check
    _
  $region27: #{_lambda_.15} parent=0 // pred_check_branch
    %308 = sbr.rel (0) target = $region29
  $region28: #{_lambda_.15} parent=0 // pred_region
    _
  $region29: #{_lambda_.15} parent=0 // pred_fallthru
    _

// kernel: _lambda_.17
$region0: #{_lambda_.17}
  #allocation0 [shape = 'u32[]', space=smem, size = 0x4, offset = 0x4, fixed_abs, tag = 'smem constant byte address 0x4 - core index']
  #allocation1 [shape = 'u32[72,128]{1,0:T(1,128)}', space=vmem, size = 0x9000, scoped, tag = 'internal scratch']
  #allocation2 [shape = 'f32[32,384]{1,0:T(8,128)}', space=vmem, size = 0xc000, scoped, tag = 'scratch operand']
  %s0 = inlined_call_operand.vmem [shape: bf16[32,128], index: 0, kind: input, shape index: {}]
  %s1 = inlined_call_operand.hbm [shape: bf16[128,384], index: 1, kind: input, shape index: {}]
  %s2 = inlined_call_operand.vmem [shape: f32[1,384], index: 2, kind: input, shape index: {}]
  %s3 = inlined_call_operand.vmem [shape: bf16[32,384], index: 3, kind: output, shape index: {}]
  %s4 = sld [smem:[#allocation0]]
  $region34: #{_lambda_.17} parent=0
    _
  %s6 = ssub.s32 1, %s4
  %s7 = scalar_select 0, %s6, %s4
  $region1: #{_lambda_.17} parent=0
    #allocation3 [shape = 'u8[98304]{0}', space=vmem, size = 0x18000, scoped, tag = 'input window, operand 1, single buffered']
    #allocation4 [shape = 's32[1]{0}', space=sflag, size = 0x4, scoped, tag = 'scoped memory for _lambda_.17']
    %8 = vsyncpa [#allocation4], 0
    // Predicated region
    $region2: #{_lambda_.17} parent=1 // pred_check
      _
    $region3: #{_lambda_.17} parent=1 // pred_check_branch
      %10 = sbr.rel (0) target = $region5
    $region4: #{_lambda_.17} parent=1 // pred_region
      _
    $region5: #{_lambda_.17} parent=1 // pred_fallthru
      _
    // Predicated region
    $region6: #{_lambda_.17} parent=1 // pred_check
      _
    $region7: #{_lambda_.17} parent=1 // pred_check_branch
      %12 = sbr.rel (0) target = $region9
    $region8: #{_lambda_.17} parent=1 // pred_region
      %14 = vsyncadd [#allocation4], 0
      %s15 = sshll.u32 %s1, 4
      %s16 = int_to_ptr.hbm [resolvable:$true] %s15
      %s17 = sshll.u32 [#allocation3], 4
      %s18 = int_to_ptr.vmem [resolvable:$true] %s17
      %23 = dma.hbm_to_vmem [thread:$0]  %s16, 3072, %s18, [#allocation4], 192, 192, 12
    $region9: #{_lambda_.17} parent=1 // pred_fallthru
      _
    // Predicated region
    $region10: #{_lambda_.17} parent=1 // pred_check
      _
    $region11: #{_lambda_.17} parent=1 // pred_check_branch
      %25 = sbr.rel (0) target = $region13
    $region12: #{_lambda_.17} parent=1 // pred_region
      _
    $region13: #{_lambda_.17} parent=1 // pred_fallthru
      _
    // Predicated region
    $region14: #{_lambda_.17} parent=1 // pred_check
      _
    $region15: #{_lambda_.17} parent=1 // pred_check_branch
      %27 = sbr.rel (0) target = $region17
    $region16: #{_lambda_.17} parent=1 // pred_region
      %29 = dma.done [#allocation4], 3072
    $region17: #{_lambda_.17} parent=1 // pred_fallthru
      _
    %p30 = scmp.eq.s32.totalorder 0, 0
    // Predicated region
    $region18: #{_lambda_.17} parent=1 // pred_check
      %p31 = pneg %p30
    $region19: #{_lambda_.17} parent=1 // pred_check_branch
      %33 = sbr.rel (%p31) target = $region21
    $region20: #{_lambda_.17} parent=1 // pred_region
      %34 = vst [vmem:[#allocation2] sm:$0xff] 0.0
      %35 = vst [vmem:[#allocation2 + $0x8] sm:$0xff] 0.0
      %36 = vst [vmem:[#allocation2 + $0x10] sm:$0xff] 0.0
      %37 = vst [vmem:[#allocation2 + $0x18] sm:$0xff] 0.0
      %38 = vst [vmem:[#allocation2 + $0x20] sm:$0xff] 0.0
      %39 = vst [vmem:[#allocation2 + $0x28] sm:$0xff] 0.0
      %40 = vst [vmem:[#allocation2 + $0x30] sm:$0xff] 0.0
      %41 = vst [vmem:[#allocation2 + $0x38] sm:$0xff] 0.0
      %42 = vst [vmem:[#allocation2 + $0x40] sm:$0xff] 0.0
      %43 = vst [vmem:[#allocation2 + $0x48] sm:$0xff] 0.0
      %44 = vst [vmem:[#allocation2 + $0x50] sm:$0xff] 0.0
      %45 = vst [vmem:[#allocation2 + $0x58] sm:$0xff] 0.0
    $region21: #{_lambda_.17} parent=1 // pred_fallthru
      _
    %v46 = vld [vmem:[#allocation2] sm:$0xff]
    %v47 = vld [vmem:[#allocation2 + $0x8] sm:$0xff]
    %v48 = vld [vmem:[#allocation2 + $0x10] sm:$0xff]
    %v49 = vld [vmem:[#allocation2 + $0x18] sm:$0xff]
    %v50 = vld [vmem:[#allocation2 + $0x20] sm:$0xff]
    %v51 = vld [vmem:[#allocation2 + $0x28] sm:$0xff]
    %v52 = vld [vmem:[#allocation2 + $0x30] sm:$0xff]
    %v53 = vld [vmem:[#allocation2 + $0x38] sm:$0xff]
    %v54 = vld [vmem:[#allocation2 + $0x40] sm:$0xff]
    %v55 = vld [vmem:[#allocation2 + $0x48] sm:$0xff]
    %v56 = vld [vmem:[#allocation2 + $0x50] sm:$0xff]
    %v57 = vld [vmem:[#allocation2 + $0x58] sm:$0xff]
    %v58 = vld [vmem:[%s0] sm:$0xf]
    %v59 = vld [vmem:[%s0 + $0x4] sm:$0xf]
    %v60 = vld [vmem:[%s0 + $0x8] sm:$0xf]
    %v61 = vld [vmem:[%s0 + $0xc] sm:$0xf]
    %v62 = vld [vmem:[#allocation3] sm:$0xff]
    %v63 = vld [vmem:[#allocation3 + $0x8] sm:$0xf]
    %v64 = vld [vmem:[#allocation3 + $0xc] sm:$0xff]
    %v65 = vld [vmem:[#allocation3 + $0x14] sm:$0xf]
    %v66 = vld [vmem:[#allocation3 + $0x18] sm:$0xff]
    %v67 = vld [vmem:[#allocation3 + $0x20] sm:$0xf]
    %v68 = vld [vmem:[#allocation3 + $0x24] sm:$0xff]
    %v69 = vld [vmem:[#allocation3 + $0x2c] sm:$0xf]
    %v70 = vld [vmem:[#allocation3 + $0x30] sm:$0xff]
    %v71 = vld [vmem:[#allocation3 + $0x38] sm:$0xf]
    %v72 = vld [vmem:[#allocation3 + $0x3c] sm:$0xff]
    %v73 = vld [vmem:[#allocation3 + $0x44] sm:$0xf]
    %v74 = vld [vmem:[#allocation3 + $0x48] sm:$0xff]
    %v75 = vld [vmem:[#allocation3 + $0x50] sm:$0xf]
    %v76 = vld [vmem:[#allocation3 + $0x54] sm:$0xff]
    %v77 = vld [vmem:[#allocation3 + $0x5c] sm:$0xf]
    %v78 = vld [vmem:[#allocation3 + $0x60] sm:$0xff]
    %v79 = vld [vmem:[#allocation3 + $0x68] sm:$0xf]
    %v80 = vld [vmem:[#allocation3 + $0x6c] sm:$0xff]
    %v81 = vld [vmem:[#allocation3 + $0x74] sm:$0xf]
    %v82 = vld [vmem:[#allocation3 + $0x78] sm:$0xff]
    %v83 = vld [vmem:[#allocation3 + $0x80] sm:$0xf]
    %v84 = vld [vmem:[#allocation3 + $0x84] sm:$0xff]
    %v85 = vld [vmem:[#allocation3 + $0x8c] sm:$0xf]
    %v86 = vld [vmem:[#allocation3 + $0x90] sm:$0xff]
    %v87 = vld [vmem:[#allocation3 + $0x98] sm:$0xf]
    %v88 = vld [vmem:[#allocation3 + $0x9c] sm:$0xff]
    %v89 = vld [vmem:[#allocation3 + $0xa4] sm:$0xf]
    %v90 = vld [vmem:[#allocation3 + $0xa8] sm:$0xff]
    %v91 = vld [vmem:[#allocation3 + $0xb0] sm:$0xf]
    %v92 = vld [vmem:[#allocation3 + $0xb4] sm:$0xff]
    %v93 = vld [vmem:[#allocation3 + $0xbc] sm:$0xf]
    %v98 = vunpack.c.l.b16 %v58
    %v99 = vunpack.c.l.b16 %v59
    %v100 = vunpack.c.l.b16 %v60
    %v101 = vunpack.c.l.b16 %v61
    %v102 = vpack.c.b16 %v99, %v98
    %v103 = vpack.c.b16 %v101, %v100
    %v138 = vunpack.c.l.b16 %v62
    %v139 = vunpack.c.h.b16 %v62
    %v140 = vunpack.c.l.b16 %v63
    %v141 = vunpack.c.l.b16 %v64
    %v142 = vunpack.c.h.b16 %v64
    %v143 = vunpack.c.l.b16 %v65
    %v144 = vunpack.c.l.b16 %v66
    %v145 = vunpack.c.h.b16 %v66
    %v146 = vunpack.c.l.b16 %v67
    %v147 = vunpack.c.l.b16 %v68
    %v148 = vunpack.c.h.b16 %v68
    %v149 = vunpack.c.l.b16 %v69
    %v150 = vunpack.c.l.b16 %v70
    %v151 = vunpack.c.h.b16 %v70
    %v152 = vunpack.c.l.b16 %v71
    %v153 = vunpack.c.l.b16 %v72
    %v154 = vunpack.c.h.b16 %v72
    %v155 = vunpack.c.l.b16 %v73
    %v156 = vunpack.c.l.b16 %v74
    %v157 = vunpack.c.h.b16 %v74
    %v158 = vunpack.c.l.b16 %v75
    %v159 = vunpack.c.l.b16 %v76
    %v160 = vunpack.c.h.b16 %v76
    %v161 = vunpack.c.l.b16 %v77
    %v162 = vunpack.c.l.b16 %v78
    %v163 = vunpack.c.h.b16 %v78
    %v164 = vunpack.c.l.b16 %v79
    %v165 = vunpack.c.l.b16 %v80
    %v166 = vunpack.c.h.b16 %v80
    %v167 = vunpack.c.l.b16 %v81
    %v168 = vunpack.c.l.b16 %v82
    %v169 = vunpack.c.h.b16 %v82
    %v170 = vunpack.c.l.b16 %v83
    %v171 = vunpack.c.l.b16 %v84
    %v172 = vunpack.c.h.b16 %v84
    %v173 = vunpack.c.l.b16 %v85
    %v174 = vunpack.c.l.b16 %v86
    %v175 = vunpack.c.h.b16 %v86
    %v176 = vunpack.c.l.b16 %v87
    %v177 = vunpack.c.l.b16 %v88
    %v178 = vunpack.c.h.b16 %v88
    %v179 = vunpack.c.l.b16 %v89
    %v180 = vunpack.c.l.b16 %v90
    %v181 = vunpack.c.h.b16 %v90
    %v182 = vunpack.c.l.b16 %v91
    %v183 = vunpack.c.l.b16 %v92
    %v184 = vunpack.c.h.b16 %v92
    %v185 = vunpack.c.l.b16 %v93
    %v186 = vpack.c.b16 %v141, %v138
    %v187 = vpack.c.b16 %v142, %v139
    %v188 = vpack.c.b16 %v143, %v140
    %v189 = vpack.c.b16 %v147, %v144
    %v190 = vpack.c.b16 %v148, %v145
    %v191 = vpack.c.b16 %v149, %v146
    %v192 = vpack.c.b16 %v153, %v150
    %v193 = vpack.c.b16 %v154, %v151
    %v194 = vpack.c.b16 %v155, %v152
    %v195 = vpack.c.b16 %v159, %v156
    %v196 = vpack.c.b16 %v160, %v157
    %v197 = vpack.c.b16 %v161, %v158
    %v198 = vpack.c.b16 %v165, %v162
    %v199 = vpack.c.b16 %v166, %v163
    %v200 = vpack.c.b16 %v167, %v164
    %v201 = vpack.c.b16 %v171, %v168
    %v202 = vpack.c.b16 %v172, %v169
    %v203 = vpack.c.b16 %v173, %v170
    %v204 = vpack.c.b16 %v177, %v174
    %v205 = vpack.c.b16 %v178, %v175
    %v206 = vpack.c.b16 %v179, %v176
    %v207 = vpack.c.b16 %v183, %v180
    %v208 = vpack.c.b16 %v184, %v181
    %v209 = vpack.c.b16 %v185, %v182
    %234 = vmatpush.bf16.msra.mxu0 %v207
    %235 = vmatpush.bf16.msra.mxu0 %v204
    %236 = vmatpush.bf16.msra.mxu0 %v201
    %237 = vmatpush.bf16.msra.mxu0 %v198
    %238 = vmatpush.bf16.msra.mxu0 %v195
    %239 = vmatpush.bf16.msra.mxu0 %v192
    %240 = vmatpush.bf16.msra.mxu0 %v189
    %241 = vmatpush.bf16.msra.mxu0 %v186
    %242 = vmatmul.bf16.gmra.mxu0 %v102
    %v243 = vpop.f32.mrf.mxu0
    %v244 = vadd.f32 0.0, %v243
    %v245 = vpop.f32.mrf.mxu0
    %v246 = vadd.f32 0.0, %v245
    %247 = vmatmul.bf16.gmra.mxu0 %v103
    %v248 = vpop.f32.mrf.mxu0
    %v249 = vadd.f32 0.0, %v248
    %v250 = vpop.f32.mrf.mxu0
    %v251 = vadd.f32 0.0, %v250
    %252 = vdwg.mxu0
    %253 = vmatpush.bf16.msra.mxu0 %v208
    %254 = vmatpush.bf16.msra.mxu0 %v205
    %255 = vmatpush.bf16.msra.mxu0 %v202
    %256 = vmatpush.bf16.msra.mxu0 %v199
    %257 = vmatpush.bf16.msra.mxu0 %v196
    %258 = vmatpush.bf16.msra.mxu0 %v193
    %259 = vmatpush.bf16.msra.mxu0 %v190
    %260 = vmatpush.bf16.msra.mxu0 %v187
    %261 = vmatmul.bf16.gmra.mxu0 %v102
    %v262 = vpop.f32.mrf.mxu0
    %v263 = vadd.f32 0.0, %v262
    %v264 = vpop.f32.mrf.mxu0
    %v265 = vadd.f32 0.0, %v264
    %266 = vmatmul.bf16.gmra.mxu0 %v103
    %v267 = vpop.f32.mrf.mxu0
    %v268 = vadd.f32 0.0, %v267
    %v269 = vpop.f32.mrf.mxu0
    %v270 = vadd.f32 0.0, %v269
    %271 = vdwg.mxu0
    %272 = vmatpush.bf16.msra.mxu0 %v209
    %273 = vmatpush.bf16.msra.mxu0 %v206
    %274 = vmatpush.bf16.msra.mxu0 %v203
    %275 = vmatpush.bf16.msra.mxu0 %v200
    %276 = vmatpush.bf16.msra.mxu0 %v197
    %277 = vmatpush.bf16.msra.mxu0 %v194
    %278 = vmatpush.bf16.msra.mxu0 %v191
    %279 = vmatpush.bf16.msra.mxu0 %v188
    %280 = vmatmul.bf16.gmra.mxu0 %v102
    %v281 = vpop.f32.mrf.mxu0
    %v282 = vadd.f32 0.0, %v281
    %v283 = vpop.f32.mrf.mxu0
    %v284 = vadd.f32 0.0, %v283
    %285 = vmatmul.bf16.gmra.mxu0 %v103
    %v286 = vpop.f32.mrf.mxu0
    %v287 = vadd.f32 0.0, %v286
    %v288 = vpop.f32.mrf.mxu0
    %v289 = vadd.f32 0.0, %v288
    %290 = vdwg.mxu0
    %v291 = vadd.f32 %v46, %v244
    %v292 = vadd.f32 %v47, %v263
    %v293 = vadd.f32 %v48, %v282
    %v294 = vadd.f32 %v49, %v246
    %v295 = vadd.f32 %v50, %v265
    %v296 = vadd.f32 %v51, %v284
    %v297 = vadd.f32 %v52, %v249
    %v298 = vadd.f32 %v53, %v268
    %v299 = vadd.f32 %v54, %v287
    %v300 = vadd.f32 %v55, %v251
    %v301 = vadd.f32 %v56, %v270
    %v302 = vadd.f32 %v57, %v289
    %303 = vst [vmem:[#allocation2] sm:$0xff] %v291
    %304 = vst [vmem:[#allocation2 + $0x8] sm:$0xff] %v292
    %305 = vst [vmem:[#allocation2 + $0x10] sm:$0xff] %v293
    %306 = vst [vmem:[#allocation2 + $0x18] sm:$0xff] %v294
    %307 = vst [vmem:[#allocation2 + $0x20] sm:$0xff] %v295
    %308 = vst [vmem:[#allocation2 + $0x28] sm:$0xff] %v296
    %309 = vst [vmem:[#allocation2 + $0x30] sm:$0xff] %v297
    %310 = vst [vmem:[#allocation2 + $0x38] sm:$0xff] %v298
    %311 = vst [vmem:[#allocation2 + $0x40] sm:$0xff] %v299
    %312 = vst [vmem:[#allocation2 + $0x48] sm:$0xff] %v300
    %313 = vst [vmem:[#allocation2 + $0x50] sm:$0xff] %v301
    %314 = vst [vmem:[#allocation2 + $0x58] sm:$0xff] %v302
    // Predicated region
    $region22: #{_lambda_.17} parent=1 // pred_check
      %p315 = pneg %p30
    $region23: #{_lambda_.17} parent=1 // pred_check_branch
      %317 = sbr.rel (%p315) target = $region25
    $region24: #{_lambda_.17} parent=1 // pred_region
      %v318 = vld [vmem:[#allocation2] sm:$0xff]
      %v319 = vld [vmem:[#allocation2 + $0x8] sm:$0xff]
      %v320 = vld [vmem:[#allocation2 + $0x10] sm:$0xff]
      %v321 = vld [vmem:[#allocation2 + $0x18] sm:$0xff]
      %v322 = vld [vmem:[#allocation2 + $0x20] sm:$0xff]
      %v323 = vld [vmem:[#allocation2 + $0x28] sm:$0xff]
      %v324 = vld [vmem:[#allocation2 + $0x30] sm:$0xff]
      %v325 = vld [vmem:[#allocation2 + $0x38] sm:$0xff]
      %v326 = vld [vmem:[#allocation2 + $0x40] sm:$0xff]
      %v327 = vld [vmem:[#allocation2 + $0x48] sm:$0xff]
      %v328 = vld [vmem:[#allocation2 + $0x50] sm:$0xff]
      %v329 = vld [vmem:[#allocation2 + $0x58] sm:$0xff]
      %v330 = vld [vmem:[%s2] sm:$0x7]
      %v332 = vperm.slane %v330, 0
      %v333 = vperm.slane %v330, 1
      %v334 = vperm.slane %v330, 2
      %v338 = vadd.f32 %v318, %v332
      %v339 = vadd.f32 %v319, %v333
      %v340 = vadd.f32 %v320, %v334
      %v341 = vadd.f32 %v321, %v332
      %v342 = vadd.f32 %v322, %v333
      %v343 = vadd.f32 %v323, %v334
      %v344 = vadd.f32 %v324, %v332
      %v345 = vadd.f32 %v325, %v333
      %v346 = vadd.f32 %v326, %v334
      %v347 = vadd.f32 %v327, %v332
      %v348 = vadd.f32 %v328, %v333
      %v349 = vadd.f32 %v329, %v334
      %v350 = vpack.c.bf16 %v339, %v338
      %v351 = vpack.c.bf16 %v340, %v340
      %v352 = vpack.c.bf16 %v342, %v341
      %v353 = vpack.c.bf16 %v343, %v343
      %v354 = vpack.c.bf16 %v345, %v344
      %v355 = vpack.c.bf16 %v346, %v346
      %v356 = vpack.c.bf16 %v348, %v347
      %v357 = vpack.c.bf16 %v349, %v349
      %358 = vst [vmem:[%s3] sm:$0xff] %v350
      %359 = vst [vmem:[%s3 + $0x8] sm:$0xf] %v351
      %360 = vst [vmem:[%s3 + $0xc] sm:$0xff] %v352
      %361 = vst [vmem:[%s3 + $0x14] sm:$0xf] %v353
      %362 = vst [vmem:[%s3 + $0x18] sm:$0xff] %v354
      %363 = vst [vmem:[%s3 + $0x20] sm:$0xf] %v355
      %364 = vst [vmem:[%s3 + $0x24] sm:$0xff] %v356
      %365 = vst [vmem:[%s3 + $0x2c] sm:$0xf] %v357
    $region25: #{_lambda_.17} parent=1 // pred_fallthru
      _
    // Predicated region
    $region26: #{_lambda_.17} parent=1 // pred_check
      _
    $region27: #{_lambda_.17} parent=1 // pred_check_branch
      %367 = sbr.rel (0) target = $region29
    $region28: #{_lambda_.17} parent=1 // pred_region
      _
    $region29: #{_lambda_.17} parent=1 // pred_fallthru
      _
    // Predicated region
    $region30: #{_lambda_.17} parent=1 // pred_check
      _
    $region31: #{_lambda_.17} parent=1 // pred_check_branch
      %369 = sbr.rel (0) target = $region33
    $region32: #{_lambda_.17} parent=1 // pred_region
      _
    $region33: #{_lambda_.17} parent=1 // pred_fallthru
      _
    %370 = vsyncpa [#allocation4], 1

// kernel: _lambda_.16
$region0: #{_lambda_.16}
  #allocation0 [shape = 'u32[]', space=smem, size = 0x4, offset = 0x4, fixed_abs, tag = 'smem constant byte address 0x4 - core index']
  #allocation1 [shape = 'u32[72,128]{1,0:T(1,128)}', space=vmem, size = 0x9000, scoped, tag = 'internal scratch']
  #allocation2 [shape = 'f32[32,128]{1,0:T(8,128)}', space=vmem, size = 0x4000, scoped, tag = 'scratch operand']
  %s0 = inlined_call_operand.vmem [shape: bf16[32,256], index: 0, kind: input, shape index: {}]
  %s1 = inlined_call_operand.hbm [shape: bf16[256,128], index: 1, kind: input, shape index: {}]
  %s2 = inlined_call_operand.vmem [shape: f32[1,128], index: 2, kind: input, shape index: {}]
  %s3 = inlined_call_operand.vmem [shape: bf16[32,128], index: 3, kind: input, shape index: {}]
  %s4 = inlined_call_operand.vmem [shape: f32[1,128], index: 4, kind: input, shape index: {}]
  %s5 = inlined_call_operand.vmem [shape: f32[1,128], index: 5, kind: input, shape index: {}]
  %s6 = inlined_call_operand.vmem [shape: bf16[32,128], index: 6, kind: output, shape index: {}]
  %s7 = sld [smem:[#allocation0]]
  $region46: #{_lambda_.16} parent=0
    _
  %s9 = ssub.s32 1, %s7
  %s10 = scalar_select 0, %s9, %s7
  $region1: #{_lambda_.16} parent=0
    #allocation3 [shape = 'u8[65536]{0}', space=vmem, size = 0x10000, scoped, tag = 'input window, operand 1, single buffered']
    #allocation4 [shape = 's32[1]{0}', space=sflag, size = 0x4, scoped, tag = 'scoped memory for _lambda_.16']
    %11 = vsyncpa [#allocation4], 0
    // Predicated region
    $region2: #{_lambda_.16} parent=1 // pred_check
      _
    $region3: #{_lambda_.16} parent=1 // pred_check_branch
      %13 = sbr.rel (0) target = $region5
    $region4: #{_lambda_.16} parent=1 // pred_region
      _
    $region5: #{_lambda_.16} parent=1 // pred_fallthru
      _
    // Predicated region
    $region6: #{_lambda_.16} parent=1 // pred_check
      _
    $region7: #{_lambda_.16} parent=1 // pred_check_branch
      %15 = sbr.rel (0) target = $region9
    $region8: #{_lambda_.16} parent=1 // pred_region
      %17 = vsyncadd [#allocation4], 0
      %s18 = sshll.u32 %s1, 4
      %s19 = int_to_ptr.hbm [resolvable:$true] %s18
      %s20 = sshll.u32 [#allocation3], 4
      %s21 = int_to_ptr.vmem [resolvable:$true] %s20
      %26 = dma.hbm_to_vmem [thread:$0]  %s19, 2048, %s21, [#allocation4], 64, 64, 4
    $region9: #{_lambda_.16} parent=1 // pred_fallthru
      _
    // Predicated region
    $region10: #{_lambda_.16} parent=1 // pred_check
      _
    $region11: #{_lambda_.16} parent=1 // pred_check_branch
      %28 = sbr.rel (0) target = $region13
    $region12: #{_lambda_.16} parent=1 // pred_region
      _
    $region13: #{_lambda_.16} parent=1 // pred_fallthru
      _
    // Predicated region
    $region14: #{_lambda_.16} parent=1 // pred_check
      _
    $region15: #{_lambda_.16} parent=1 // pred_check_branch
      %30 = sbr.rel (0) target = $region17
    $region16: #{_lambda_.16} parent=1 // pred_region
      _
    $region17: #{_lambda_.16} parent=1 // pred_fallthru
      _
    // Predicated region
    $region18: #{_lambda_.16} parent=1 // pred_check
      _
    $region19: #{_lambda_.16} parent=1 // pred_check_branch
      %32 = sbr.rel (0) target = $region21
    $region20: #{_lambda_.16} parent=1 // pred_region
      _
    $region21: #{_lambda_.16} parent=1 // pred_fallthru
      _
    // Predicated region
    $region22: #{_lambda_.16} parent=1 // pred_check
      _
    $region23: #{_lambda_.16} parent=1 // pred_check_branch
      %34 = sbr.rel (0) target = $region25
    $region24: #{_lambda_.16} parent=1 // pred_region
      _
    $region25: #{_lambda_.16} parent=1 // pred_fallthru
      _
    // Predicated region
    $region26: #{_lambda_.16} parent=1 // pred_check
      _
    $region27: #{_lambda_.16} parent=1 // pred_check_branch
      %36 = sbr.rel (0) target = $region29
    $region28: #{_lambda_.16} parent=1 // pred_region
      %38 = dma.done [#allocation4], 2048
    $region29: #{_lambda_.16} parent=1 // pred_fallthru
      _
    %p39 = scmp.eq.s32.totalorder 0, 0
    // Predicated region
    $region30: #{_lambda_.16} parent=1 // pred_check
      %p40 = pneg %p39
    $region31: #{_lambda_.16} parent=1 // pred_check_branch
      %42 = sbr.rel (%p40) target = $region33
    $region32: #{_lambda_.16} parent=1 // pred_region
      %43 = vst [vmem:[#allocation2] sm:$0xff] 0.0
      %44 = vst [vmem:[#allocation2 + $0x8] sm:$0xff] 0.0
      %45 = vst [vmem:[#allocation2 + $0x10] sm:$0xff] 0.0
      %46 = vst [vmem:[#allocation2 + $0x18] sm:$0xff] 0.0
    $region33: #{_lambda_.16} parent=1 // pred_fallthru
      _
    %v47 = vld [vmem:[#allocation2] sm:$0xff]
    %v48 = vld [vmem:[#allocation2 + $0x8] sm:$0xff]
    %v49 = vld [vmem:[#allocation2 + $0x10] sm:$0xff]
    %v50 = vld [vmem:[#allocation2 + $0x18] sm:$0xff]
    %v51 = vld [vmem:[%s0] sm:$0xff]
    %v52 = vld [vmem:[%s0 + $0x8] sm:$0xff]
    %v53 = vld [vmem:[%s0 + $0x10] sm:$0xff]
    %v54 = vld [vmem:[%s0 + $0x18] sm:$0xff]
    %v55 = vld [vmem:[#allocation3] sm:$0xf]
    %v56 = vld [vmem:[#allocation3 + $0x4] sm:$0xf]
    %v57 = vld [vmem:[#allocation3 + $0x8] sm:$0xf]
    %v58 = vld [vmem:[#allocation3 + $0xc] sm:$0xf]
    %v59 = vld [vmem:[#allocation3 + $0x10] sm:$0xf]
    %v60 = vld [vmem:[#allocation3 + $0x14] sm:$0xf]
    %v61 = vld [vmem:[#allocation3 + $0x18] sm:$0xf]
    %v62 = vld [vmem:[#allocation3 + $0x1c] sm:$0xf]
    %v63 = vld [vmem:[#allocation3 + $0x20] sm:$0xf]
    %v64 = vld [vmem:[#allocation3 + $0x24] sm:$0xf]
    %v65 = vld [vmem:[#allocation3 + $0x28] sm:$0xf]
    %v66 = vld [vmem:[#allocation3 + $0x2c] sm:$0xf]
    %v67 = vld [vmem:[#allocation3 + $0x30] sm:$0xf]
    %v68 = vld [vmem:[#allocation3 + $0x34] sm:$0xf]
    %v69 = vld [vmem:[#allocation3 + $0x38] sm:$0xf]
    %v70 = vld [vmem:[#allocation3 + $0x3c] sm:$0xf]
    %v71 = vld [vmem:[#allocation3 + $0x40] sm:$0xf]
    %v72 = vld [vmem:[#allocation3 + $0x44] sm:$0xf]
    %v73 = vld [vmem:[#allocation3 + $0x48] sm:$0xf]
    %v74 = vld [vmem:[#allocation3 + $0x4c] sm:$0xf]
    %v75 = vld [vmem:[#allocation3 + $0x50] sm:$0xf]
    %v76 = vld [vmem:[#allocation3 + $0x54] sm:$0xf]
    %v77 = vld [vmem:[#allocation3 + $0x58] sm:$0xf]
    %v78 = vld [vmem:[#allocation3 + $0x5c] sm:$0xf]
    %v79 = vld [vmem:[#allocation3 + $0x60] sm:$0xf]
    %v80 = vld [vmem:[#allocation3 + $0x64] sm:$0xf]
    %v81 = vld [vmem:[#allocation3 + $0x68] sm:$0xf]
    %v82 = vld [vmem:[#allocation3 + $0x6c] sm:$0xf]
    %v83 = vld [vmem:[#allocation3 + $0x70] sm:$0xf]
    %v84 = vld [vmem:[#allocation3 + $0x74] sm:$0xf]
    %v85 = vld [vmem:[#allocation3 + $0x78] sm:$0xf]
    %v86 = vld [vmem:[#allocation3 + $0x7c] sm:$0xf]
    %v91 = vunpack.c.l.b16 %v51
    %v92 = vunpack.c.h.b16 %v51
    %v93 = vunpack.c.l.b16 %v52
    %v94 = vunpack.c.h.b16 %v52
    %v95 = vunpack.c.l.b16 %v53
    %v96 = vunpack.c.h.b16 %v53
    %v97 = vunpack.c.l.b16 %v54
    %v98 = vunpack.c.h.b16 %v54
    %v99 = vpack.c.b16 %v93, %v91
    %v100 = vpack.c.b16 %v94, %v92
    %v101 = vpack.c.b16 %v97, %v95
    %v102 = vpack.c.b16 %v98, %v96
    %v139 = vunpack.c.l.b16 %v55
    %v140 = vunpack.c.l.b16 %v56
    %v141 = vunpack.c.l.b16 %v57
    %v142 = vunpack.c.l.b16 %v58
    %v143 = vunpack.c.l.b16 %v59
    %v144 = vunpack.c.l.b16 %v60
    %v145 = vunpack.c.l.b16 %v61
    %v146 = vunpack.c.l.b16 %v62
    %v147 = vunpack.c.l.b16 %v63
    %v148 = vunpack.c.l.b16 %v64
    %v149 = vunpack.c.l.b16 %v65
    %v150 = vunpack.c.l.b16 %v66
    %v151 = vunpack.c.l.b16 %v67
    %v152 = vunpack.c.l.b16 %v68
    %v153 = vunpack.c.l.b16 %v69
    %v154 = vunpack.c.l.b16 %v70
    %v155 = vunpack.c.l.b16 %v71
    %v156 = vunpack.c.l.b16 %v72
    %v157 = vunpack.c.l.b16 %v73
    %v158 = vunpack.c.l.b16 %v74
    %v159 = vunpack.c.l.b16 %v75
    %v160 = vunpack.c.l.b16 %v76
    %v161 = vunpack.c.l.b16 %v77
    %v162 = vunpack.c.l.b16 %v78
    %v163 = vunpack.c.l.b16 %v79
    %v164 = vunpack.c.l.b16 %v80
    %v165 = vunpack.c.l.b16 %v81
    %v166 = vunpack.c.l.b16 %v82
    %v167 = vunpack.c.l.b16 %v83
    %v168 = vunpack.c.l.b16 %v84
    %v169 = vunpack.c.l.b16 %v85
    %v170 = vunpack.c.l.b16 %v86
    %v171 = vpack.c.b16 %v140, %v139
    %v172 = vpack.c.b16 %v142, %v141
    %v173 = vpack.c.b16 %v144, %v143
    %v174 = vpack.c.b16 %v146, %v145
    %v175 = vpack.c.b16 %v148, %v147
    %v176 = vpack.c.b16 %v150, %v149
    %v177 = vpack.c.b16 %v152, %v151
    %v178 = vpack.c.b16 %v154, %v153
    %v179 = vpack.c.b16 %v156, %v155
    %v180 = vpack.c.b16 %v158, %v157
    %v181 = vpack.c.b16 %v160, %v159
    %v182 = vpack.c.b16 %v162, %v161
    %v183 = vpack.c.b16 %v164, %v163
    %v184 = vpack.c.b16 %v166, %v165
    %v185 = vpack.c.b16 %v168, %v167
    %v186 = vpack.c.b16 %v170, %v169
    %203 = vmatpush.bf16.msra.mxu0 %v178
    %204 = vmatpush.bf16.msra.mxu0 %v177
    %205 = vmatpush.bf16.msra.mxu0 %v176
    %206 = vmatpush.bf16.msra.mxu0 %v175
    %207 = vmatpush.bf16.msra.mxu0 %v174
    %208 = vmatpush.bf16.msra.mxu0 %v173
    %209 = vmatpush.bf16.msra.mxu0 %v172
    %210 = vmatpush.bf16.msra.mxu0 %v171
    %211 = vmatmul.bf16.gmra.mxu0 %v99
    %v212 = vpop.f32.mrf.mxu0
    %v213 = vadd.f32 0.0, %v212
    %v214 = vpop.f32.mrf.mxu0
    %v215 = vadd.f32 0.0, %v214
    %216 = vmatmul.bf16.gmra.mxu0 %v101
    %v217 = vpop.f32.mrf.mxu0
    %v218 = vadd.f32 0.0, %v217
    %v219 = vpop.f32.mrf.mxu0
    %v220 = vadd.f32 0.0, %v219
    %221 = vdwg.mxu0
    %222 = vmatpush.bf16.msra.mxu0 %v186
    %223 = vmatpush.bf16.msra.mxu0 %v185
    %224 = vmatpush.bf16.msra.mxu0 %v184
    %225 = vmatpush.bf16.msra.mxu0 %v183
    %226 = vmatpush.bf16.msra.mxu0 %v182
    %227 = vmatpush.bf16.msra.mxu0 %v181
    %228 = vmatpush.bf16.msra.mxu0 %v180
    %229 = vmatpush.bf16.msra.mxu0 %v179
    %230 = vmatmul.bf16.gmra.mxu0 %v100
    %v231 = vpop.f32.mrf.mxu0
    %v232 = vadd.f32 %v213, %v231
    %v233 = vpop.f32.mrf.mxu0
    %v234 = vadd.f32 %v215, %v233
    %235 = vmatmul.bf16.gmra.mxu0 %v102
    %v236 = vpop.f32.mrf.mxu0
    %v237 = vadd.f32 %v218, %v236
    %v238 = vpop.f32.mrf.mxu0
    %v239 = vadd.f32 %v220, %v238
    %240 = vdwg.mxu0
    %v241 = vadd.f32 %v47, %v232
    %v242 = vadd.f32 %v48, %v234
    %v243 = vadd.f32 %v49, %v237
    %v244 = vadd.f32 %v50, %v239
    %245 = vst [vmem:[#allocation2] sm:$0xff] %v241
    %246 = vst [vmem:[#allocation2 + $0x8] sm:$0xff] %v242
    %247 = vst [vmem:[#allocation2 + $0x10] sm:$0xff] %v243
    %248 = vst [vmem:[#allocation2 + $0x18] sm:$0xff] %v244
    // Predicated region
    $region34: #{_lambda_.16} parent=1 // pred_check
      %p249 = pneg %p39
    $region35: #{_lambda_.16} parent=1 // pred_check_branch
      %251 = sbr.rel (%p249) target = $region37
    $region36: #{_lambda_.16} parent=1 // pred_region
      %v252 = vld [vmem:[#allocation2] sm:$0xff]
      %v253 = vld [vmem:[#allocation2 + $0x8] sm:$0xff]
      %v254 = vld [vmem:[#allocation2 + $0x10] sm:$0xff]
      %v255 = vld [vmem:[#allocation2 + $0x18] sm:$0xff]
      %v256 = vld [vmem:[%s2] sm:$0x1]
      %v258 = vperm.slane %v256, 0
      %v260 = vadd.f32 %v252, %v258
      %v261 = vadd.f32 %v253, %v258
      %v262 = vadd.f32 %v254, %v258
      %v263 = vadd.f32 %v255, %v258
      %v264 = vld [vmem:[%s3] sm:$0xf]
      %v265 = vld [vmem:[%s3 + $0x4] sm:$0xf]
      %v266 = vld [vmem:[%s3 + $0x8] sm:$0xf]
      %v267 = vld [vmem:[%s3 + $0xc] sm:$0xf]
      %v268 = vunpack.c.l.bf16 %v264
      %v269 = vunpack.c.l.bf16 %v265
      %v270 = vunpack.c.l.bf16 %v266
      %v271 = vunpack.c.l.bf16 %v267
      %v272 = vadd.f32 %v260, %v268
      %v273 = vadd.f32 %v261, %v269
      %v274 = vadd.f32 %v262, %v270
      %v275 = vadd.f32 %v263, %v271
      %276 = vadd.xlane.f32.xlu0 %v272
      %v277 = vpop.xlane.xlu0 %276
      %278 = vadd.xlane.f32.xlu0 %v273
      %v279 = vpop.xlane.xlu0 %278
      %280 = vadd.xlane.f32.xlu0 %v274
      %v281 = vpop.xlane.xlu0 %280
      %282 = vadd.xlane.f32.xlu0 %v275
      %v283 = vpop.xlane.xlu0 %282
      %v284 = vrcp.pop 128.0
      %v285 = vmul.f32 128.0, %v284
      %v286 = vsub.f32 1.0, %v285
      %v287 = vmul.f32 %v284, %v286
      %v288 = vadd.f32 %v284, %v287
      %vm289 = vweird.f32 %v284
      %v290 = vsel %vm289, %v284, %v288
      %v291 = vmul.f32 %v277, %v290
      %v292 = vmul.f32 %v279, %v290
      %v293 = vmul.f32 %v281, %v290
      %v294 = vmul.f32 %v283, %v290
      %v295 = vsub.f32 %v272, %v291
      %v296 = vsub.f32 %v273, %v292
      %v297 = vsub.f32 %v274, %v293
      %v298 = vsub.f32 %v275, %v294
      %v299 = vmul.f32 %v295, %v295
      %v300 = vmul.f32 %v296, %v296
      %v301 = vmul.f32 %v297, %v297
      %v302 = vmul.f32 %v298, %v298
      %303 = vadd.xlane.f32.xlu0 %v299
      %v304 = vpop.xlane.xlu0 %303
      %305 = vadd.xlane.f32.xlu0 %v300
      %v306 = vpop.xlane.xlu0 %305
      %307 = vadd.xlane.f32.xlu0 %v301
      %v308 = vpop.xlane.xlu0 %307
      %309 = vadd.xlane.f32.xlu0 %v302
      %v310 = vpop.xlane.xlu0 %309
      %v311 = vmul.f32 %v304, %v290
      %v312 = vmul.f32 %v306, %v290
      %v313 = vmul.f32 %v308, %v290
      %v314 = vmul.f32 %v310, %v290
      %v315 = vadd.f32 %v311, 1e-12
      %v316 = vadd.f32 %v312, 1e-12
      %v317 = vadd.f32 %v313, 1e-12
      %v318 = vadd.f32 %v314, 1e-12
      %v319 = vrsqrt.pop %v315
      %v320 = vmul.f32 %v319, %v315
      %v321 = vmul.f32 %v320, %v319
      %v322 = vmul.f32 0.5, %v321
      %v323 = vsub.f32 1.5, %v322
      %v324 = vmul.f32 %v319, %v323
      %vm325 = vweird.f32 %v315
      %vm326 = vweird.f32 %v319
      %vm327 = vmor %vm325, %vm326
      %v328 = vsel %vm327, %v319, %v324
      %v329 = vrsqrt.pop %v316
      %v330 = vmul.f32 %v329, %v316
      %v331 = vmul.f32 %v330, %v329
      %v332 = vmul.f32 0.5, %v331
      %v333 = vsub.f32 1.5, %v332
      %v334 = vmul.f32 %v329, %v333
      %vm335 = vweird.f32 %v316
      %vm336 = vweird.f32 %v329
      %vm337 = vmor %vm335, %vm336
      %v338 = vsel %vm337, %v329, %v334
      %v339 = vrsqrt.pop %v317
      %v340 = vmul.f32 %v339, %v317
      %v341 = vmul.f32 %v340, %v339
      %v342 = vmul.f32 0.5, %v341
      %v343 = vsub.f32 1.5, %v342
      %v344 = vmul.f32 %v339, %v343
      %vm345 = vweird.f32 %v317
      %vm346 = vweird.f32 %v339
      %vm347 = vmor %vm345, %vm346
      %v348 = vsel %vm347, %v339, %v344
      %v349 = vrsqrt.pop %v318
      %v350 = vmul.f32 %v349, %v318
      %v351 = vmul.f32 %v350, %v349
      %v352 = vmul.f32 0.5, %v351
      %v353 = vsub.f32 1.5, %v352
      %v354 = vmul.f32 %v349, %v353
      %vm355 = vweird.f32 %v318
      %vm356 = vweird.f32 %v349
      %vm357 = vmor %vm355, %vm356
      %v358 = vsel %vm357, %v349, %v354
      %v359 = vmul.f32 %v295, %v328
      %v360 = vmul.f32 %v296, %v338
      %v361 = vmul.f32 %v297, %v348
      %v362 = vmul.f32 %v298, %v358
      %v363 = vld [vmem:[%s4] sm:$0x1]
      %v365 = vperm.slane %v363, 0
      %v367 = vmul.f32 %v359, %v365
      %v368 = vmul.f32 %v360, %v365
      %v369 = vmul.f32 %v361, %v365
      %v370 = vmul.f32 %v362, %v365
      %v371 = vld [vmem:[%s5] sm:$0x1]
      %v373 = vperm.slane %v371, 0
      %v375 = vadd.f32 %v367, %v373
      %v376 = vadd.f32 %v368, %v373
      %v377 = vadd.f32 %v369, %v373
      %v378 = vadd.f32 %v370, %v373
      %v379 = vpack.c.bf16 %v375, %v375
      %v380 = vpack.c.bf16 %v376, %v376
      %v381 = vpack.c.bf16 %v377, %v377
      %v382 = vpack.c.bf16 %v378, %v378
      %383 = vst [vmem:[%s6] sm:$0xf] %v379
      %384 = vst [vmem:[%s6 + $0x4] sm:$0xf] %v380
      %385 = vst [vmem:[%s6 + $0x8] sm:$0xf] %v381
      %386 = vst [vmem:[%s6 + $0xc] sm:$0xf] %v382
    $region37: #{_lambda_.16} parent=1 // pred_fallthru
      _
    // Predicated region
    $region38: #{_lambda_.16} parent=1 // pred_check
      _
    $region39: #{_lambda_.16} parent=1 // pred_check_branch
      %388 = sbr.rel (0) target = $region41
    $region40: #{_lambda_.16} parent=1 // pred_region
      _
    $region41: #{_lambda_.16} parent=1 // pred_fallthru
      _
    // Predicated region
    $region42: #{_lambda_.16} parent=1 // pred_check
      _
    $region43: #{_lambda_.16} parent=1 // pred_check_branch
      %390 = sbr.rel (0) target = $region45
    $region44: #{_lambda_.16} parent=1 // pred_region
      _
    $region45: #{_lambda_.16} parent=1 // pred_fallthru
      _
    %391 = vsyncpa [#allocation4], 1

// kernel: _lambda_.19
$region0: #{_lambda_.19}
  #allocation0 [shape = 'u32[]', space=smem, size = 0x4, offset = 0x4, fixed_abs, tag = 'smem constant byte address 0x4 - core index']
  #allocation1 [shape = 'u32[72,128]{1,0:T(1,128)}', space=vmem, size = 0x9000, scoped, tag = 'internal scratch']
  #allocation2 [shape = 'f32[32,128]{1,0:T(8,128)}', space=vmem, size = 0x4000, scoped, tag = 'scratch operand']
  %s0 = inlined_call_operand.vmem [shape: bf16[32,128], index: 0, kind: input, shape index: {}]
  %s1 = inlined_call_operand.hbm [shape: bf16[128,128], index: 1, kind: input, shape index: {}]
  %s2 = inlined_call_operand.vmem [shape: f32[1,128], index: 2, kind: input, shape index: {}]
  %s3 = inlined_call_operand.vmem [shape: bf16[32,128], index: 3, kind: input, shape index: {}]
  %s4 = inlined_call_operand.vmem [shape: f32[1,128], index: 4, kind: input, shape index: {}]
  %s5 = inlined_call_operand.vmem [shape: f32[1,128], index: 5, kind: input, shape index: {}]
  %s6 = inlined_call_operand.vmem [shape: bf16[32,128], index: 6, kind: output, shape index: {}]
  %s7 = sld [smem:[#allocation0]]
  $region46: #{_lambda_.19} parent=0
    _
  %s9 = ssub.s32 1, %s7
  %s10 = scalar_select 0, %s9, %s7
  $region1: #{_lambda_.19} parent=0
    #allocation3 [shape = 'u8[32768]{0}', space=vmem, size = 0x8000, scoped, tag = 'input window, operand 1, single buffered']
    #allocation4 [shape = 's32[1]{0}', space=sflag, size = 0x4, scoped, tag = 'scoped memory for _lambda_.19']
    %11 = vsyncpa [#allocation4], 0
    // Predicated region
    $region2: #{_lambda_.19} parent=1 // pred_check
      _
    $region3: #{_lambda_.19} parent=1 // pred_check_branch
      %13 = sbr.rel (0) target = $region5
    $region4: #{_lambda_.19} parent=1 // pred_region
      _
    $region5: #{_lambda_.19} parent=1 // pred_fallthru
      _
    // Predicated region
    $region6: #{_lambda_.19} parent=1 // pred_check
      _
    $region7: #{_lambda_.19} parent=1 // pred_check_branch
      %15 = sbr.rel (0) target = $region9
    $region8: #{_lambda_.19} parent=1 // pred_region
      %17 = vsyncadd [#allocation4], 0
      %s18 = sshll.u32 %s1, 4
      %s19 = int_to_ptr.hbm [resolvable:$true] %s18
      %s20 = sshll.u32 [#allocation3], 4
      %s21 = int_to_ptr.vmem [resolvable:$true] %s20
      %26 = dma.hbm_to_vmem [thread:$0]  %s19, 1024, %s21, [#allocation4], 64, 64, 4
    $region9: #{_lambda_.19} parent=1 // pred_fallthru
      _
    // Predicated region
    $region10: #{_lambda_.19} parent=1 // pred_check
      _
    $region11: #{_lambda_.19} parent=1 // pred_check_branch
      %28 = sbr.rel (0) target = $region13
    $region12: #{_lambda_.19} parent=1 // pred_region
      _
    $region13: #{_lambda_.19} parent=1 // pred_fallthru
      _
    // Predicated region
    $region14: #{_lambda_.19} parent=1 // pred_check
      _
    $region15: #{_lambda_.19} parent=1 // pred_check_branch
      %30 = sbr.rel (0) target = $region17
    $region16: #{_lambda_.19} parent=1 // pred_region
      _
    $region17: #{_lambda_.19} parent=1 // pred_fallthru
      _
    // Predicated region
    $region18: #{_lambda_.19} parent=1 // pred_check
      _
    $region19: #{_lambda_.19} parent=1 // pred_check_branch
      %32 = sbr.rel (0) target = $region21
    $region20: #{_lambda_.19} parent=1 // pred_region
      _
    $region21: #{_lambda_.19} parent=1 // pred_fallthru
      _
    // Predicated region
    $region22: #{_lambda_.19} parent=1 // pred_check
      _
    $region23: #{_lambda_.19} parent=1 // pred_check_branch
      %34 = sbr.rel (0) target = $region25
    $region24: #{_lambda_.19} parent=1 // pred_region
      _
    $region25: #{_lambda_.19} parent=1 // pred_fallthru
      _
    // Predicated region
    $region26: #{_lambda_.19} parent=1 // pred_check
      _
    $region27: #{_lambda_.19} parent=1 // pred_check_branch
      %36 = sbr.rel (0) target = $region29
    $region28: #{_lambda_.19} parent=1 // pred_region
      %38 = dma.done [#allocation4], 1024
    $region29: #{_lambda_.19} parent=1 // pred_fallthru
      _
    %p39 = scmp.eq.s32.totalorder 0, 0
    // Predicated region
    $region30: #{_lambda_.19} parent=1 // pred_check
      %p40 = pneg %p39
    $region31: #{_lambda_.19} parent=1 // pred_check_branch
      %42 = sbr.rel (%p40) target = $region33
    $region32: #{_lambda_.19} parent=1 // pred_region
      %43 = vst [vmem:[#allocation2] sm:$0xff] 0.0
      %44 = vst [vmem:[#allocation2 + $0x8] sm:$0xff] 0.0
      %45 = vst [vmem:[#allocation2 + $0x10] sm:$0xff] 0.0
      %46 = vst [vmem:[#allocation2 + $0x18] sm:$0xff] 0.0
    $region33: #{_lambda_.19} parent=1 // pred_fallthru
      _
    %v47 = vld [vmem:[#allocation2] sm:$0xff]
    %v48 = vld [vmem:[#allocation2 + $0x8] sm:$0xff]
    %v49 = vld [vmem:[#allocation2 + $0x10] sm:$0xff]
    %v50 = vld [vmem:[#allocation2 + $0x18] sm:$0xff]
    %v51 = vld [vmem:[%s0] sm:$0xf]
    %v52 = vld [vmem:[%s0 + $0x4] sm:$0xf]
    %v53 = vld [vmem:[%s0 + $0x8] sm:$0xf]
    %v54 = vld [vmem:[%s0 + $0xc] sm:$0xf]
    %v55 = vld [vmem:[#allocation3] sm:$0xf]
    %v56 = vld [vmem:[#allocation3 + $0x4] sm:$0xf]
    %v57 = vld [vmem:[#allocation3 + $0x8] sm:$0xf]
    %v58 = vld [vmem:[#allocation3 + $0xc] sm:$0xf]
    %v59 = vld [vmem:[#allocation3 + $0x10] sm:$0xf]
    %v60 = vld [vmem:[#allocation3 + $0x14] sm:$0xf]
    %v61 = vld [vmem:[#allocation3 + $0x18] sm:$0xf]
    %v62 = vld [vmem:[#allocation3 + $0x1c] sm:$0xf]
    %v63 = vld [vmem:[#allocation3 + $0x20] sm:$0xf]
    %v64 = vld [vmem:[#allocation3 + $0x24] sm:$0xf]
    %v65 = vld [vmem:[#allocation3 + $0x28] sm:$0xf]
    %v66 = vld [vmem:[#allocation3 + $0x2c] sm:$0xf]
    %v67 = vld [vmem:[#allocation3 + $0x30] sm:$0xf]
    %v68 = vld [vmem:[#allocation3 + $0x34] sm:$0xf]
    %v69 = vld [vmem:[#allocation3 + $0x38] sm:$0xf]
    %v70 = vld [vmem:[#allocation3 + $0x3c] sm:$0xf]
    %v75 = vunpack.c.l.b16 %v51
    %v76 = vunpack.c.l.b16 %v52
    %v77 = vunpack.c.l.b16 %v53
    %v78 = vunpack.c.l.b16 %v54
    %v79 = vpack.c.b16 %v76, %v75
    %v80 = vpack.c.b16 %v78, %v77
    %v99 = vunpack.c.l.b16 %v55
    %v100 = vunpack.c.l.b16 %v56
    %v101 = vunpack.c.l.b16 %v57
    %v102 = vunpack.c.l.b16 %v58
    %v103 = vunpack.c.l.b16 %v59
    %v104 = vunpack.c.l.b16 %v60
    %v105 = vunpack.c.l.b16 %v61
    %v106 = vunpack.c.l.b16 %v62
    %v107 = vunpack.c.l.b16 %v63
    %v108 = vunpack.c.l.b16 %v64
    %v109 = vunpack.c.l.b16 %v65
    %v110 = vunpack.c.l.b16 %v66
    %v111 = vunpack.c.l.b16 %v67
    %v112 = vunpack.c.l.b16 %v68
    %v113 = vunpack.c.l.b16 %v69
    %v114 = vunpack.c.l.b16 %v70
    %v115 = vpack.c.b16 %v100, %v99
    %v116 = vpack.c.b16 %v102, %v101
    %v117 = vpack.c.b16 %v104, %v103
    %v118 = vpack.c.b16 %v106, %v105
    %v119 = vpack.c.b16 %v108, %v107
    %v120 = vpack.c.b16 %v110, %v109
    %v121 = vpack.c.b16 %v112, %v111
    %v122 = vpack.c.b16 %v114, %v113
    %131 = vmatpush.bf16.msra.mxu0 %v122
    %132 = vmatpush.bf16.msra.mxu0 %v121
    %133 = vmatpush.bf16.msra.mxu0 %v120
    %134 = vmatpush.bf16.msra.mxu0 %v119
    %135 = vmatpush.bf16.msra.mxu0 %v118
    %136 = vmatpush.bf16.msra.mxu0 %v117
    %137 = vmatpush.bf16.msra.mxu0 %v116
    %138 = vmatpush.bf16.msra.mxu0 %v115
    %139 = vmatmul.bf16.gmra.mxu0 %v79
    %v140 = vpop.f32.mrf.mxu0
    %v141 = vadd.f32 0.0, %v140
    %v142 = vpop.f32.mrf.mxu0
    %v143 = vadd.f32 0.0, %v142
    %144 = vmatmul.bf16.gmra.mxu0 %v80
    %v145 = vpop.f32.mrf.mxu0
    %v146 = vadd.f32 0.0, %v145
    %v147 = vpop.f32.mrf.mxu0
    %v148 = vadd.f32 0.0, %v147
    %149 = vdwg.mxu0
    %v150 = vadd.f32 %v47, %v141
    %v151 = vadd.f32 %v48, %v143
    %v152 = vadd.f32 %v49, %v146
    %v153 = vadd.f32 %v50, %v148
    %154 = vst [vmem:[#allocation2] sm:$0xff] %v150
    %155 = vst [vmem:[#allocation2 + $0x8] sm:$0xff] %v151
    %156 = vst [vmem:[#allocation2 + $0x10] sm:$0xff] %v152
    %157 = vst [vmem:[#allocation2 + $0x18] sm:$0xff] %v153
    // Predicated region
    $region34: #{_lambda_.19} parent=1 // pred_check
      %p158 = pneg %p39
    $region35: #{_lambda_.19} parent=1 // pred_check_branch
      %160 = sbr.rel (%p158) target = $region37
    $region36: #{_lambda_.19} parent=1 // pred_region
      %v161 = vld [vmem:[#allocation2] sm:$0xff]
      %v162 = vld [vmem:[#allocation2 + $0x8] sm:$0xff]
      %v163 = vld [vmem:[#allocation2 + $0x10] sm:$0xff]
      %v164 = vld [vmem:[#allocation2 + $0x18] sm:$0xff]
      %v165 = vld [vmem:[%s2] sm:$0x1]
      %v167 = vperm.slane %v165, 0
      %v169 = vadd.f32 %v161, %v167
      %v170 = vadd.f32 %v162, %v167
      %v171 = vadd.f32 %v163, %v167
      %v172 = vadd.f32 %v164, %v167
      %v173 = vld [vmem:[%s3] sm:$0xf]
      %v174 = vld [vmem:[%s3 + $0x4] sm:$0xf]
      %v175 = vld [vmem:[%s3 + $0x8] sm:$0xf]
      %v176 = vld [vmem:[%s3 + $0xc] sm:$0xf]
      %v177 = vunpack.c.l.bf16 %v173
      %v178 = vunpack.c.l.bf16 %v174
      %v179 = vunpack.c.l.bf16 %v175
      %v180 = vunpack.c.l.bf16 %v176
      %v181 = vadd.f32 %v169, %v177
      %v182 = vadd.f32 %v170, %v178
      %v183 = vadd.f32 %v171, %v179
      %v184 = vadd.f32 %v172, %v180
      %185 = vadd.xlane.f32.xlu0 %v181
      %v186 = vpop.xlane.xlu0 %185
      %187 = vadd.xlane.f32.xlu0 %v182
      %v188 = vpop.xlane.xlu0 %187
      %189 = vadd.xlane.f32.xlu0 %v183
      %v190 = vpop.xlane.xlu0 %189
      %191 = vadd.xlane.f32.xlu0 %v184
      %v192 = vpop.xlane.xlu0 %191
      %v193 = vrcp.pop 128.0
      %v194 = vmul.f32 128.0, %v193
      %v195 = vsub.f32 1.0, %v194
      %v196 = vmul.f32 %v193, %v195
      %v197 = vadd.f32 %v193, %v196
      %vm198 = vweird.f32 %v193
      %v199 = vsel %vm198, %v193, %v197
      %v200 = vmul.f32 %v186, %v199
      %v201 = vmul.f32 %v188, %v199
      %v202 = vmul.f32 %v190, %v199
      %v203 = vmul.f32 %v192, %v199
      %v204 = vsub.f32 %v181, %v200
      %v205 = vsub.f32 %v182, %v201
      %v206 = vsub.f32 %v183, %v202
      %v207 = vsub.f32 %v184, %v203
      %v208 = vmul.f32 %v204, %v204
      %v209 = vmul.f32 %v205, %v205
      %v210 = vmul.f32 %v206, %v206
      %v211 = vmul.f32 %v207, %v207
      %212 = vadd.xlane.f32.xlu0 %v208
      %v213 = vpop.xlane.xlu0 %212
      %214 = vadd.xlane.f32.xlu0 %v209
      %v215 = vpop.xlane.xlu0 %214
      %216 = vadd.xlane.f32.xlu0 %v210
      %v217 = vpop.xlane.xlu0 %216
      %218 = vadd.xlane.f32.xlu0 %v211
      %v219 = vpop.xlane.xlu0 %218
      %v220 = vmul.f32 %v213, %v199
      %v221 = vmul.f32 %v215, %v199
      %v222 = vmul.f32 %v217, %v199
      %v223 = vmul.f32 %v219, %v199
      %v224 = vadd.f32 %v220, 1e-12
      %v225 = vadd.f32 %v221, 1e-12
      %v226 = vadd.f32 %v222, 1e-12
      %v227 = vadd.f32 %v223, 1e-12
      %v228 = vrsqrt.pop %v224
      %v229 = vmul.f32 %v228, %v224
      %v230 = vmul.f32 %v229, %v228
      %v231 = vmul.f32 0.5, %v230
      %v232 = vsub.f32 1.5, %v231
      %v233 = vmul.f32 %v228, %v232
      %vm234 = vweird.f32 %v224
      %vm235 = vweird.f32 %v228
      %vm236 = vmor %vm234, %vm235
      %v237 = vsel %vm236, %v228, %v233
      %v238 = vrsqrt.pop %v225
      %v239 = vmul.f32 %v238, %v225
      %v240 = vmul.f32 %v239, %v238
      %v241 = vmul.f32 0.5, %v240
      %v242 = vsub.f32 1.5, %v241
      %v243 = vmul.f32 %v238, %v242
      %vm244 = vweird.f32 %v225
      %vm245 = vweird.f32 %v238
      %vm246 = vmor %vm244, %vm245
      %v247 = vsel %vm246, %v238, %v243
      %v248 = vrsqrt.pop %v226
      %v249 = vmul.f32 %v248, %v226
      %v250 = vmul.f32 %v249, %v248
      %v251 = vmul.f32 0.5, %v250
      %v252 = vsub.f32 1.5, %v251
      %v253 = vmul.f32 %v248, %v252
      %vm254 = vweird.f32 %v226
      %vm255 = vweird.f32 %v248
      %vm256 = vmor %vm254, %vm255
      %v257 = vsel %vm256, %v248, %v253
      %v258 = vrsqrt.pop %v227
      %v259 = vmul.f32 %v258, %v227
      %v260 = vmul.f32 %v259, %v258
      %v261 = vmul.f32 0.5, %v260
      %v262 = vsub.f32 1.5, %v261
      %v263 = vmul.f32 %v258, %v262
      %vm264 = vweird.f32 %v227
      %vm265 = vweird.f32 %v258
      %vm266 = vmor %vm264, %vm265
      %v267 = vsel %vm266, %v258, %v263
      %v268 = vmul.f32 %v204, %v237
      %v269 = vmul.f32 %v205, %v247
      %v270 = vmul.f32 %v206, %v257
      %v271 = vmul.f32 %v207, %v267
      %v272 = vld [vmem:[%s4] sm:$0x1]
      %v274 = vperm.slane %v272, 0
      %v276 = vmul.f32 %v268, %v274
      %v277 = vmul.f32 %v269, %v274
      %v278 = vmul.f32 %v270, %v274
      %v279 = vmul.f32 %v271, %v274
      %v280 = vld [vmem:[%s5] sm:$0x1]
      %v282 = vperm.slane %v280, 0
      %v284 = vadd.f32 %v276, %v282
      %v285 = vadd.f32 %v277, %v282
      %v286 = vadd.f32 %v278, %v282
      %v287 = vadd.f32 %v279, %v282
      %v288 = vpack.c.bf16 %v284, %v284
      %v289 = vpack.c.bf16 %v285, %v285
      %v290 = vpack.c.bf16 %v286, %v286
      %v291 = vpack.c.bf16 %v287, %v287
      %292 = vst [vmem:[%s6] sm:$0xf] %v288
      %293 = vst [vmem:[%s6 + $0x4] sm:$0xf] %v289
      %294 = vst [vmem:[%s6 + $0x8] sm:$0xf] %v290
      %295 = vst [vmem:[%s6 + $0xc] sm:$0xf] %v291
    $region37: #{_lambda_.19} parent=1 // pred_fallthru
      _
    // Predicated region
    $region38: #{_lambda_.19} parent=1 // pred_check
      _
    $region39: #{_lambda_.19} parent=1 // pred_check_branch
      %297 = sbr.rel (0) target = $region41
    $region40: #{_lambda_.19} parent=1 // pred_region
      _
    $region41: #{_lambda_.19} parent=1 // pred_fallthru
      _
    // Predicated region
    $region42: #{_lambda_.19} parent=1 // pred_check
      _
    $region43: #{_lambda_.19} parent=1 // pred_check_branch
      %299 = sbr.rel (0) target = $region45
    $region44: #{_lambda_.19} parent=1 // pred_region
      _
    $region45: #{_lambda_.19} parent=1 // pred_fallthru
      _
    %300 = vsyncpa [#allocation4], 1

// kernel: _lambda_.20
$region0: #{_lambda_.20}
  #allocation0 [shape = 'u32[]', space=smem, size = 0x4, offset = 0x4, fixed_abs, tag = 'smem constant byte address 0x4 - core index']
  #allocation1 [shape = 'u32[72,128]{1,0:T(1,128)}', space=vmem, size = 0x9000, scoped, tag = 'internal scratch']
  #allocation2 [shape = 'f32[32,256]{1,0:T(8,128)}', space=vmem, size = 0x8000, scoped, tag = 'scratch operand']
  %s0 = inlined_call_operand.vmem [shape: bf16[32,128], index: 0, kind: input, shape index: {}]
  %s1 = inlined_call_operand.hbm [shape: bf16[128,256], index: 1, kind: input, shape index: {}]
  %s2 = inlined_call_operand.vmem [shape: f32[1,256], index: 2, kind: input, shape index: {}]
  %s3 = inlined_call_operand.vmem [shape: bf16[32,256], index: 3, kind: output, shape index: {}]
  %s4 = sld [smem:[#allocation0]]
  $region34: #{_lambda_.20} parent=0
    _
  %s6 = ssub.s32 1, %s4
  %s7 = scalar_select 0, %s6, %s4
  $region1: #{_lambda_.20} parent=0
    #allocation3 [shape = 'u8[65536]{0}', space=vmem, size = 0x10000, scoped, tag = 'input window, operand 1, single buffered']
    #allocation4 [shape = 's32[1]{0}', space=sflag, size = 0x4, scoped, tag = 'scoped memory for _lambda_.20']
    %8 = vsyncpa [#allocation4], 0
    // Predicated region
    $region2: #{_lambda_.20} parent=1 // pred_check
      _
    $region3: #{_lambda_.20} parent=1 // pred_check_branch
      %10 = sbr.rel (0) target = $region5
    $region4: #{_lambda_.20} parent=1 // pred_region
      _
    $region5: #{_lambda_.20} parent=1 // pred_fallthru
      _
    // Predicated region
    $region6: #{_lambda_.20} parent=1 // pred_check
      _
    $region7: #{_lambda_.20} parent=1 // pred_check_branch
      %12 = sbr.rel (0) target = $region9
    $region8: #{_lambda_.20} parent=1 // pred_region
      %14 = vsyncadd [#allocation4], 0
      %s15 = sshll.u32 %s1, 4
      %s16 = int_to_ptr.hbm [resolvable:$true] %s15
      %s17 = sshll.u32 [#allocation3], 4
      %s18 = int_to_ptr.vmem [resolvable:$true] %s17
      %23 = dma.hbm_to_vmem [thread:$0]  %s16, 2048, %s18, [#allocation4], 128, 128, 8
    $region9: #{_lambda_.20} parent=1 // pred_fallthru
      _
    // Predicated region
    $region10: #{_lambda_.20} parent=1 // pred_check
      _
    $region11: #{_lambda_.20} parent=1 // pred_check_branch
      %25 = sbr.rel (0) target = $region13
    $region12: #{_lambda_.20} parent=1 // pred_region
      _
    $region13: #{_lambda_.20} parent=1 // pred_fallthru
      _
    // Predicated region
    $region14: #{_lambda_.20} parent=1 // pred_check
      _
    $region15: #{_lambda_.20} parent=1 // pred_check_branch
      %27 = sbr.rel (0) target = $region17
    $region16: #{_lambda_.20} parent=1 // pred_region
      %29 = dma.done [#allocation4], 2048
    $region17: #{_lambda_.20} parent=1 // pred_fallthru
      _
    %p30 = scmp.eq.s32.totalorder 0, 0
    // Predicated region
    $region18: #{_lambda_.20} parent=1 // pred_check
      %p31 = pneg %p30
    $region19: #{_lambda_.20} parent=1 // pred_check_branch
      %33 = sbr.rel (%p31) target = $region21
    $region20: #{_lambda_.20} parent=1 // pred_region
      %34 = vst [vmem:[#allocation2] sm:$0xff] 0.0
      %35 = vst [vmem:[#allocation2 + $0x8] sm:$0xff] 0.0
      %36 = vst [vmem:[#allocation2 + $0x10] sm:$0xff] 0.0
      %37 = vst [vmem:[#allocation2 + $0x18] sm:$0xff] 0.0
      %38 = vst [vmem:[#allocation2 + $0x20] sm:$0xff] 0.0
      %39 = vst [vmem:[#allocation2 + $0x28] sm:$0xff] 0.0
      %40 = vst [vmem:[#allocation2 + $0x30] sm:$0xff] 0.0
      %41 = vst [vmem:[#allocation2 + $0x38] sm:$0xff] 0.0
    $region21: #{_lambda_.20} parent=1 // pred_fallthru
      _
    %v42 = vld [vmem:[#allocation2] sm:$0xff]
    %v43 = vld [vmem:[#allocation2 + $0x8] sm:$0xff]
    %v44 = vld [vmem:[#allocation2 + $0x10] sm:$0xff]
    %v45 = vld [vmem:[#allocation2 + $0x18] sm:$0xff]
    %v46 = vld [vmem:[#allocation2 + $0x20] sm:$0xff]
    %v47 = vld [vmem:[#allocation2 + $0x28] sm:$0xff]
    %v48 = vld [vmem:[#allocation2 + $0x30] sm:$0xff]
    %v49 = vld [vmem:[#allocation2 + $0x38] sm:$0xff]
    %v50 = vld [vmem:[%s0] sm:$0xf]
    %v51 = vld [vmem:[%s0 + $0x4] sm:$0xf]
    %v52 = vld [vmem:[%s0 + $0x8] sm:$0xf]
    %v53 = vld [vmem:[%s0 + $0xc] sm:$0xf]
    %v54 = vld [vmem:[#allocation3] sm:$0xff]
    %v55 = vld [vmem:[#allocation3 + $0x8] sm:$0xff]
    %v56 = vld [vmem:[#allocation3 + $0x10] sm:$0xff]
    %v57 = vld [vmem:[#allocation3 + $0x18] sm:$0xff]
    %v58 = vld [vmem:[#allocation3 + $0x20] sm:$0xff]
    %v59 = vld [vmem:[#allocation3 + $0x28] sm:$0xff]
    %v60 = vld [vmem:[#allocation3 + $0x30] sm:$0xff]
    %v61 = vld [vmem:[#allocation3 + $0x38] sm:$0xff]
    %v62 = vld [vmem:[#allocation3 + $0x40] sm:$0xff]
    %v63 = vld [vmem:[#allocation3 + $0x48] sm:$0xff]
    %v64 = vld [vmem:[#allocation3 + $0x50] sm:$0xff]
    %v65 = vld [vmem:[#allocation3 + $0x58] sm:$0xff]
    %v66 = vld [vmem:[#allocation3 + $0x60] sm:$0xff]
    %v67 = vld [vmem:[#allocation3 + $0x68] sm:$0xff]
    %v68 = vld [vmem:[#allocation3 + $0x70] sm:$0xff]
    %v69 = vld [vmem:[#allocation3 + $0x78] sm:$0xff]
    %v74 = vunpack.c.l.b16 %v50
    %v75 = vunpack.c.l.b16 %v51
    %v76 = vunpack.c.l.b16 %v52
    %v77 = vunpack.c.l.b16 %v53
    %v78 = vpack.c.b16 %v75, %v74
    %v79 = vpack.c.b16 %v77, %v76
    %v98 = vunpack.c.l.b16 %v54
    %v99 = vunpack.c.h.b16 %v54
    %v100 = vunpack.c.l.b16 %v55
    %v101 = vunpack.c.h.b16 %v55
    %v102 = vunpack.c.l.b16 %v56
    %v103 = vunpack.c.h.b16 %v56
    %v104 = vunpack.c.l.b16 %v57
    %v105 = vunpack.c.h.b16 %v57
    %v106 = vunpack.c.l.b16 %v58
    %v107 = vunpack.c.h.b16 %v58
    %v108 = vunpack.c.l.b16 %v59
    %v109 = vunpack.c.h.b16 %v59
    %v110 = vunpack.c.l.b16 %v60
    %v111 = vunpack.c.h.b16 %v60
    %v112 = vunpack.c.l.b16 %v61
    %v113 = vunpack.c.h.b16 %v61
    %v114 = vunpack.c.l.b16 %v62
    %v115 = vunpack.c.h.b16 %v62
    %v116 = vunpack.c.l.b16 %v63
    %v117 = vunpack.c.h.b16 %v63
    %v118 = vunpack.c.l.b16 %v64
    %v119 = vunpack.c.h.b16 %v64
    %v120 = vunpack.c.l.b16 %v65
    %v121 = vunpack.c.h.b16 %v65
    %v122 = vunpack.c.l.b16 %v66
    %v123 = vunpack.c.h.b16 %v66
    %v124 = vunpack.c.l.b16 %v67
    %v125 = vunpack.c.h.b16 %v67
    %v126 = vunpack.c.l.b16 %v68
    %v127 = vunpack.c.h.b16 %v68
    %v128 = vunpack.c.l.b16 %v69
    %v129 = vunpack.c.h.b16 %v69
    %v130 = vpack.c.b16 %v100, %v98
    %v131 = vpack.c.b16 %v101, %v99
    %v132 = vpack.c.b16 %v104, %v102
    %v133 = vpack.c.b16 %v105, %v103
    %v134 = vpack.c.b16 %v108, %v106
    %v135 = vpack.c.b16 %v109, %v107
    %v136 = vpack.c.b16 %v112, %v110
    %v137 = vpack.c.b16 %v113, %v111
    %v138 = vpack.c.b16 %v116, %v114
    %v139 = vpack.c.b16 %v117, %v115
    %v140 = vpack.c.b16 %v120, %v118
    %v141 = vpack.c.b16 %v121, %v119
    %v142 = vpack.c.b16 %v124, %v122
    %v143 = vpack.c.b16 %v125, %v123
    %v144 = vpack.c.b16 %v128, %v126
    %v145 = vpack.c.b16 %v129, %v127
    %162 = vmatpush.bf16.msra.mxu0 %v144
    %163 = vmatpush.bf16.msra.mxu0 %v142
    %164 = vmatpush.bf16.msra.mxu0 %v140
    %165 = vmatpush.bf16.msra.mxu0 %v138
    %166 = vmatpush.bf16.msra.mxu0 %v136
    %167 = vmatpush.bf16.msra.mxu0 %v134
    %168 = vmatpush.bf16.msra.mxu0 %v132
    %169 = vmatpush.bf16.msra.mxu0 %v130
    %170 = vmatmul.bf16.gmra.mxu0 %v78
    %v171 = vpop.f32.mrf.mxu0
    %v172 = vadd.f32 0.0, %v171
    %v173 = vpop.f32.mrf.mxu0
    %v174 = vadd.f32 0.0, %v173
    %175 = vmatmul.bf16.gmra.mxu0 %v79
    %v176 = vpop.f32.mrf.mxu0
    %v177 = vadd.f32 0.0, %v176
    %v178 = vpop.f32.mrf.mxu0
    %v179 = vadd.f32 0.0, %v178
    %180 = vdwg.mxu0
    %181 = vmatpush.bf16.msra.mxu0 %v145
    %182 = vmatpush.bf16.msra.mxu0 %v143
    %183 = vmatpush.bf16.msra.mxu0 %v141
    %184 = vmatpush.bf16.msra.mxu0 %v139
    %185 = vmatpush.bf16.msra.mxu0 %v137
    %186 = vmatpush.bf16.msra.mxu0 %v135
    %187 = vmatpush.bf16.msra.mxu0 %v133
    %188 = vmatpush.bf16.msra.mxu0 %v131
    %189 = vmatmul.bf16.gmra.mxu0 %v78
    %v190 = vpop.f32.mrf.mxu0
    %v191 = vadd.f32 0.0, %v190
    %v192 = vpop.f32.mrf.mxu0
    %v193 = vadd.f32 0.0, %v192
    %194 = vmatmul.bf16.gmra.mxu0 %v79
    %v195 = vpop.f32.mrf.mxu0
    %v196 = vadd.f32 0.0, %v195
    %v197 = vpop.f32.mrf.mxu0
    %v198 = vadd.f32 0.0, %v197
    %199 = vdwg.mxu0
    %v200 = vadd.f32 %v42, %v172
    %v201 = vadd.f32 %v43, %v191
    %v202 = vadd.f32 %v44, %v174
    %v203 = vadd.f32 %v45, %v193
    %v204 = vadd.f32 %v46, %v177
    %v205 = vadd.f32 %v47, %v196
    %v206 = vadd.f32 %v48, %v179
    %v207 = vadd.f32 %v49, %v198
    %208 = vst [vmem:[#allocation2] sm:$0xff] %v200
    %209 = vst [vmem:[#allocation2 + $0x8] sm:$0xff] %v201
    %210 = vst [vmem:[#allocation2 + $0x10] sm:$0xff] %v202
    %211 = vst [vmem:[#allocation2 + $0x18] sm:$0xff] %v203
    %212 = vst [vmem:[#allocation2 + $0x20] sm:$0xff] %v204
    %213 = vst [vmem:[#allocation2 + $0x28] sm:$0xff] %v205
    %214 = vst [vmem:[#allocation2 + $0x30] sm:$0xff] %v206
    %215 = vst [vmem:[#allocation2 + $0x38] sm:$0xff] %v207
    // Predicated region
    $region22: #{_lambda_.20} parent=1 // pred_check
      %p216 = pneg %p30
    $region23: #{_lambda_.20} parent=1 // pred_check_branch
      %218 = sbr.rel (%p216) target = $region25
    $region24: #{_lambda_.20} parent=1 // pred_region
      %v219 = vld [vmem:[#allocation2] sm:$0xff]
      %v220 = vld [vmem:[#allocation2 + $0x8] sm:$0xff]
      %v221 = vld [vmem:[#allocation2 + $0x10] sm:$0xff]
      %v222 = vld [vmem:[#allocation2 + $0x18] sm:$0xff]
      %v223 = vld [vmem:[#allocation2 + $0x20] sm:$0xff]
      %v224 = vld [vmem:[#allocation2 + $0x28] sm:$0xff]
      %v225 = vld [vmem:[#allocation2 + $0x30] sm:$0xff]
      %v226 = vld [vmem:[#allocation2 + $0x38] sm:$0xff]
      %v227 = vld [vmem:[%s2] sm:$0x3]
      %v229 = vperm.slane %v227, 0
      %v230 = vperm.slane %v227, 1
      %v233 = vadd.f32 %v219, %v229
      %v234 = vadd.f32 %v220, %v230
      %v235 = vadd.f32 %v221, %v229
      %v236 = vadd.f32 %v222, %v230
      %v237 = vadd.f32 %v223, %v229
      %v238 = vadd.f32 %v224, %v230
      %v239 = vadd.f32 %v225, %v229
      %v240 = vadd.f32 %v226, %v230
      %v241 = vmul.f32 %v233, 0.5
      %v242 = vmul.f32 %v234, 0.5
      %v243 = vmul.f32 %v235, 0.5
      %v244 = vmul.f32 %v236, 0.5
      %v245 = vmul.f32 %v237, 0.5
      %v246 = vmul.f32 %v238, 0.5
      %v247 = vmul.f32 %v239, 0.5
      %v248 = vmul.f32 %v240, 0.5
      %v249 = vmul.f32 %v233, 0.044715
      %v250 = vmul.f32 %v234, 0.044715
      %v251 = vmul.f32 %v235, 0.044715
      %v252 = vmul.f32 %v236, 0.044715
      %v253 = vmul.f32 %v237, 0.044715
      %v254 = vmul.f32 %v238, 0.044715
      %v255 = vmul.f32 %v239, 0.044715
      %v256 = vmul.f32 %v240, 0.044715
      %v257 = vmul.f32 %v249, %v233
      %v258 = vmul.f32 %v250, %v234
      %v259 = vmul.f32 %v251, %v235
      %v260 = vmul.f32 %v252, %v236
      %v261 = vmul.f32 %v253, %v237
      %v262 = vmul.f32 %v254, %v238
      %v263 = vmul.f32 %v255, %v239
      %v264 = vmul.f32 %v256, %v240
      %v265 = vmul.f32 %v257, %v233
      %v266 = vmul.f32 %v258, %v234
      %v267 = vmul.f32 %v259, %v235
      %v268 = vmul.f32 %v260, %v236
      %v269 = vmul.f32 %v261, %v237
      %v270 = vmul.f32 %v262, %v238
      %v271 = vmul.f32 %v263, %v239
      %v272 = vmul.f32 %v264, %v240
      %v273 = vadd.f32 %v233, %v265
      %v274 = vadd.f32 %v234, %v266
      %v275 = vadd.f32 %v235, %v267
      %v276 = vadd.f32 %v236, %v268
      %v277 = vadd.f32 %v237, %v269
      %v278 = vadd.f32 %v238, %v270
      %v279 = vadd.f32 %v239, %v271
      %v280 = vadd.f32 %v240, %v272
      %v281 = vmul.f32 %v273, 0.7978846
      %v282 = vmul.f32 %v274, 0.7978846
      %v283 = vmul.f32 %v275, 0.7978846
      %v284 = vmul.f32 %v276, 0.7978846
      %v285 = vmul.f32 %v277, 0.7978846
      %v286 = vmul.f32 %v278, 0.7978846
      %v287 = vmul.f32 %v279, 0.7978846
      %v288 = vmul.f32 %v280, 0.7978846
      %v289 = vtanh.pop %v281
      %v290 = vtanh.pop %v282
      %v291 = vtanh.pop %v283
      %v292 = vtanh.pop %v284
      %v293 = vtanh.pop %v285
      %v294 = vtanh.pop %v286
      %v295 = vtanh.pop %v287
      %v296 = vtanh.pop %v288
      %v297 = vadd.f32 %v289, 1.0
      %v298 = vadd.f32 %v290, 1.0
      %v299 = vadd.f32 %v291, 1.0
      %v300 = vadd.f32 %v292, 1.0
      %v301 = vadd.f32 %v293, 1.0
      %v302 = vadd.f32 %v294, 1.0
      %v303 = vadd.f32 %v295, 1.0
      %v304 = vadd.f32 %v296, 1.0
      %v305 = vmul.f32 %v241, %v297
      %v306 = vmul.f32 %v242, %v298
      %v307 = vmul.f32 %v243, %v299
      %v308 = vmul.f32 %v244, %v300
      %v309 = vmul.f32 %v245, %v301
      %v310 = vmul.f32 %v246, %v302
      %v311 = vmul.f32 %v247, %v303
      %v312 = vmul.f32 %v248, %v304
      %v313 = vpack.c.bf16 %v306, %v305
      %v314 = vpack.c.bf16 %v308, %v307
      %v315 = vpack.c.bf16 %v310, %v309
      %v316 = vpack.c.bf16 %v312, %v311
      %317 = vst [vmem:[%s3] sm:$0xff] %v313
      %318 = vst [vmem:[%s3 + $0x8] sm:$0xff] %v314
      %319 = vst [vmem:[%s3 + $0x10] sm:$0xff] %v315
      %320 = vst [vmem:[%s3 + $0x18] sm:$0xff] %v316
    $region25: #{_lambda_.20} parent=1 // pred_fallthru
      _
    // Predicated region
    $region26: #{_lambda_.20} parent=1 // pred_check
      _
    $region27: #{_lambda_.20} parent=1 // pred_check_branch
      %322 = sbr.rel (0) target = $region29
    $region28: #{_lambda_.20} parent=1 // pred_region
      _
    $region29: #{_lambda_.20} parent=1 // pred_fallthru
      _
    // Predicated region
    $region30: #{_lambda_.20} parent=1 // pred_check
      _
    $region31: #{_lambda_.20} parent=1 // pred_check_branch
      %324 = sbr.rel (0) target = $region33
    $region32: #{_lambda_.20} parent=1 // pred_region
      _
    $region33: #{_lambda_.20} parent=1 // pred_fallthru
      _
    %325 = vsyncpa [#allocation4], 1

</llo_original>
